<compile_context>
chip_gen: v7x
topology: tpu7x:2x2x1
jax: 0.10.0
libtpu: 0.0.40
codegen_flags: <defaults>
</compile_context>

<pallas_src>
import functools

import jax
import jax.numpy as jnp
from jax import lax
from jax.experimental import pallas as pl
from jax.experimental.pallas import tpu as pltpu


# ---------------------------------------------------------------------------
# Tiling helpers (review items 6/7/8/9)
# ---------------------------------------------------------------------------

_VMEM_LIMIT_BYTES = 32 * 1024 * 1024   # explicit scoped-VMEM request, safe on v5e/v6e/v7x
_BLOCK_BUDGET_BYTES = 2 * 1024 * 1024  # per input block; live set ~ 2*in + 2*out + scratch


def _divisors(n):
    return [d for d in range(1, n + 1) if n % d == 0]


def _choose_bc_tiles(B, C, H, W, itemsize, max_imgs=16):
    """Pick (bt, ct) batch/channel tiles: fit VMEM budget, keep >=4 grid steps
    when possible (pipelining / megacore), cap unrolled per-image work."""
    img_bytes = H * W * itemsize
    best_key, best = None, (1, 1)
    for bt in _divisors(B):
        for ct in _divisors(C):
            n_img = bt * ct
            if n_img > max_imgs:
                continue
            blk = n_img * img_bytes
            if blk > _BLOCK_BUDGET_BYTES and n_img > 1:
                continue
            steps = (B // bt) * (C // ct)
            enough_steps = steps >= min(4, B * C)
            key = (enough_steps, blk, steps)
            if best_key is None or key > best_key:
                best_key, best = key, (bt, ct)
    return best


def _choose_group(BC, Ho, row_w, itemsize):
    """Images-per-block for the fallback path: dtype-aware sublane legality,
    no blind full-batch fallback."""
    m = max(8 * 4 // itemsize, 8)          # 8 (f32) / 16 (bf16) / 32 (int8) sublane multiple
    best_key, best = None, None
    for g in _divisors(BC):
        if (g * Ho) % m != 0 and g != BC:   # full extent is always layout-legal
            continue
        blk = g * Ho * row_w * itemsize
        if blk > _BLOCK_BUDGET_BYTES and g > 1:
            continue
        steps = BC // g
        enough = steps >= min(4, BC)
        key = (enough, blk, steps)
        if best_key is None or key > best_key:
            best_key, best = key, g
    return BC if best is None else best


# ---------------------------------------------------------------------------
# Primary path: zero-MXU gather (strided sublane loads + XLU transposes)
# ---------------------------------------------------------------------------

def _unshuffle_transpose_kernel(x_ref, o_ref, t_ref, *, s):
    # x_ref: (bt, ct, H, W)   o_ref: (bt, ct, s, s, Ho, Wo)   t_ref: (W, Ho) f32 scratch
    bt, ct, _, _, Ho, Wo = o_ref.shape
    for b in range(bt):
        for c in range(ct):
            for i in range(s):
                # i-phase: every s-th image row -> one sublane-strided load.
                rows = x_ref[b, c, pl.ds(i, Ho, stride=s), :]            # (Ho, W)
                # Put W on sublanes so the j-phase also becomes a sublane stride.
                t_ref[...] = jnp.transpose(rows.astype(jnp.float32))      # (W, Ho)
                for j in range(s):
                    cols = t_ref[pl.ds(j, Wo, stride=s), :]               # (Wo, Ho)
                    o_ref[b, c, i, j, :, :] = (
                        jnp.transpose(cols).astype(o_ref.dtype))          # (Ho, Wo)


def _pixel_unshuffle_transpose(x, s):
    B, C, H, W = x.shape
    Ho, Wo = H // s, W // s
    bt, ct = _choose_bc_tiles(B, C, H, W, x.dtype.itemsize)

    out6 = pl.pallas_call(
        functools.partial(_unshuffle_transpose_kernel, s=s),
        out_shape=jax.ShapeDtypeStruct((B, C, s, s, Ho, Wo), x.dtype),
        grid_spec=pltpu.PrefetchScalarGridSpec(
            num_scalar_prefetch=0,
            grid=(B // bt, C // ct),
            in_specs=[pl.BlockSpec((bt, ct, H, W), lambda gb, gc: (gb, gc, 0, 0))],
            out_specs=pl.BlockSpec((bt, ct, s, s, Ho, Wo),
                                   lambda gb, gc: (gb, gc, 0, 0, 0, 0)),
            scratch_shapes=[pltpu.VMEM((W, Ho), jnp.float32)],
        ),
        compiler_params=pltpu.CompilerParams(
            dimension_semantics=("parallel", "parallel"),
            vmem_limit_bytes=_VMEM_LIMIT_BYTES,
        ),
    )(x)
    # Free reshape: (B, C, s, s, Ho, Wo) -> (B, C*s*s, Ho, Wo)
    return out6.reshape(B, C * s * s, Ho, Wo)


# ---------------------------------------------------------------------------
# Fallback path: one-hot matmul gather (proven op set), K=W, in-kernel sel
# ---------------------------------------------------------------------------

def _unshuffle_matmul_kernel(x_ref, o_ref, *, s, W):
    # x_ref: (g*Ho, s*W)   o_ref: (g, s, s, Ho, Wo)
    g, _, _, Ho, Wo = o_ref.shape
    xt = x_ref[...]
    exact_f32 = xt.dtype == jnp.float32
    sel_dtype = jnp.float32 if exact_f32 else xt.dtype
    prec = lax.Precision.HIGHEST if exact_f32 else lax.Precision.DEFAULT

    w_iota = lax.broadcasted_iota(jnp.int32, (W, Wo), 0)
    k_iota = lax.broadcasted_iota(jnp.int32, (W, Wo), 1)
    for j in range(s):
        sel = (w_iota == k_iota * s + j).astype(sel_dtype)        # (W, Wo) one-hot
        for i in range(s):
            sl = xt[:, i * W:(i + 1) * W]                         # (g*Ho, W)
            res = lax.dot_general(
                sl, sel,
                dimension_numbers=(((1,), (0,)), ((), ())),
                preferred_element_type=jnp.float32,
                precision=prec)                                    # (g*Ho, Wo)
            # Single dense store per phase (no per-(b, c) unrolled loops).
            o_ref[:, i, j, :, :] = res.reshape(g, Ho, Wo).astype(o_ref.dtype)


def _pixel_unshuffle_matmul(x, s):
    B, C, H, W = x.shape
    Ho, Wo = H // s, W // s
    BC = B * C
    x2 = x.reshape(BC * Ho, s * W)          # free contiguous view
    g = _choose_group(BC, Ho, s * W, x.dtype.itemsize)

    out5 = pl.pallas_call(
        functools.partial(_unshuffle_matmul_kernel, s=s, W=W),
        out_shape=jax.ShapeDtypeStruct((BC, s, s, Ho, Wo), x.dtype),
        grid_spec=pltpu.PrefetchScalarGridSpec(
            num_scalar_prefetch=0,
            grid=(BC // g,),
            in_specs=[pl.BlockSpec((g * Ho, s * W), lambda k: (k, 0))],
            out_specs=pl.BlockSpec((g, s, s, Ho, Wo), lambda k: (k, 0, 0, 0, 0)),
        ),
        compiler_params=pltpu.CompilerParams(
            dimension_semantics=("parallel",),
            vmem_limit_bytes=_VMEM_LIMIT_BYTES,
        ),
    )(x2)
    return out5.reshape(B, C * s * s, Ho, Wo)


# ---------------------------------------------------------------------------
# Public entry point + pure-JAX reference
# ---------------------------------------------------------------------------

def _ref_down_shuffle(x, scale_factor):
    B, C, H, W = x.shape
    s = int(scale_factor)
    Ho, Wo = H // s, W // s
    xr = x.reshape(B, C, Ho, s, Wo, s).transpose(0, 1, 3, 5, 2, 4)
    return xr.reshape(B, C * s * s, Ho, Wo)


_use_fallback = False
_primary_checked = False


def pixel_unshuffle(x, scale_factor):
    """down_shuffle(x, s): (B, C, H, W) -> (B, C*s*s, H/s, W/s)."""
    global _use_fallback, _primary_checked
    s = int(scale_factor)
    B, C, H, W = x.shape
    assert H % s == 0 and W % s == 0, (H, W, s)
    if s == 1:
        return x

    if not _use_fallback:
        try:
            out = _pixel_unshuffle_transpose(x, s)
            out = jax.block_until_ready(out)
            if not _primary_checked:
                # One-time self-check of the zero-MXU path on this chip.
                ref = _ref_down_shuffle(x, s)
                if not bool(jnp.allclose(out, ref, atol=1e-6, rtol=1e-6)):
                    raise RuntimeError("transpose-path mismatch")
                _primary_checked = True
            return out
        except Exception:
            # Lowering/runtime failure of the strided/transpose path on this
            # Mosaic version -> use the guaranteed one-hot-matmul gather.
            _use_fallback = True
    return _pixel_unshuffle_matmul(x, s)


if __name__ == "__main__":
    key = jax.random.PRNGKey(0)
    B, C, H, W = 2, 4, 16, 16
    s = 2

    x = jax.random.normal(key, (B, C, H, W), dtype=jnp.float32)

    out = pixel_unshuffle(x, s)
    out = jax.block_until_ready(out)

    ref = _ref_down_shuffle(x, s)
    assert out.shape == (B, C * s * s, H // s, W // s), out.shape
    assert jnp.allclose(out, ref, atol=1e-5, rtol=1e-5), float(jnp.max(jnp.abs(out - ref)))

    print("KERNEL_OK")
</pallas_src>

<mosaic_0001>
module attributes {stable_mosaic.version = 11 : i64} {
  func.func @_unshuffle_transpose_kernel(%arg0: i32, %arg1: i32, %arg2: memref<1x2x16x16xf32, #tpu.memory_space<vmem>>, %arg3: memref<1x2x2x2x8x8xf32, #tpu.memory_space<vmem>>, %arg4: memref<16x8xf32, #tpu.memory_space<vmem>>) attributes {dimension_semantics = [#tpu.dimension_semantics<parallel>, #tpu.dimension_semantics<parallel>], iteration_bounds = array<i64: 2, 2>, scalar_prefetch = 0 : i64, scratch_operands = 1 : i64, tpu.core_type = #tpu.core_type<tc>, window_params = [{transform_indices = @transform_0, window_bounds = array<i64: 1, 2, 16, 16>}, {transform_indices = @transform_1, window_bounds = array<i64: 1, 2, 2, 2, 8, 8>}]} {
    %c0 = arith.constant 0 : index
    %c0_0 = arith.constant 0 : index
    %c0_1 = arith.constant 0 : index
    %c0_2 = arith.constant 0 : index
    %0 = tpu.strided_load %arg2[%c0, %c0_0, %c0_1, %c0_2] {strides = array<i32: 1, 1, 2, 1>} : memref<1x2x16x16xf32, #tpu.memory_space<vmem>>, vector<1x1x8x16xf32>
    %1 = vector.shape_cast %0 : vector<1x1x8x16xf32> to vector<8x16xf32>
    %2 = tpu.transpose %1, [1, 0] : vector<8x16xf32> -> vector<16x8xf32>
    %c0_3 = arith.constant 0 : index
    %c0_4 = arith.constant 0 : index
    %3 = vector.load %arg4[%c0_3, %c0_4] : memref<16x8xf32, #tpu.memory_space<vmem>>, vector<16x8xf32>
    tpu.vector_store %arg4[%c0_3, %c0_4], %2 {strides = array<i32>} : memref<16x8xf32, #tpu.memory_space<vmem>>, vector<16x8xf32>,
    %c0_5 = arith.constant 0 : index
    %c0_6 = arith.constant 0 : index
    %4 = tpu.strided_load %arg4[%c0_5, %c0_6] {strides = array<i32: 2, 1>} : memref<16x8xf32, #tpu.memory_space<vmem>>, vector<8x8xf32>
    %5 = tpu.transpose %4, [1, 0] : vector<8x8xf32> -> vector<8x8xf32>
    %c0_7 = arith.constant 0 : index
    %c0_8 = arith.constant 0 : index
    %c0_9 = arith.constant 0 : index
    %c0_10 = arith.constant 0 : index
    %c0_11 = arith.constant 0 : index
    %c0_12 = arith.constant 0 : index
    %6 = vector.load %arg3[%c0_7, %c0_8, %c0_9, %c0_10, %c0_11, %c0_12] : memref<1x2x2x2x8x8xf32, #tpu.memory_space<vmem>>, vector<1x1x1x1x8x8xf32>
    %7 = vector.shape_cast %6 : vector<1x1x1x1x8x8xf32> to vector<8x8xf32>
    %8 = vector.shape_cast %5 : vector<8x8xf32> to vector<1x1x1x1x8x8xf32>
    tpu.vector_store %arg3[%c0_7, %c0_8, %c0_9, %c0_10, %c0_11, %c0_12], %8 {strides = array<i32>} : memref<1x2x2x2x8x8xf32, #tpu.memory_space<vmem>>, vector<1x1x1x1x8x8xf32>,
    %c1 = arith.constant 1 : index
    %c0_13 = arith.constant 0 : index
    %9 = tpu.strided_load %arg4[%c1, %c0_13] {strides = array<i32: 2, 1>} : memref<16x8xf32, #tpu.memory_space<vmem>>, vector<8x8xf32>
    %10 = tpu.transpose %9, [1, 0] : vector<8x8xf32> -> vector<8x8xf32>
    %c0_14 = arith.constant 0 : index
    %c0_15 = arith.constant 0 : index
    %c0_16 = arith.constant 0 : index
    %c1_17 = arith.constant 1 : index
    %c0_18 = arith.constant 0 : index
    %c0_19 = arith.constant 0 : index
    %11 = vector.load %arg3[%c0_14, %c0_15, %c0_16, %c1_17, %c0_18, %c0_19] : memref<1x2x2x2x8x8xf32, #tpu.memory_space<vmem>>, vector<1x1x1x1x8x8xf32>
    %12 = vector.shape_cast %11 : vector<1x1x1x1x8x8xf32> to vector<8x8xf32>
    %13 = vector.shape_cast %10 : vector<8x8xf32> to vector<1x1x1x1x8x8xf32>
    tpu.vector_store %arg3[%c0_14, %c0_15, %c0_16, %c1_17, %c0_18, %c0_19], %13 {strides = array<i32>} : memref<1x2x2x2x8x8xf32, #tpu.memory_space<vmem>>, vector<1x1x1x1x8x8xf32>,
    %c0_20 = arith.constant 0 : index
    %c0_21 = arith.constant 0 : index
    %c1_22 = arith.constant 1 : index
    %c0_23 = arith.constant 0 : index
    %14 = tpu.strided_load %arg2[%c0_20, %c0_21, %c1_22, %c0_23] {strides = array<i32: 1, 1, 2, 1>} : memref<1x2x16x16xf32, #tpu.memory_space<vmem>>, vector<1x1x8x16xf32>
    %15 = vector.shape_cast %14 : vector<1x1x8x16xf32> to vector<8x16xf32>
    %16 = tpu.transpose %15, [1, 0] : vector<8x16xf32> -> vector<16x8xf32>
    %c0_24 = arith.constant 0 : index
    %c0_25 = arith.constant 0 : index
    %17 = vector.load %arg4[%c0_24, %c0_25] : memref<16x8xf32, #tpu.memory_space<vmem>>, vector<16x8xf32>
    tpu.vector_store %arg4[%c0_24, %c0_25], %16 {strides = array<i32>} : memref<16x8xf32, #tpu.memory_space<vmem>>, vector<16x8xf32>,
    %c0_26 = arith.constant 0 : index
    %c0_27 = arith.constant 0 : index
    %18 = tpu.strided_load %arg4[%c0_26, %c0_27] {strides = array<i32: 2, 1>} : memref<16x8xf32, #tpu.memory_space<vmem>>, vector<8x8xf32>
    %19 = tpu.transpose %18, [1, 0] : vector<8x8xf32> -> vector<8x8xf32>
    %c0_28 = arith.constant 0 : index
    %c0_29 = arith.constant 0 : index
    %c1_30 = arith.constant 1 : index
    %c0_31 = arith.constant 0 : index
    %c0_32 = arith.constant 0 : index
    %c0_33 = arith.constant 0 : index
    %20 = vector.load %arg3[%c0_28, %c0_29, %c1_30, %c0_31, %c0_32, %c0_33] : memref<1x2x2x2x8x8xf32, #tpu.memory_space<vmem>>, vector<1x1x1x1x8x8xf32>
    %21 = vector.shape_cast %20 : vector<1x1x1x1x8x8xf32> to vector<8x8xf32>
    %22 = vector.shape_cast %19 : vector<8x8xf32> to vector<1x1x1x1x8x8xf32>
    tpu.vector_store %arg3[%c0_28, %c0_29, %c1_30, %c0_31, %c0_32, %c0_33], %22 {strides = array<i32>} : memref<1x2x2x2x8x8xf32, #tpu.memory_space<vmem>>, vector<1x1x1x1x8x8xf32>,
    %c1_34 = arith.constant 1 : index
    %c0_35 = arith.constant 0 : index
    %23 = tpu.strided_load %arg4[%c1_34, %c0_35] {strides = array<i32: 2, 1>} : memref<16x8xf32, #tpu.memory_space<vmem>>, vector<8x8xf32>
    %24 = tpu.transpose %23, [1, 0] : vector<8x8xf32> -> vector<8x8xf32>
    %c0_36 = arith.constant 0 : index
    %c0_37 = arith.constant 0 : index
    %c1_38 = arith.constant 1 : index
    %c1_39 = arith.constant 1 : index
    %c0_40 = arith.constant 0 : index
    %c0_41 = arith.constant 0 : index
    %25 = vector.load %arg3[%c0_36, %c0_37, %c1_38, %c1_39, %c0_40, %c0_41] : memref<1x2x2x2x8x8xf32, #tpu.memory_space<vmem>>, vector<1x1x1x1x8x8xf32>
    %26 = vector.shape_cast %25 : vector<1x1x1x1x8x8xf32> to vector<8x8xf32>
    %27 = vector.shape_cast %24 : vector<8x8xf32> to vector<1x1x1x1x8x8xf32>
    tpu.vector_store %arg3[%c0_36, %c0_37, %c1_38, %c1_39, %c0_40, %c0_41], %27 {strides = array<i32>} : memref<1x2x2x2x8x8xf32, #tpu.memory_space<vmem>>, vector<1x1x1x1x8x8xf32>,
    %c0_42 = arith.constant 0 : index
    %c1_43 = arith.constant 1 : index
    %c0_44 = arith.constant 0 : index
    %c0_45 = arith.constant 0 : index
    %28 = tpu.strided_load %arg2[%c0_42, %c1_43, %c0_44, %c0_45] {strides = array<i32: 1, 1, 2, 1>} : memref<1x2x16x16xf32, #tpu.memory_space<vmem>>, vector<1x1x8x16xf32>
    %29 = vector.shape_cast %28 : vector<1x1x8x16xf32> to vector<8x16xf32>
    %30 = tpu.transpose %29, [1, 0] : vector<8x16xf32> -> vector<16x8xf32>
    %c0_46 = arith.constant 0 : index
    %c0_47 = arith.constant 0 : index
    %31 = vector.load %arg4[%c0_46, %c0_47] : memref<16x8xf32, #tpu.memory_space<vmem>>, vector<16x8xf32>
    tpu.vector_store %arg4[%c0_46, %c0_47], %30 {strides = array<i32>} : memref<16x8xf32, #tpu.memory_space<vmem>>, vector<16x8xf32>,
    %c0_48 = arith.constant 0 : index
    %c0_49 = arith.constant 0 : index
    %32 = tpu.strided_load %arg4[%c0_48, %c0_49] {strides = array<i32: 2, 1>} : memref<16x8xf32, #tpu.memory_space<vmem>>, vector<8x8xf32>
    %33 = tpu.transpose %32, [1, 0] : vector<8x8xf32> -> vector<8x8xf32>
    %c0_50 = arith.constant 0 : index
    %c1_51 = arith.constant 1 : index
    %c0_52 = arith.constant 0 : index
    %c0_53 = arith.constant 0 : index
    %c0_54 = arith.constant 0 : index
    %c0_55 = arith.constant 0 : index
    %34 = vector.load %arg3[%c0_50, %c1_51, %c0_52, %c0_53, %c0_54, %c0_55] : memref<1x2x2x2x8x8xf32, #tpu.memory_space<vmem>>, vector<1x1x1x1x8x8xf32>
    %35 = vector.shape_cast %34 : vector<1x1x1x1x8x8xf32> to vector<8x8xf32>
    %36 = vector.shape_cast %33 : vector<8x8xf32> to vector<1x1x1x1x8x8xf32>
    tpu.vector_store %arg3[%c0_50, %c1_51, %c0_52, %c0_53, %c0_54, %c0_55], %36 {strides = array<i32>} : memref<1x2x2x2x8x8xf32, #tpu.memory_space<vmem>>, vector<1x1x1x1x8x8xf32>,
    %c1_56 = arith.constant 1 : index
    %c0_57 = arith.constant 0 : index
    %37 = tpu.strided_load %arg4[%c1_56, %c0_57] {strides = array<i32: 2, 1>} : memref<16x8xf32, #tpu.memory_space<vmem>>, vector<8x8xf32>
    %38 = tpu.transpose %37, [1, 0] : vector<8x8xf32> -> vector<8x8xf32>
    %c0_58 = arith.constant 0 : index
    %c1_59 = arith.constant 1 : index
    %c0_60 = arith.constant 0 : index
    %c1_61 = arith.constant 1 : index
    %c0_62 = arith.constant 0 : index
    %c0_63 = arith.constant 0 : index
    %39 = vector.load %arg3[%c0_58, %c1_59, %c0_60, %c1_61, %c0_62, %c0_63] : memref<1x2x2x2x8x8xf32, #tpu.memory_space<vmem>>, vector<1x1x1x1x8x8xf32>
    %40 = vector.shape_cast %39 : vector<1x1x1x1x8x8xf32> to vector<8x8xf32>
    %41 = vector.shape_cast %38 : vector<8x8xf32> to vector<1x1x1x1x8x8xf32>
    tpu.vector_store %arg3[%c0_58, %c1_59, %c0_60, %c1_61, %c0_62, %c0_63], %41 {strides = array<i32>} : memref<1x2x2x2x8x8xf32, #tpu.memory_space<vmem>>, vector<1x1x1x1x8x8xf32>,
    %c0_64 = arith.constant 0 : index
    %c1_65 = arith.constant 1 : index
    %c1_66 = arith.constant 1 : index
    %c0_67 = arith.constant 0 : index
    %42 = tpu.strided_load %arg2[%c0_64, %c1_65, %c1_66, %c0_67] {strides = array<i32: 1, 1, 2, 1>} : memref<1x2x16x16xf32, #tpu.memory_space<vmem>>, vector<1x1x8x16xf32>
    %43 = vector.shape_cast %42 : vector<1x1x8x16xf32> to vector<8x16xf32>
    %44 = tpu.transpose %43, [1, 0] : vector<8x16xf32> -> vector<16x8xf32>
    %c0_68 = arith.constant 0 : index
    %c0_69 = arith.constant 0 : index
    %45 = vector.load %arg4[%c0_68, %c0_69] : memref<16x8xf32, #tpu.memory_space<vmem>>, vector<16x8xf32>
    tpu.vector_store %arg4[%c0_68, %c0_69], %44 {strides = array<i32>} : memref<16x8xf32, #tpu.memory_space<vmem>>, vector<16x8xf32>,
    %c0_70 = arith.constant 0 : index
    %c0_71 = arith.constant 0 : index
    %46 = tpu.strided_load %arg4[%c0_70, %c0_71] {strides = array<i32: 2, 1>} : memref<16x8xf32, #tpu.memory_space<vmem>>, vector<8x8xf32>
    %47 = tpu.transpose %46, [1, 0] : vector<8x8xf32> -> vector<8x8xf32>
    %c0_72 = arith.constant 0 : index
    %c1_73 = arith.constant 1 : index
    %c1_74 = arith.constant 1 : index
    %c0_75 = arith.constant 0 : index
    %c0_76 = arith.constant 0 : index
    %c0_77 = arith.constant 0 : index
    %48 = vector.load %arg3[%c0_72, %c1_73, %c1_74, %c0_75, %c0_76, %c0_77] : memref<1x2x2x2x8x8xf32, #tpu.memory_space<vmem>>, vector<1x1x1x1x8x8xf32>
    %49 = vector.shape_cast %48 : vector<1x1x1x1x8x8xf32> to vector<8x8xf32>
    %50 = vector.shape_cast %47 : vector<8x8xf32> to vector<1x1x1x1x8x8xf32>
    tpu.vector_store %arg3[%c0_72, %c1_73, %c1_74, %c0_75, %c0_76, %c0_77], %50 {strides = array<i32>} : memref<1x2x2x2x8x8xf32, #tpu.memory_space<vmem>>, vector<1x1x1x1x8x8xf32>,
    %c1_78 = arith.constant 1 : index
    %c0_79 = arith.constant 0 : index
    %51 = tpu.strided_load %arg4[%c1_78, %c0_79] {strides = array<i32: 2, 1>} : memref<16x8xf32, #tpu.memory_space<vmem>>, vector<8x8xf32>
    %52 = tpu.transpose %51, [1, 0] : vector<8x8xf32> -> vector<8x8xf32>
    %c0_80 = arith.constant 0 : index
    %c1_81 = arith.constant 1 : index
    %c1_82 = arith.constant 1 : index
    %c1_83 = arith.constant 1 : index
    %c0_84 = arith.constant 0 : index
    %c0_85 = arith.constant 0 : index
    %53 = vector.load %arg3[%c0_80, %c1_81, %c1_82, %c1_83, %c0_84, %c0_85] : memref<1x2x2x2x8x8xf32, #tpu.memory_space<vmem>>, vector<1x1x1x1x8x8xf32>
    %54 = vector.shape_cast %53 : vector<1x1x1x1x8x8xf32> to vector<8x8xf32>
    %55 = vector.shape_cast %52 : vector<8x8xf32> to vector<1x1x1x1x8x8xf32>
    tpu.vector_store %arg3[%c0_80, %c1_81, %c1_82, %c1_83, %c0_84, %c0_85], %55 {strides = array<i32>} : memref<1x2x2x2x8x8xf32, #tpu.memory_space<vmem>>, vector<1x1x1x1x8x8xf32>,
    return
  }
  func.func @transform_0(%arg0: i32, %arg1: i32) -> (i32, i32, i32, i32) {
    %c0_i32 = arith.constant 0 : i32
    %c0_i32_0 = arith.constant 0 : i32
    %c0_i32_1 = arith.constant 0 : i32
    return %arg0, %arg1, %c0_i32, %c0_i32_0 : i32, i32, i32, i32
  }
  func.func @transform_1(%arg0: i32, %arg1: i32) -> (i32, i32, i32, i32, i32, i32) {
    %c0_i32 = arith.constant 0 : i32
    %c0_i32_0 = arith.constant 0 : i32
    %c0_i32_1 = arith.constant 0 : i32
    %c0_i32_2 = arith.constant 0 : i32
    %c0_i32_3 = arith.constant 0 : i32
    return %arg0, %arg1, %c0_i32, %c0_i32_0, %c0_i32_1, %c0_i32_2 : i32, i32, i32, i32, i32, i32
  }
}

module attributes {stable_mosaic.version = 11 : i64} {
  func.func @_unshuffle_matmul_kernel(%arg0: i32, %arg1: memref<16x32xf32, #tpu.memory_space<vmem>>, %arg2: memref<2x2x2x8x8xf32, #tpu.memory_space<vmem>>) attributes {dimension_semantics = [#tpu.dimension_semantics<parallel>], iteration_bounds = array<i64: 4>, scalar_prefetch = 0 : i64, scratch_operands = 0 : i64, tpu.core_type = #tpu.core_type<tc>, window_params = [{transform_indices = @transform_0, window_bounds = array<i64: 16, 32>}, {transform_indices = @transform_1, window_bounds = array<i64: 2, 2, 2, 8, 8>}]} {
    %c0 = arith.constant 0 : index
    %c0_0 = arith.constant 0 : index
    %0 = vector.load %arg1[%c0, %c0_0] : memref<16x32xf32, #tpu.memory_space<vmem>>, vector<16x32xf32>
    %1 = tpu.iota {dimensions = array<i32: 0>} : vector<16x8xi32>
    %2 = tpu.iota {dimensions = array<i32: 1>} : vector<16x8xi32>
    %c2_i32 = arith.constant 2 : i32
    %3 = vector.broadcast %c2_i32 : i32 to vector<16x8xi32>
    %4 = arith.muli %2, %3 : vector<16x8xi32>
    %c0_i32 = arith.constant 0 : i32
    %5 = vector.broadcast %c0_i32 : i32 to vector<16x8xi32>
    %6 = arith.addi %4, %5 : vector<16x8xi32>
    %7 = arith.cmpi eq, %1, %6 : vector<16x8xi32>
    %8 = arith.extui %7 : vector<16x8xi1> to vector<16x8xi32>
    %9 = arith.sitofp %8 : vector<16x8xi32> to vector<16x8xf32>
    %10 = vector.extract_strided_slice %0 {offsets = [0, 0], sizes = [16, 16], strides = [1, 1]} : vector<16x32xf32> to vector<16x16xf32>
    %cst = arith.constant dense<0.000000e+00> : vector<16x8xf32>
    %11 = tpu.matmul %10, %9, %cst {dimension_numbers = #tpu.dot_dimension_numbers<[1], [0], [0], [1], [0, 0, 1, 1], [], []>, precision = #tpu.contract_precision<fp32>} : vector<16x16xf32>, vector<16x8xf32>, vector<16x8xf32> -> vector<16x8xf32>
    %12 = vector.shape_cast %11 : vector<16x8xf32> to vector<2x8x8xf32>
    %c0_1 = arith.constant 0 : index
    %c0_2 = arith.constant 0 : index
    %c0_3 = arith.constant 0 : index
    %c0_4 = arith.constant 0 : index
    %c0_5 = arith.constant 0 : index
    %13 = vector.load %arg2[%c0_1, %c0_2, %c0_3, %c0_4, %c0_5] : memref<2x2x2x8x8xf32, #tpu.memory_space<vmem>>, vector<2x1x1x8x8xf32>
    %14 = vector.shape_cast %13 : vector<2x1x1x8x8xf32> to vector<2x8x8xf32>
    %15 = vector.shape_cast %12 : vector<2x8x8xf32> to vector<2x1x1x8x8xf32>
    tpu.vector_store %arg2[%c0_1, %c0_2, %c0_3, %c0_4, %c0_5], %15 {strides = array<i32>} : memref<2x2x2x8x8xf32, #tpu.memory_space<vmem>>, vector<2x1x1x8x8xf32>,
    %16 = vector.extract_strided_slice %0 {offsets = [0, 16], sizes = [16, 16], strides = [1, 1]} : vector<16x32xf32> to vector<16x16xf32>
    %cst_6 = arith.constant dense<0.000000e+00> : vector<16x8xf32>
    %17 = tpu.matmul %16, %9, %cst_6 {dimension_numbers = #tpu.dot_dimension_numbers<[1], [0], [0], [1], [0, 0, 1, 1], [], []>, precision = #tpu.contract_precision<fp32>} : vector<16x16xf32>, vector<16x8xf32>, vector<16x8xf32> -> vector<16x8xf32>
    %18 = vector.shape_cast %17 : vector<16x8xf32> to vector<2x8x8xf32>
    %c0_7 = arith.constant 0 : index
    %c1 = arith.constant 1 : index
    %c0_8 = arith.constant 0 : index
    %c0_9 = arith.constant 0 : index
    %c0_10 = arith.constant 0 : index
    %19 = vector.load %arg2[%c0_7, %c1, %c0_8, %c0_9, %c0_10] : memref<2x2x2x8x8xf32, #tpu.memory_space<vmem>>, vector<2x1x1x8x8xf32>
    %20 = vector.shape_cast %19 : vector<2x1x1x8x8xf32> to vector<2x8x8xf32>
    %21 = vector.shape_cast %18 : vector<2x8x8xf32> to vector<2x1x1x8x8xf32>
    tpu.vector_store %arg2[%c0_7, %c1, %c0_8, %c0_9, %c0_10], %21 {strides = array<i32>} : memref<2x2x2x8x8xf32, #tpu.memory_space<vmem>>, vector<2x1x1x8x8xf32>,
    %c2_i32_11 = arith.constant 2 : i32
    %22 = vector.broadcast %c2_i32_11 : i32 to vector<16x8xi32>
    %23 = arith.muli %2, %22 : vector<16x8xi32>
    %c1_i32 = arith.constant 1 : i32
    %24 = vector.broadcast %c1_i32 : i32 to vector<16x8xi32>
    %25 = arith.addi %23, %24 : vector<16x8xi32>
    %26 = arith.cmpi eq, %1, %25 : vector<16x8xi32>
    %27 = arith.extui %26 : vector<16x8xi1> to vector<16x8xi32>
    %28 = arith.sitofp %27 : vector<16x8xi32> to vector<16x8xf32>
    %29 = vector.extract_strided_slice %0 {offsets = [0, 0], sizes = [16, 16], strides = [1, 1]} : vector<16x32xf32> to vector<16x16xf32>
    %cst_12 = arith.constant dense<0.000000e+00> : vector<16x8xf32>
    %30 = tpu.matmul %29, %28, %cst_12 {dimension_numbers = #tpu.dot_dimension_numbers<[1], [0], [0], [1], [0, 0, 1, 1], [], []>, precision = #tpu.contract_precision<fp32>} : vector<16x16xf32>, vector<16x8xf32>, vector<16x8xf32> -> vector<16x8xf32>
    %31 = vector.shape_cast %30 : vector<16x8xf32> to vector<2x8x8xf32>
    %c0_13 = arith.constant 0 : index
    %c0_14 = arith.constant 0 : index
    %c1_15 = arith.constant 1 : index
    %c0_16 = arith.constant 0 : index
    %c0_17 = arith.constant 0 : index
    %32 = vector.load %arg2[%c0_13, %c0_14, %c1_15, %c0_16, %c0_17] : memref<2x2x2x8x8xf32, #tpu.memory_space<vmem>>, vector<2x1x1x8x8xf32>
    %33 = vector.shape_cast %32 : vector<2x1x1x8x8xf32> to vector<2x8x8xf32>
    %34 = vector.shape_cast %31 : vector<2x8x8xf32> to vector<2x1x1x8x8xf32>
    tpu.vector_store %arg2[%c0_13, %c0_14, %c1_15, %c0_16, %c0_17], %34 {strides = array<i32>} : memref<2x2x2x8x8xf32, #tpu.memory_space<vmem>>, vector<2x1x1x8x8xf32>,
    %35 = vector.extract_strided_slice %0 {offsets = [0, 16], sizes = [16, 16], strides = [1, 1]} : vector<16x32xf32> to vector<16x16xf32>
    %cst_18 = arith.constant dense<0.000000e+00> : vector<16x8xf32>
    %36 = tpu.matmul %35, %28, %cst_18 {dimension_numbers = #tpu.dot_dimension_numbers<[1], [0], [0], [1], [0, 0, 1, 1], [], []>, precision = #tpu.contract_precision<fp32>} : vector<16x16xf32>, vector<16x8xf32>, vector<16x8xf32> -> vector<16x8xf32>
    %37 = vector.shape_cast %36 : vector<16x8xf32> to vector<2x8x8xf32>
    %c0_19 = arith.constant 0 : index
    %c1_20 = arith.constant 1 : index
    %c1_21 = arith.constant 1 : index
    %c0_22 = arith.constant 0 : index
    %c0_23 = arith.constant 0 : index
    %38 = vector.load %arg2[%c0_19, %c1_20, %c1_21, %c0_22, %c0_23] : memref<2x2x2x8x8xf32, #tpu.memory_space<vmem>>, vector<2x1x1x8x8xf32>
    %39 = vector.shape_cast %38 : vector<2x1x1x8x8xf32> to vector<2x8x8xf32>
    %40 = vector.shape_cast %37 : vector<2x8x8xf32> to vector<2x1x1x8x8xf32>
    tpu.vector_store %arg2[%c0_19, %c1_20, %c1_21, %c0_22, %c0_23], %40 {strides = array<i32>} : memref<2x2x2x8x8xf32, #tpu.memory_space<vmem>>, vector<2x1x1x8x8xf32>,
    return
  }
  func.func @transform_0(%arg0: i32) -> (i32, i32) {
    %c0_i32 = arith.constant 0 : i32
    %c0_i32_0 = arith.constant 0 : i32
    return %arg0, %c0_i32 : i32, i32
  }
  func.func @transform_1(%arg0: i32) -> (i32, i32, i32, i32, i32) {
    %c0_i32 = arith.constant 0 : i32
    %c0_i32_0 = arith.constant 0 : i32
    %c0_i32_1 = arith.constant 0 : i32
    %c0_i32_2 = arith.constant 0 : i32
    %c0_i32_3 = arith.constant 0 : i32
    return %arg0, %c0_i32, %c0_i32_0, %c0_i32_1, %c0_i32_2 : i32, i32, i32, i32, i32
  }
}

</mosaic_0001>

<llo_original>
// kernel: tpu_custom_call.1
$region0: #{tpu_custom_call.1}
  #allocation0 [shape = 'u32[]', space=smem, size = 0x4, offset = 0x4, fixed_abs, tag = 'smem constant byte address 0x4 - core index']
  #allocation1 [shape = 'u32[144,128]{1,0:T(1,128)}', space=vmem, size = 0x12000, scoped, tag = 'internal scratch']
  #allocation2 [shape = 'f32[16,8]{1,0:T(8,128)}', space=vmem, size = 0x2000, scoped, tag = 'scratch operand']
  %s0 = inlined_call_operand.hbm [shape: f32[2,4,16,16], index: 0, kind: input, shape index: {}]
  %s1 = inlined_call_operand.hbm [shape: f32[2,4,2,2,8,8], index: 1, kind: output, shape index: {}]
  %s2 = sld [smem:[#allocation0]]
  $region41: #{tpu_custom_call.1} parent=0
    _
  %s4 = ssub.s32 1, %s2
  %s5 = scalar_select 0, %s4, %s2
  $region1: #{tpu_custom_call.1} parent=0
    #allocation3 [shape = 'u8[32768]{0}', space=vmem, size = 0x8000, scoped, tag = 'input window, operand 0']
    #allocation4 [shape = 's32[2]{0}', space=sflag, size = 0x8, scoped, tag = 'scoped memory for tpu_custom_call.1']
    #allocation5 [shape = 's32[2]{0}', space=sflag, size = 0x8, scoped, tag = 'scoped memory for tpu_custom_call.1']
    #allocation6 [shape = 'u8[65536]{0}', space=vmem, size = 0x10000, scoped, tag = 'output window, operand 0']
    %6 = vsyncpa [#allocation4], 0
    %s7 = scalar_lea.sflag [#allocation4], 1
    %8 = vsyncpa %s7, 0
    %9 = vsyncpa [#allocation5], 0
    %s10 = scalar_lea.sflag [#allocation5], 1
    %11 = vsyncpa %s10, 0
    loop: start=0, step=1, limit=6
    $region2: #{tpu_custom_call.1} parent=1 // loop_pre_header
      _
    $region3: #{tpu_custom_call.1} parent=1 // loop_header
      %s13 = sphi 0, %s17
      %p14 = scmp.ge.s32.totalorder %s13, 6
      %s20 = sphi 0, %s32
      %s21 = sphi 0, %s28
      %s22 = sphi 0, %s20
      %s23 = sphi 0, %s21
      %s24 = sphi 0, %s22
      %s25 = sphi 0, %s23
      %s37 = sphi 0, %s39
      %s40 = sphi 0, %s37
      %s41 = sphi 0, %s40
      %s57 = sphi 0, %s41
      %s65 = sphi 0, %s67
      %s68 = sphi 0, %s65
      %s69 = sphi 0, %s68
      %s85 = sphi 0, %s69
    $region4: #{tpu_custom_call.1} parent=1 // loop_header_branch
      %16 = sbr.rel (%p14) target = $region8
    $region5: #{tpu_custom_call.1} parent=1 // loop_body
      %s18 = ssub.s32 %s13, 1
      %s19 = ssub.s32 %s13, 2
      %s26 = sadd.s32 1, %s21
      %p27 = scmp.ge.s32.totalorder %s26, 2
      %s28 = scalar_select %p27, 0, %s26
      %s29 = sadd.s32 1, %s20
      %s30 = scalar_select %p27, %s29, %s20
      %p31 = scmp.ge.s32.totalorder %s30, 2
      %s32 = scalar_select %p31, 0, %s30
      %s33 = ssub.s32 %s20, %s32
      %s34 = ssub.s32 %s21, %s28
      %s35 = sor.u32 %s33, %s34
      %p36 = scmp.eq.s32.totalorder %s35, 0
      %s38 = sadd.s32 %s37, 1
      %s39 = scalar_select %p36, %s37, %s38
      %p42 = pneg %p36
      %p43 = scmp.eq.s32.totalorder %s13, 3
      %p44 = por %p42, %p43
      %p45 = scmp.ne.s32.totalorder %s37, %s40
      %p46 = scmp.eq.s32.totalorder %s13, 0
      %p47 = por %p45, %p46
      %p48 = scmp.ne.s32.totalorder %s37, %s40
      %p49 = scmp.eq.s32.totalorder %s18, 3
      %p50 = por %p48, %p49
      %p51 = scmp.ne.s32.totalorder %s40, %s41
      %p52 = scmp.eq.s32.totalorder %s18, 0
      %p53 = por %p51, %p52
      %p54 = scmp.ne.s32.totalorder %s40, %s41
      %p55 = scmp.eq.s32.totalorder %s19, 3
      %p56 = por %p54, %p55
      %p58 = scmp.ne.s32.totalorder %s41, %s57
      %p59 = scmp.eq.s32.totalorder %s19, 0
      %p60 = por %p58, %p59
      %s61 = ssub.s32 %s20, %s32
      %s62 = ssub.s32 %s21, %s28
      %s63 = sor.u32 %s61, %s62
      %p64 = scmp.eq.s32.totalorder %s63, 0
      %s66 = sadd.s32 %s65, 1
      %s67 = scalar_select %p64, %s65, %s66
      %p70 = pneg %p64
      %p71 = scmp.eq.s32.totalorder %s13, 3
      %p72 = por %p70, %p71
      %p73 = scmp.ne.s32.totalorder %s65, %s68
      %p74 = scmp.eq.s32.totalorder %s13, 0
      %p75 = por %p73, %p74
      %p76 = scmp.ne.s32.totalorder %s65, %s68
      %p77 = scmp.eq.s32.totalorder %s18, 3
      %p78 = por %p76, %p77
      %p79 = scmp.ne.s32.totalorder %s68, %s69
      %p80 = scmp.eq.s32.totalorder %s18, 0
      %p81 = por %p79, %p80
      %p82 = scmp.ne.s32.totalorder %s68, %s69
      %p83 = scmp.eq.s32.totalorder %s19, 3
      %p84 = por %p82, %p83
      %p86 = scmp.ne.s32.totalorder %s69, %s85
      %p87 = scmp.eq.s32.totalorder %s19, 0
      %p88 = por %p86, %p87
      %p89 = scmp.le.s32.totalorder 1, %s13
      %p90 = scmp.lt.s32.totalorder %s13, 5
      %p91 = pnand %p89, %p90
      %p92 = pneg %p91
      // Predicated region
      $region9: #{tpu_custom_call.1} parent=5 // pred_check
        _
      $region10: #{tpu_custom_call.1} parent=5 // pred_check_branch
        %94 = sbr.rel (%p91) target = $region12
      $region11: #{tpu_custom_call.1} parent=5 // pred_region
        %s95 = ssub.s32 %s13, 1
      $region12: #{tpu_custom_call.1} parent=5 // pred_fallthru
        _
      %p96 = scmp.lt.s32.totalorder %s13, 4
      // Predicated region
      $region13: #{tpu_custom_call.1} parent=5 // pred_check
        %p97 = pneg %p96
      $region14: #{tpu_custom_call.1} parent=5 // pred_check_branch
        %99 = sbr.rel (%p97) target = $region16
      $region15: #{tpu_custom_call.1} parent=5 // pred_region
        // Predicated region
        $region17: #{tpu_custom_call.1} parent=15 // pred_check
          %p100 = pneg %p47
        $region18: #{tpu_custom_call.1} parent=15 // pred_check_branch
          %102 = sbr.rel (%p100) target = $region20
        $region19: #{tpu_custom_call.1} parent=15 // pred_region
          %s103 = sand.u32 %s37, 1
          %s104 = scalar_lea.sflag [#allocation4], %s103
          %s105 = sand.u32 %s37, 1
          %s106 = smul.addr %s105, 32
          %s107 = scalar_lea.vmem [#allocation3], %s106
          %s108 = smul.u32 2, %s21
          %s110 = ssub.s32 512, 512
          %111 = vsyncadd %s104, %s110
          %s112 = smul.addr %s108, 2
          %s113 = smul.addr %s20, 8
          %s114 = sadd.s32 %s112, %s113
          %s115 = smul.addr %s114, 128
          %s116 = scalar_lea.hbm %s0, %s115
          %s117 = sshll.u32 %s107, 4
          %s118 = int_to_ptr.vmem [resolvable:$true] %s117
          %123 = dma.hbm_to_vmem [thread:$0]  %s116, 512, %s118, %s104, 128, 128, 8
        $region20: #{tpu_custom_call.1} parent=15 // pred_fallthru
          _
      $region16: #{tpu_custom_call.1} parent=5 // pred_fallthru
        _
      %p124 = scmp.le.s32.totalorder 1, %s13
      %p125 = scmp.lt.s32.totalorder %s13, 5
      %p126 = pnand %p124, %p125
      %p127 = pneg %p126
      // Predicated region
      $region21: #{tpu_custom_call.1} parent=5 // pred_check
        _
      $region22: #{tpu_custom_call.1} parent=5 // pred_check_branch
        %129 = sbr.rel (%p126) target = $region24
      $region23: #{tpu_custom_call.1} parent=5 // pred_region
        %s130 = ssub.s32 %s13, 1
        %s131 = sand.u32 %s40, 1
        %s132 = scalar_lea.sflag [#allocation4], %s131
        %s133 = sand.u32 %s40, 1
        %s134 = smul.addr %s133, 32
        %s135 = scalar_lea.vmem [#allocation3], %s134
        // Predicated region
        $region25: #{tpu_custom_call.1} parent=23 // pred_check
          %p136 = pneg %p53
        $region26: #{tpu_custom_call.1} parent=23 // pred_check_branch
          %138 = sbr.rel (%p136) target = $region28
        $region27: #{tpu_custom_call.1} parent=23 // pred_region
          %139 = dma.done %s132, 512
        $region28: #{tpu_custom_call.1} parent=23 // pred_fallthru
          _
        %s140 = sand.u32 %s40, 1
        %s141 = scalar_lea.sflag [#allocation4], %s140
        %s142 = sand.u32 %s40, 1
        %s143 = smul.addr %s142, 32
        %s144 = scalar_lea.vmem [#allocation3], %s143
        %p145 = pneg %p53
        %p146 = pneg %p50
        %p147 = pneg %p81
        %p148 = pneg %p78
        %s149 = sand.u32 %s68, 1
        %s150 = scalar_lea.sflag [#allocation5], %s149
        %s151 = sand.u32 %s68, 1
        %s152 = smul.addr %s151, 64
        %s153 = scalar_lea.vmem [#allocation6], %s152
        %s154 = smul.u32 2, %s23
        %s155 = smul.u32 2, %s23
        %v156 = vld [vmem:[%s135] ss:$2 sm:$0xff]
        %157 = vxpose.xlu0.b32.start [1/16] %v156, 128
        %158 = vxpose.xlu0.b32.cont [2/16] 0.0, 128
        %159 = vxpose.xlu0.b32.cont [3/16] 0.0, 128
        %160 = vxpose.xlu0.b32.cont [4/16] 0.0, 128
        %161 = vxpose.xlu0.b32.cont [5/16] 0.0, 128
        %162 = vxpose.xlu0.b32.cont [6/16] 0.0, 128
        %163 = vxpose.xlu0.b32.cont [7/16] 0.0, 128
        %164 = vxpose.xlu0.b32.cont [8/16] 0.0, 128
        %165 = vxpose.xlu0.b32.cont [9/16] 0.0, 128
        %166 = vxpose.xlu0.b32.cont [10/16] 0.0, 128
        %167 = vxpose.xlu0.b32.cont [11/16] 0.0, 128
        %168 = vxpose.xlu0.b32.cont [12/16] 0.0, 128
        %169 = vxpose.xlu0.b32.cont [13/16] 0.0, 128
        %170 = vxpose.xlu0.b32.cont [14/16] 0.0, 128
        %171 = vxpose.xlu0.b32.cont [15/16] 0.0, 128
        %172 = vxpose.xlu0.b32.end [16/16] 0.0, 128
        %v173 = vpop.trf.xlu0
        %v174 = vpop.trf.xlu0
        %v175 = vpop.trf.xlu0
        %v176 = vpop.trf.xlu0
        %v177 = vpop.trf.xlu0
        %v178 = vpop.trf.xlu0
        %v179 = vpop.trf.xlu0
        %v180 = vpop.trf.xlu0
        %v181 = vpop.trf.xlu0
        %v182 = vpop.trf.xlu0
        %v183 = vpop.trf.xlu0
        %v184 = vpop.trf.xlu0
        %v185 = vpop.trf.xlu0
        %v186 = vpop.trf.xlu0
        %v187 = vpop.trf.xlu0
        %v188 = vpop.trf.xlu0
        %vm189 = vcmask 64512
        %190 = vst.msk [vmem:[#allocation2] sm:$0xff] %vm189, %v173
        %191 = vst.msk [vmem:[#allocation2 + $0x8] sm:$0xff] %vm189, %v174
        %v192 = vld [vmem:[#allocation2] ss:$2 sm:$0xff]
        %193 = vxpose.xlu0.b32.start [1/16] %v192, 128
        %194 = vxpose.xlu0.b32.cont [2/16] 0.0, 128
        %195 = vxpose.xlu0.b32.cont [3/16] 0.0, 128
        %196 = vxpose.xlu0.b32.cont [4/16] 0.0, 128
        %197 = vxpose.xlu0.b32.cont [5/16] 0.0, 128
        %198 = vxpose.xlu0.b32.cont [6/16] 0.0, 128
        %199 = vxpose.xlu0.b32.cont [7/16] 0.0, 128
        %200 = vxpose.xlu0.b32.cont [8/16] 0.0, 128
        %201 = vxpose.xlu0.b32.cont [9/16] 0.0, 128
        %202 = vxpose.xlu0.b32.cont [10/16] 0.0, 128
        %203 = vxpose.xlu0.b32.cont [11/16] 0.0, 128
        %204 = vxpose.xlu0.b32.cont [12/16] 0.0, 128
        %205 = vxpose.xlu0.b32.cont [13/16] 0.0, 128
        %206 = vxpose.xlu0.b32.cont [14/16] 0.0, 128
        %207 = vxpose.xlu0.b32.cont [15/16] 0.0, 128
        %208 = vxpose.xlu0.b32.end [16/16] 0.0, 128
        %v209 = vpop.trf.xlu0
        %v210 = vpop.trf.xlu0
        %v211 = vpop.trf.xlu0
        %v212 = vpop.trf.xlu0
        %v213 = vpop.trf.xlu0
        %v214 = vpop.trf.xlu0
        %v215 = vpop.trf.xlu0
        %v216 = vpop.trf.xlu0
        %v217 = vpop.trf.xlu0
        %v218 = vpop.trf.xlu0
        %v219 = vpop.trf.xlu0
        %v220 = vpop.trf.xlu0
        %v221 = vpop.trf.xlu0
        %v222 = vpop.trf.xlu0
        %v223 = vpop.trf.xlu0
        %v224 = vpop.trf.xlu0
        %225 = vst.msk [vmem:[%s153] sm:$0xff] %vm189, %v209
        %s226 = scalar_lea.vmem [#allocation2], 1
        %v227 = vld [vmem:[%s226] ss:$2 sm:$0xff]
        %228 = vxpose.xlu0.b32.start [1/16] %v227, 128
        %229 = vxpose.xlu0.b32.cont [2/16] 0.0, 128
        %230 = vxpose.xlu0.b32.cont [3/16] 0.0, 128
        %231 = vxpose.xlu0.b32.cont [4/16] 0.0, 128
        %232 = vxpose.xlu0.b32.cont [5/16] 0.0, 128
        %233 = vxpose.xlu0.b32.cont [6/16] 0.0, 128
        %234 = vxpose.xlu0.b32.cont [7/16] 0.0, 128
        %235 = vxpose.xlu0.b32.cont [8/16] 0.0, 128
        %236 = vxpose.xlu0.b32.cont [9/16] 0.0, 128
        %237 = vxpose.xlu0.b32.cont [10/16] 0.0, 128
        %238 = vxpose.xlu0.b32.cont [11/16] 0.0, 128
        %239 = vxpose.xlu0.b32.cont [12/16] 0.0, 128
        %240 = vxpose.xlu0.b32.cont [13/16] 0.0, 128
        %241 = vxpose.xlu0.b32.cont [14/16] 0.0, 128
        %242 = vxpose.xlu0.b32.cont [15/16] 0.0, 128
        %243 = vxpose.xlu0.b32.end [16/16] 0.0, 128
        %v244 = vpop.trf.xlu0
        %v245 = vpop.trf.xlu0
        %v246 = vpop.trf.xlu0
        %v247 = vpop.trf.xlu0
        %v248 = vpop.trf.xlu0
        %v249 = vpop.trf.xlu0
        %v250 = vpop.trf.xlu0
        %v251 = vpop.trf.xlu0
        %v252 = vpop.trf.xlu0
        %v253 = vpop.trf.xlu0
        %v254 = vpop.trf.xlu0
        %v255 = vpop.trf.xlu0
        %v256 = vpop.trf.xlu0
        %v257 = vpop.trf.xlu0
        %v258 = vpop.trf.xlu0
        %v259 = vpop.trf.xlu0
        %s260 = scalar_lea.vmem %s153, 8 [#allocation6]
        %261 = vst.msk [vmem:[%s260] sm:$0xff] %vm189, %v244
        %s262 = scalar_lea.vmem %s135, 1 [#allocation3]
        %v263 = vld [vmem:[%s262] ss:$2 sm:$0xff]
        %264 = vxpose.xlu0.b32.start [1/16] %v263, 128
        %265 = vxpose.xlu0.b32.cont [2/16] 0.0, 128
        %266 = vxpose.xlu0.b32.cont [3/16] 0.0, 128
        %267 = vxpose.xlu0.b32.cont [4/16] 0.0, 128
        %268 = vxpose.xlu0.b32.cont [5/16] 0.0, 128
        %269 = vxpose.xlu0.b32.cont [6/16] 0.0, 128
        %270 = vxpose.xlu0.b32.cont [7/16] 0.0, 128
        %271 = vxpose.xlu0.b32.cont [8/16] 0.0, 128
        %272 = vxpose.xlu0.b32.cont [9/16] 0.0, 128
        %273 = vxpose.xlu0.b32.cont [10/16] 0.0, 128
        %274 = vxpose.xlu0.b32.cont [11/16] 0.0, 128
        %275 = vxpose.xlu0.b32.cont [12/16] 0.0, 128
        %276 = vxpose.xlu0.b32.cont [13/16] 0.0, 128
        %277 = vxpose.xlu0.b32.cont [14/16] 0.0, 128
        %278 = vxpose.xlu0.b32.cont [15/16] 0.0, 128
        %279 = vxpose.xlu0.b32.end [16/16] 0.0, 128
        %v280 = vpop.trf.xlu0
        %v281 = vpop.trf.xlu0
        %v282 = vpop.trf.xlu0
        %v283 = vpop.trf.xlu0
        %v284 = vpop.trf.xlu0
        %v285 = vpop.trf.xlu0
        %v286 = vpop.trf.xlu0
        %v287 = vpop.trf.xlu0
        %v288 = vpop.trf.xlu0
        %v289 = vpop.trf.xlu0
        %v290 = vpop.trf.xlu0
        %v291 = vpop.trf.xlu0
        %v292 = vpop.trf.xlu0
        %v293 = vpop.trf.xlu0
        %v294 = vpop.trf.xlu0
        %v295 = vpop.trf.xlu0
        %296 = vst.msk [vmem:[#allocation2] sm:$0xff] %vm189, %v280
        %297 = vst.msk [vmem:[#allocation2 + $0x8] sm:$0xff] %vm189, %v281
        %v298 = vld [vmem:[#allocation2] ss:$2 sm:$0xff]
        %299 = vxpose.xlu0.b32.start [1/16] %v298, 128
        %300 = vxpose.xlu0.b32.cont [2/16] 0.0, 128
        %301 = vxpose.xlu0.b32.cont [3/16] 0.0, 128
        %302 = vxpose.xlu0.b32.cont [4/16] 0.0, 128
        %303 = vxpose.xlu0.b32.cont [5/16] 0.0, 128
        %304 = vxpose.xlu0.b32.cont [6/16] 0.0, 128
        %305 = vxpose.xlu0.b32.cont [7/16] 0.0, 128
        %306 = vxpose.xlu0.b32.cont [8/16] 0.0, 128
        %307 = vxpose.xlu0.b32.cont [9/16] 0.0, 128
        %308 = vxpose.xlu0.b32.cont [10/16] 0.0, 128
        %309 = vxpose.xlu0.b32.cont [11/16] 0.0, 128
        %310 = vxpose.xlu0.b32.cont [12/16] 0.0, 128
        %311 = vxpose.xlu0.b32.cont [13/16] 0.0, 128
        %312 = vxpose.xlu0.b32.cont [14/16] 0.0, 128
        %313 = vxpose.xlu0.b32.cont [15/16] 0.0, 128
        %314 = vxpose.xlu0.b32.end [16/16] 0.0, 128
        %v315 = vpop.trf.xlu0
        %v316 = vpop.trf.xlu0
        %v317 = vpop.trf.xlu0
        %v318 = vpop.trf.xlu0
        %v319 = vpop.trf.xlu0
        %v320 = vpop.trf.xlu0
        %v321 = vpop.trf.xlu0
        %v322 = vpop.trf.xlu0
        %v323 = vpop.trf.xlu0
        %v324 = vpop.trf.xlu0
        %v325 = vpop.trf.xlu0
        %v326 = vpop.trf.xlu0
        %v327 = vpop.trf.xlu0
        %v328 = vpop.trf.xlu0
        %v329 = vpop.trf.xlu0
        %v330 = vpop.trf.xlu0
        %s331 = scalar_lea.vmem %s153, 16 [#allocation6]
        %332 = vst.msk [vmem:[%s331] sm:$0xff] %vm189, %v315
        %v333 = vld [vmem:[%s226] ss:$2 sm:$0xff]
        %334 = vxpose.xlu0.b32.start [1/16] %v333, 128
        %335 = vxpose.xlu0.b32.cont [2/16] 0.0, 128
        %336 = vxpose.xlu0.b32.cont [3/16] 0.0, 128
        %337 = vxpose.xlu0.b32.cont [4/16] 0.0, 128
        %338 = vxpose.xlu0.b32.cont [5/16] 0.0, 128
        %339 = vxpose.xlu0.b32.cont [6/16] 0.0, 128
        %340 = vxpose.xlu0.b32.cont [7/16] 0.0, 128
        %341 = vxpose.xlu0.b32.cont [8/16] 0.0, 128
        %342 = vxpose.xlu0.b32.cont [9/16] 0.0, 128
        %343 = vxpose.xlu0.b32.cont [10/16] 0.0, 128
        %344 = vxpose.xlu0.b32.cont [11/16] 0.0, 128
        %345 = vxpose.xlu0.b32.cont [12/16] 0.0, 128
        %346 = vxpose.xlu0.b32.cont [13/16] 0.0, 128
        %347 = vxpose.xlu0.b32.cont [14/16] 0.0, 128
        %348 = vxpose.xlu0.b32.cont [15/16] 0.0, 128
        %349 = vxpose.xlu0.b32.end [16/16] 0.0, 128
        %v350 = vpop.trf.xlu0
        %v351 = vpop.trf.xlu0
        %v352 = vpop.trf.xlu0
        %v353 = vpop.trf.xlu0
        %v354 = vpop.trf.xlu0
        %v355 = vpop.trf.xlu0
        %v356 = vpop.trf.xlu0
        %v357 = vpop.trf.xlu0
        %v358 = vpop.trf.xlu0
        %v359 = vpop.trf.xlu0
        %v360 = vpop.trf.xlu0
        %v361 = vpop.trf.xlu0
        %v362 = vpop.trf.xlu0
        %v363 = vpop.trf.xlu0
        %v364 = vpop.trf.xlu0
        %v365 = vpop.trf.xlu0
        %s366 = scalar_lea.vmem %s153, 24 [#allocation6]
        %367 = vst.msk [vmem:[%s366] sm:$0xff] %vm189, %v350
        %s368 = scalar_lea.vmem %s135, 16 [#allocation3]
        %v369 = vld [vmem:[%s368] ss:$2 sm:$0xff]
        %370 = vxpose.xlu0.b32.start [1/16] %v369, 128
        %371 = vxpose.xlu0.b32.cont [2/16] 0.0, 128
        %372 = vxpose.xlu0.b32.cont [3/16] 0.0, 128
        %373 = vxpose.xlu0.b32.cont [4/16] 0.0, 128
        %374 = vxpose.xlu0.b32.cont [5/16] 0.0, 128
        %375 = vxpose.xlu0.b32.cont [6/16] 0.0, 128
        %376 = vxpose.xlu0.b32.cont [7/16] 0.0, 128
        %377 = vxpose.xlu0.b32.cont [8/16] 0.0, 128
        %378 = vxpose.xlu0.b32.cont [9/16] 0.0, 128
        %379 = vxpose.xlu0.b32.cont [10/16] 0.0, 128
        %380 = vxpose.xlu0.b32.cont [11/16] 0.0, 128
        %381 = vxpose.xlu0.b32.cont [12/16] 0.0, 128
        %382 = vxpose.xlu0.b32.cont [13/16] 0.0, 128
        %383 = vxpose.xlu0.b32.cont [14/16] 0.0, 128
        %384 = vxpose.xlu0.b32.cont [15/16] 0.0, 128
        %385 = vxpose.xlu0.b32.end [16/16] 0.0, 128
        %v386 = vpop.trf.xlu0
        %v387 = vpop.trf.xlu0
        %v388 = vpop.trf.xlu0
        %v389 = vpop.trf.xlu0
        %v390 = vpop.trf.xlu0
        %v391 = vpop.trf.xlu0
        %v392 = vpop.trf.xlu0
        %v393 = vpop.trf.xlu0
        %v394 = vpop.trf.xlu0
        %v395 = vpop.trf.xlu0
        %v396 = vpop.trf.xlu0
        %v397 = vpop.trf.xlu0
        %v398 = vpop.trf.xlu0
        %v399 = vpop.trf.xlu0
        %v400 = vpop.trf.xlu0
        %v401 = vpop.trf.xlu0
        %402 = vst.msk [vmem:[#allocation2] sm:$0xff] %vm189, %v386
        %403 = vst.msk [vmem:[#allocation2 + $0x8] sm:$0xff] %vm189, %v387
        %v404 = vld [vmem:[#allocation2] ss:$2 sm:$0xff]
        %405 = vxpose.xlu0.b32.start [1/16] %v404, 128
        %406 = vxpose.xlu0.b32.cont [2/16] 0.0, 128
        %407 = vxpose.xlu0.b32.cont [3/16] 0.0, 128
        %408 = vxpose.xlu0.b32.cont [4/16] 0.0, 128
        %409 = vxpose.xlu0.b32.cont [5/16] 0.0, 128
        %410 = vxpose.xlu0.b32.cont [6/16] 0.0, 128
        %411 = vxpose.xlu0.b32.cont [7/16] 0.0, 128
        %412 = vxpose.xlu0.b32.cont [8/16] 0.0, 128
        %413 = vxpose.xlu0.b32.cont [9/16] 0.0, 128
        %414 = vxpose.xlu0.b32.cont [10/16] 0.0, 128
        %415 = vxpose.xlu0.b32.cont [11/16] 0.0, 128
        %416 = vxpose.xlu0.b32.cont [12/16] 0.0, 128
        %417 = vxpose.xlu0.b32.cont [13/16] 0.0, 128
        %418 = vxpose.xlu0.b32.cont [14/16] 0.0, 128
        %419 = vxpose.xlu0.b32.cont [15/16] 0.0, 128
        %420 = vxpose.xlu0.b32.end [16/16] 0.0, 128
        %v421 = vpop.trf.xlu0
        %v422 = vpop.trf.xlu0
        %v423 = vpop.trf.xlu0
        %v424 = vpop.trf.xlu0
        %v425 = vpop.trf.xlu0
        %v426 = vpop.trf.xlu0
        %v427 = vpop.trf.xlu0
        %v428 = vpop.trf.xlu0
        %v429 = vpop.trf.xlu0
        %v430 = vpop.trf.xlu0
        %v431 = vpop.trf.xlu0
        %v432 = vpop.trf.xlu0
        %v433 = vpop.trf.xlu0
        %v434 = vpop.trf.xlu0
        %v435 = vpop.trf.xlu0
        %v436 = vpop.trf.xlu0
        %s437 = scalar_lea.vmem %s153, 32 [#allocation6]
        %438 = vst.msk [vmem:[%s437] sm:$0xff] %vm189, %v421
        %v439 = vld [vmem:[%s226] ss:$2 sm:$0xff]
        %440 = vxpose.xlu0.b32.start [1/16] %v439, 128
        %441 = vxpose.xlu0.b32.cont [2/16] 0.0, 128
        %442 = vxpose.xlu0.b32.cont [3/16] 0.0, 128
        %443 = vxpose.xlu0.b32.cont [4/16] 0.0, 128
        %444 = vxpose.xlu0.b32.cont [5/16] 0.0, 128
        %445 = vxpose.xlu0.b32.cont [6/16] 0.0, 128
        %446 = vxpose.xlu0.b32.cont [7/16] 0.0, 128
        %447 = vxpose.xlu0.b32.cont [8/16] 0.0, 128
        %448 = vxpose.xlu0.b32.cont [9/16] 0.0, 128
        %449 = vxpose.xlu0.b32.cont [10/16] 0.0, 128
        %450 = vxpose.xlu0.b32.cont [11/16] 0.0, 128
        %451 = vxpose.xlu0.b32.cont [12/16] 0.0, 128
        %452 = vxpose.xlu0.b32.cont [13/16] 0.0, 128
        %453 = vxpose.xlu0.b32.cont [14/16] 0.0, 128
        %454 = vxpose.xlu0.b32.cont [15/16] 0.0, 128
        %455 = vxpose.xlu0.b32.end [16/16] 0.0, 128
        %v456 = vpop.trf.xlu0
        %v457 = vpop.trf.xlu0
        %v458 = vpop.trf.xlu0
        %v459 = vpop.trf.xlu0
        %v460 = vpop.trf.xlu0
        %v461 = vpop.trf.xlu0
        %v462 = vpop.trf.xlu0
        %v463 = vpop.trf.xlu0
        %v464 = vpop.trf.xlu0
        %v465 = vpop.trf.xlu0
        %v466 = vpop.trf.xlu0
        %v467 = vpop.trf.xlu0
        %v468 = vpop.trf.xlu0
        %v469 = vpop.trf.xlu0
        %v470 = vpop.trf.xlu0
        %v471 = vpop.trf.xlu0
        %s472 = scalar_lea.vmem %s153, 40 [#allocation6]
        %473 = vst.msk [vmem:[%s472] sm:$0xff] %vm189, %v456
        %s474 = scalar_lea.vmem %s368, 1 [#allocation3]
        %v475 = vld [vmem:[%s474] ss:$2 sm:$0xff]
        %476 = vxpose.xlu0.b32.start [1/16] %v475, 128
        %477 = vxpose.xlu0.b32.cont [2/16] 0.0, 128
        %478 = vxpose.xlu0.b32.cont [3/16] 0.0, 128
        %479 = vxpose.xlu0.b32.cont [4/16] 0.0, 128
        %480 = vxpose.xlu0.b32.cont [5/16] 0.0, 128
        %481 = vxpose.xlu0.b32.cont [6/16] 0.0, 128
        %482 = vxpose.xlu0.b32.cont [7/16] 0.0, 128
        %483 = vxpose.xlu0.b32.cont [8/16] 0.0, 128
        %484 = vxpose.xlu0.b32.cont [9/16] 0.0, 128
        %485 = vxpose.xlu0.b32.cont [10/16] 0.0, 128
        %486 = vxpose.xlu0.b32.cont [11/16] 0.0, 128
        %487 = vxpose.xlu0.b32.cont [12/16] 0.0, 128
        %488 = vxpose.xlu0.b32.cont [13/16] 0.0, 128
        %489 = vxpose.xlu0.b32.cont [14/16] 0.0, 128
        %490 = vxpose.xlu0.b32.cont [15/16] 0.0, 128
        %491 = vxpose.xlu0.b32.end [16/16] 0.0, 128
        %v492 = vpop.trf.xlu0
        %v493 = vpop.trf.xlu0
        %v494 = vpop.trf.xlu0
        %v495 = vpop.trf.xlu0
        %v496 = vpop.trf.xlu0
        %v497 = vpop.trf.xlu0
        %v498 = vpop.trf.xlu0
        %v499 = vpop.trf.xlu0
        %v500 = vpop.trf.xlu0
        %v501 = vpop.trf.xlu0
        %v502 = vpop.trf.xlu0
        %v503 = vpop.trf.xlu0
        %v504 = vpop.trf.xlu0
        %v505 = vpop.trf.xlu0
        %v506 = vpop.trf.xlu0
        %v507 = vpop.trf.xlu0
        %508 = vst.msk [vmem:[#allocation2] sm:$0xff] %vm189, %v492
        %509 = vst.msk [vmem:[#allocation2 + $0x8] sm:$0xff] %vm189, %v493
        %v510 = vld [vmem:[#allocation2] ss:$2 sm:$0xff]
        %511 = vxpose.xlu0.b32.start [1/16] %v510, 128
        %512 = vxpose.xlu0.b32.cont [2/16] 0.0, 128
        %513 = vxpose.xlu0.b32.cont [3/16] 0.0, 128
        %514 = vxpose.xlu0.b32.cont [4/16] 0.0, 128
        %515 = vxpose.xlu0.b32.cont [5/16] 0.0, 128
        %516 = vxpose.xlu0.b32.cont [6/16] 0.0, 128
        %517 = vxpose.xlu0.b32.cont [7/16] 0.0, 128
        %518 = vxpose.xlu0.b32.cont [8/16] 0.0, 128
        %519 = vxpose.xlu0.b32.cont [9/16] 0.0, 128
        %520 = vxpose.xlu0.b32.cont [10/16] 0.0, 128
        %521 = vxpose.xlu0.b32.cont [11/16] 0.0, 128
        %522 = vxpose.xlu0.b32.cont [12/16] 0.0, 128
        %523 = vxpose.xlu0.b32.cont [13/16] 0.0, 128
        %524 = vxpose.xlu0.b32.cont [14/16] 0.0, 128
        %525 = vxpose.xlu0.b32.cont [15/16] 0.0, 128
        %526 = vxpose.xlu0.b32.end [16/16] 0.0, 128
        %v527 = vpop.trf.xlu0
        %v528 = vpop.trf.xlu0
        %v529 = vpop.trf.xlu0
        %v530 = vpop.trf.xlu0
        %v531 = vpop.trf.xlu0
        %v532 = vpop.trf.xlu0
        %v533 = vpop.trf.xlu0
        %v534 = vpop.trf.xlu0
        %v535 = vpop.trf.xlu0
        %v536 = vpop.trf.xlu0
        %v537 = vpop.trf.xlu0
        %v538 = vpop.trf.xlu0
        %v539 = vpop.trf.xlu0
        %v540 = vpop.trf.xlu0
        %v541 = vpop.trf.xlu0
        %v542 = vpop.trf.xlu0
        %s543 = scalar_lea.vmem %s153, 48 [#allocation6]
        %544 = vst.msk [vmem:[%s543] sm:$0xff] %vm189, %v527
        %v545 = vld [vmem:[%s226] ss:$2 sm:$0xff]
        %546 = vxpose.xlu0.b32.start [1/16] %v545, 128
        %547 = vxpose.xlu0.b32.cont [2/16] 0.0, 128
        %548 = vxpose.xlu0.b32.cont [3/16] 0.0, 128
        %549 = vxpose.xlu0.b32.cont [4/16] 0.0, 128
        %550 = vxpose.xlu0.b32.cont [5/16] 0.0, 128
        %551 = vxpose.xlu0.b32.cont [6/16] 0.0, 128
        %552 = vxpose.xlu0.b32.cont [7/16] 0.0, 128
        %553 = vxpose.xlu0.b32.cont [8/16] 0.0, 128
        %554 = vxpose.xlu0.b32.cont [9/16] 0.0, 128
        %555 = vxpose.xlu0.b32.cont [10/16] 0.0, 128
        %556 = vxpose.xlu0.b32.cont [11/16] 0.0, 128
        %557 = vxpose.xlu0.b32.cont [12/16] 0.0, 128
        %558 = vxpose.xlu0.b32.cont [13/16] 0.0, 128
        %559 = vxpose.xlu0.b32.cont [14/16] 0.0, 128
        %560 = vxpose.xlu0.b32.cont [15/16] 0.0, 128
        %561 = vxpose.xlu0.b32.end [16/16] 0.0, 128
        %v562 = vpop.trf.xlu0
        %v563 = vpop.trf.xlu0
        %v564 = vpop.trf.xlu0
        %v565 = vpop.trf.xlu0
        %v566 = vpop.trf.xlu0
        %v567 = vpop.trf.xlu0
        %v568 = vpop.trf.xlu0
        %v569 = vpop.trf.xlu0
        %v570 = vpop.trf.xlu0
        %v571 = vpop.trf.xlu0
        %v572 = vpop.trf.xlu0
        %v573 = vpop.trf.xlu0
        %v574 = vpop.trf.xlu0
        %v575 = vpop.trf.xlu0
        %v576 = vpop.trf.xlu0
        %v577 = vpop.trf.xlu0
        %s578 = scalar_lea.vmem %s153, 56 [#allocation6]
        %579 = vst.msk [vmem:[%s578] sm:$0xff] %vm189, %v562
        %s580 = sand.u32 %s68, 1
        %s581 = scalar_lea.sflag [#allocation5], %s580
        %s582 = sand.u32 %s68, 1
        %s583 = smul.addr %s582, 64
        %s584 = scalar_lea.vmem [#allocation6], %s583
        // Predicated region
        $region29: #{tpu_custom_call.1} parent=23 // pred_check
          %p585 = pneg %p78
        $region30: #{tpu_custom_call.1} parent=23 // pred_check_branch
          %587 = sbr.rel (%p585) target = $region32
        $region31: #{tpu_custom_call.1} parent=23 // pred_region
          %s588 = smul.u32 2, %s23
          %s590 = ssub.s32 1024, 1024
          %591 = vsyncadd %s581, %s590
          %s592 = smul.addr %s588, 4
          %s593 = smul.addr %s22, 16
          %s594 = sadd.s32 %s592, %s593
          %s595 = smul.addr %s594, 128
          %s596 = scalar_lea.hbm %s1, %s595
          %s597 = sshll.u32 %s584, 4
          %s598 = int_to_ptr.vmem [resolvable:$true] %s597
          %603 = dma.vmem_to_hbm [thread:$0]  %s598, 1024, %s596, %s581, 128, 128, 8
        $region32: #{tpu_custom_call.1} parent=23 // pred_fallthru
          _
      $region24: #{tpu_custom_call.1} parent=5 // pred_fallthru
        _
      %p604 = scmp.le.s32.totalorder 2, %s13
      // Predicated region
      $region33: #{tpu_custom_call.1} parent=5 // pred_check
        %p605 = pneg %p604
      $region34: #{tpu_custom_call.1} parent=5 // pred_check_branch
        %607 = sbr.rel (%p605) target = $region36
      $region35: #{tpu_custom_call.1} parent=5 // pred_region
        %s608 = ssub.s32 %s13, 2
        // Predicated region
        $region37: #{tpu_custom_call.1} parent=35 // pred_check
          %p609 = pneg %p84
        $region38: #{tpu_custom_call.1} parent=35 // pred_check_branch
          %611 = sbr.rel (%p609) target = $region40
        $region39: #{tpu_custom_call.1} parent=35 // pred_region
          %s612 = sand.u32 %s69, 1
          %s613 = scalar_lea.sflag [#allocation5], %s612
          %s614 = sand.u32 %s69, 1
          %s615 = smul.addr %s614, 64
          %s616 = scalar_lea.vmem [#allocation6], %s615
          %617 = dma.done %s613, 1024
        $region40: #{tpu_custom_call.1} parent=35 // pred_fallthru
          _
      $region36: #{tpu_custom_call.1} parent=5 // pred_fallthru
        _
    $region6: #{tpu_custom_call.1} parent=1 // loop_footer
      %s17 = sadd.s32 1, %s13
    $region7: #{tpu_custom_call.1} parent=1 // loop_footer_branch
      %12 = sbr.rel target = $region3
    $region8: #{tpu_custom_call.1} parent=1 // loop_exit
      _
    %618 = vsyncpa [#allocation4], 1
    %s619 = scalar_lea.sflag [#allocation4], 1
    %620 = vsyncpa %s619, 1
    %621 = vsyncpa [#allocation5], 1
    %s622 = scalar_lea.sflag [#allocation5], 1
    %623 = vsyncpa %s622, 1

// kernel: tpu_custom_call.1
$region0: #{tpu_custom_call.1}
  #allocation0 [shape = 'u32[]', space=smem, size = 0x4, offset = 0x4, fixed_abs, tag = 'smem constant byte address 0x4 - core index']
  #allocation1 [shape = 'u32[144,128]{1,0:T(1,128)}', space=vmem, size = 0x12000, scoped, tag = 'internal scratch']
  %s0 = inlined_call_operand.vmem [shape: f32[64,32], index: 0, kind: input, shape index: {}]
  %s1 = inlined_call_operand.hbm [shape: f32[8,2,2,8,8], index: 1, kind: output, shape index: {}]
  %s2 = sld [smem:[#allocation0]]
  $region37: #{tpu_custom_call.1} parent=0
    _
  %s4 = ssub.s32 1, %s2
  %s5 = scalar_select 0, %s4, %s2
  $region1: #{tpu_custom_call.1} parent=0
    #allocation2 [shape = 'u8[65536]{0}', space=vmem, size = 0x10000, scoped, tag = 'output window, operand 0']
    #allocation3 [shape = 's32[2]{0}', space=sflag, size = 0x8, scoped, tag = 'scoped memory for tpu_custom_call.1']
    %6 = vsyncpa [#allocation3], 0
    %s7 = scalar_lea.sflag [#allocation3], 1
    %8 = vsyncpa %s7, 0
    loop: start=0, step=1, limit=6
    $region2: #{tpu_custom_call.1} parent=1 // loop_pre_header
      _
    $region3: #{tpu_custom_call.1} parent=1 // loop_header
      %s10 = sphi 0, %s14
      %p11 = scmp.ge.s32.totalorder %s10, 6
      %s20 = sphi 0, %s22
      %s23 = sphi 0, %s20
      %s24 = sphi 0, %s23
      %s40 = sphi 0, %s24
      %s46 = sphi 0, %s48
      %s49 = sphi 0, %s46
      %s50 = sphi 0, %s49
      %s66 = sphi 0, %s50
    $region4: #{tpu_custom_call.1} parent=1 // loop_header_branch
      %13 = sbr.rel (%p11) target = $region8
    $region5: #{tpu_custom_call.1} parent=1 // loop_body
      %s15 = ssub.s32 %s10, 1
      %s16 = ssub.s32 %s10, 2
      %s17 = sadd.s32 %s10, 1
      %s18 = ssub.s32 %s10, %s17
      %p19 = scmp.eq.s32.totalorder %s18, 0
      %s21 = sadd.s32 %s20, 1
      %s22 = scalar_select %p19, %s20, %s21
      %p25 = pneg %p19
      %p26 = scmp.eq.s32.totalorder %s10, 3
      %p27 = por %p25, %p26
      %p28 = scmp.ne.s32.totalorder %s20, %s23
      %p29 = scmp.eq.s32.totalorder %s10, 0
      %p30 = por %p28, %p29
      %p31 = scmp.ne.s32.totalorder %s20, %s23
      %p32 = scmp.eq.s32.totalorder %s15, 3
      %p33 = por %p31, %p32
      %p34 = scmp.ne.s32.totalorder %s23, %s24
      %p35 = scmp.eq.s32.totalorder %s15, 0
      %p36 = por %p34, %p35
      %p37 = scmp.ne.s32.totalorder %s23, %s24
      %p38 = scmp.eq.s32.totalorder %s16, 3
      %p39 = por %p37, %p38
      %p41 = scmp.ne.s32.totalorder %s24, %s40
      %p42 = scmp.eq.s32.totalorder %s16, 0
      %p43 = por %p41, %p42
      %s44 = ssub.s32 %s10, %s17
      %p45 = scmp.eq.s32.totalorder %s44, 0
      %s47 = sadd.s32 %s46, 1
      %s48 = scalar_select %p45, %s46, %s47
      %p51 = pneg %p45
      %p52 = scmp.eq.s32.totalorder %s10, 3
      %p53 = por %p51, %p52
      %p54 = scmp.ne.s32.totalorder %s46, %s49
      %p55 = scmp.eq.s32.totalorder %s10, 0
      %p56 = por %p54, %p55
      %p57 = scmp.ne.s32.totalorder %s46, %s49
      %p58 = scmp.eq.s32.totalorder %s15, 3
      %p59 = por %p57, %p58
      %p60 = scmp.ne.s32.totalorder %s49, %s50
      %p61 = scmp.eq.s32.totalorder %s15, 0
      %p62 = por %p60, %p61
      %p63 = scmp.ne.s32.totalorder %s49, %s50
      %p64 = scmp.eq.s32.totalorder %s16, 3
      %p65 = por %p63, %p64
      %p67 = scmp.ne.s32.totalorder %s50, %s66
      %p68 = scmp.eq.s32.totalorder %s16, 0
      %p69 = por %p67, %p68
      %p70 = scmp.le.s32.totalorder 1, %s10
      %p71 = scmp.lt.s32.totalorder %s10, 5
      %p72 = pnand %p70, %p71
      %p73 = pneg %p72
      // Predicated region
      $region9: #{tpu_custom_call.1} parent=5 // pred_check
        _
      $region10: #{tpu_custom_call.1} parent=5 // pred_check_branch
        %75 = sbr.rel (%p72) target = $region12
      $region11: #{tpu_custom_call.1} parent=5 // pred_region
        %s76 = ssub.s32 %s10, 1
      $region12: #{tpu_custom_call.1} parent=5 // pred_fallthru
        _
      %p77 = scmp.lt.s32.totalorder %s10, 4
      // Predicated region
      $region13: #{tpu_custom_call.1} parent=5 // pred_check
        %p78 = pneg %p77
      $region14: #{tpu_custom_call.1} parent=5 // pred_check_branch
        %80 = sbr.rel (%p78) target = $region16
      $region15: #{tpu_custom_call.1} parent=5 // pred_region
        // Predicated region
        $region17: #{tpu_custom_call.1} parent=15 // pred_check
          %p81 = pneg %p30
        $region18: #{tpu_custom_call.1} parent=15 // pred_check_branch
          %83 = sbr.rel (%p81) target = $region20
        $region19: #{tpu_custom_call.1} parent=15 // pred_region
          %s84 = smul.u32 2, %s10
          %p85 = scmp.lt.s32.totalorder %s84, 7
          %s86 = scalar_select %p85, %s84, 7
          %s87 = smul.addr %s86, 8
          %s88 = scalar_lea.vmem %s0, %s87
          %s89 = smul.u32 2, %s10
        $region20: #{tpu_custom_call.1} parent=15 // pred_fallthru
          _
      $region16: #{tpu_custom_call.1} parent=5 // pred_fallthru
        _
      %p90 = scmp.le.s32.totalorder 1, %s10
      %p91 = scmp.lt.s32.totalorder %s10, 5
      %p92 = pnand %p90, %p91
      %p93 = pneg %p92
      // Predicated region
      $region21: #{tpu_custom_call.1} parent=5 // pred_check
        _
      $region22: #{tpu_custom_call.1} parent=5 // pred_check_branch
        %95 = sbr.rel (%p92) target = $region24
      $region23: #{tpu_custom_call.1} parent=5 // pred_region
        %s96 = ssub.s32 %s10, 1
        %s97 = smul.u32 2, %s15
        %p98 = scmp.lt.s32.totalorder %s97, 7
        %s99 = scalar_select %p98, %s97, 7
        %s100 = smul.addr %s99, 8
        %s101 = scalar_lea.vmem %s0, %s100
        %p102 = pneg %p36
        %p103 = pneg %p33
        %p104 = pneg %p62
        %p105 = pneg %p59
        %s106 = sand.u32 %s49, 1
        %s107 = scalar_lea.sflag [#allocation3], %s106
        %s108 = sand.u32 %s49, 1
        %s109 = smul.addr %s108, 64
        %s110 = scalar_lea.vmem [#allocation2], %s109
        %s111 = smul.u32 2, %s15
        %p112 = scmp.lt.s32.totalorder %s111, 7
        %s113 = scalar_select %p112, %s111, 7
        %s114 = smul.addr %s113, 8
        %s115 = scalar_lea.vmem %s0, %s114
        %s116 = smul.u32 2, %s15
        %s117 = smul.u32 2, %s15
        %v118 = vld [vmem:[%s115] sm:$0xff]
        %v119 = vld [vmem:[%s115 + $0x8] sm:$0xff]
        %v120 = vlaneseq
        %v121 = vshrl.u32 %v120, 7
        %v122 = vadd.s32 %v121, 8
        %v123 = vlaneseq
        %v124 = vand.u32 %v123, 127
        %v125 = vmul.u32 %v124, 2
        %vm126 = vcmp.eq.s32.totalorder %v121, %v125
        %vm127 = vcmp.eq.s32.totalorder %v122, %v125
        %v128 = vsel %vm126, 1, 0
        %v129 = vsel %vm127, 1, 0
        %v130 = vcvt.s32.f32 %v128
        %v131 = vcvt.s32.f32 %v129
        %vm132 = vcmask 130048
        %v134 = vsel %vm132, %v118, 0
        %v137 = vsel %vm132, %v119, 0
        %139 = vmatprep.subr.mxu0 0.0
        %v140 = vand.u32 %v130, 4294901760
        %141 = vmatpush1.msra.mxu0 %v140
        %142 = vmatprep.subr.mxu0 0.0
        %v143 = vand.u32 %v131, 4294901760
        %144 = vmatpush1.msra.mxu0 %v143
        %145 = vmatprep.subr.mxu0 0.0
        %146 = vmatpush1.msra.mxu0 0.0
        %147 = vmatprep.subr.mxu0 0.0
        %148 = vmatpush1.msra.mxu0 0.0
        %149 = vmatprep.subr.mxu0 0.0
        %150 = vmatpush1.msra.mxu0 0.0
        %151 = vmatprep.subr.mxu0 0.0
        %152 = vmatpush1.msra.mxu0 0.0
        %153 = vmatprep.subr.mxu0 0.0
        %154 = vmatpush1.msra.mxu0 0.0
        %155 = vmatprep.subr.mxu0 0.0
        %156 = vmatpush1.msra.mxu0 0.0
        %157 = vmatprep.subr.mxu0 0.0
        %158 = vmatpush1.msra.mxu0 0.0
        %159 = vmatprep.subr.mxu0 0.0
        %160 = vmatpush1.msra.mxu0 0.0
        %161 = vmatprep.subr.mxu0 0.0
        %162 = vmatpush1.msra.mxu0 0.0
        %163 = vmatprep.subr.mxu0 0.0
        %164 = vmatpush1.msra.mxu0 0.0
        %165 = vmatprep.subr.mxu0 0.0
        %166 = vmatpush1.msra.mxu0 0.0
        %167 = vmatprep.subr.mxu0 0.0
        %168 = vmatpush1.msra.mxu0 0.0
        %169 = vmatprep.subr.mxu0 0.0
        %170 = vmatpush1.msra.mxu0 0.0
        %171 = vmatprep.subr.mxu0 0.0
        %172 = vmatpush1.msra.mxu0 0.0
        %173 = vmatprep.subr.mxu0 0.0
        %174 = vmatpush1.msra.mxu0 0.0
        %175 = vmatprep.subr.mxu0 0.0
        %176 = vmatpush1.msra.mxu0 0.0
        %177 = vmatprep.subr.mxu0 0.0
        %178 = vmatpush1.msra.mxu0 0.0
        %179 = vmatprep.subr.mxu0 0.0
        %180 = vmatpush1.msra.mxu0 0.0
        %181 = vmatprep.subr.mxu0 0.0
        %182 = vmatpush1.msra.mxu0 0.0
        %183 = vmatprep.subr.mxu0 0.0
        %184 = vmatpush1.msra.mxu0 0.0
        %185 = vmatprep.subr.mxu0 0.0
        %186 = vmatpush1.msra.mxu0 0.0
        %187 = vmatprep.subr.mxu0 0.0
        %188 = vmatpush1.msra.mxu0 0.0
        %189 = vmatprep.subr.mxu0 0.0
        %190 = vmatpush1.msra.mxu0 0.0
        %191 = vmatprep.subr.mxu0 0.0
        %192 = vmatpush1.msra.mxu0 0.0
        %193 = vmatprep.subr.mxu0 0.0
        %194 = vmatpush1.msra.mxu0 0.0
        %195 = vmatprep.subr.mxu0 0.0
        %196 = vmatpush1.msra.mxu0 0.0
        %197 = vmatprep.subr.mxu0 0.0
        %198 = vmatpush1.msra.mxu0 0.0
        %199 = vmatprep.subr.mxu0 0.0
        %200 = vmatpush1.msra.mxu0 0.0
        %201 = vmatprep.subr.mxu0 0.0
        %202 = vmatpush1.msra.mxu0 0.0
        %203 = vmatprep.subr.mxu0 0.0
        %204 = vmatpush1.msra.mxu0 0.0
        %205 = vmatprep.mubr.f32.mxu0 0.0
        %v206 = vand.u32 %v134, 4294901760
        %v207 = vsub.f32 %v134, %v206
        %v208 = vand.u32 %v207, 4294901760
        %v209 = vsub.f32 %v207, %v208
        %v210 = vand.u32 %v209, 4294901760
        %211 = vmatmul.mubr.f32.gmra.mrb[0].mxu0 %v210
        %v212 = vpop.f32.mrb[0].mxu0
        %v213 = vadd.f32 0.0, %v212
        %v214 = vpop.f32.mrb[0].mxu0
        %215 = vmatprep.mubr.f32.mxu0 0.0
        %v216 = vand.u32 %v137, 4294901760
        %v217 = vsub.f32 %v137, %v216
        %v218 = vand.u32 %v217, 4294901760
        %v219 = vsub.f32 %v217, %v218
        %v220 = vand.u32 %v219, 4294901760
        %221 = vmatmul.mubr.f32.gmra.mrb[0].mxu0 %v220
        %v222 = vpop.f32.mrb[0].mxu0
        %v223 = vadd.f32 0.0, %v222
        %v224 = vpop.f32.mrb[0].mxu0
        %225 = vdwg.mxu0
        %226 = vmatprep.subr.mxu0 0.0
        %v227 = vand.u32 %v130, 4294901760
        %v228 = vsub.f32 %v130, %v227
        %v229 = vand.u32 %v228, 4294901760
        %v230 = vsub.f32 %v228, %v229
        %v231 = vand.u32 %v230, 4294901760
        %232 = vmatpush1.msra.mxu0 %v231
        %233 = vmatprep.subr.mxu0 0.0
        %v234 = vand.u32 %v131, 4294901760
        %v235 = vsub.f32 %v131, %v234
        %v236 = vand.u32 %v235, 4294901760
        %v237 = vsub.f32 %v235, %v236
        %v238 = vand.u32 %v237, 4294901760
        %239 = vmatpush1.msra.mxu0 %v238
        %240 = vmatprep.subr.mxu0 0.0
        %241 = vmatpush1.msra.mxu0 0.0
        %242 = vmatprep.subr.mxu0 0.0
        %243 = vmatpush1.msra.mxu0 0.0
        %244 = vmatprep.subr.mxu0 0.0
        %245 = vmatpush1.msra.mxu0 0.0
        %246 = vmatprep.subr.mxu0 0.0
        %247 = vmatpush1.msra.mxu0 0.0
        %248 = vmatprep.subr.mxu0 0.0
        %249 = vmatpush1.msra.mxu0 0.0
        %250 = vmatprep.subr.mxu0 0.0
        %251 = vmatpush1.msra.mxu0 0.0
        %252 = vmatprep.subr.mxu0 0.0
        %253 = vmatpush1.msra.mxu0 0.0
        %254 = vmatprep.subr.mxu0 0.0
        %255 = vmatpush1.msra.mxu0 0.0
        %256 = vmatprep.subr.mxu0 0.0
        %257 = vmatpush1.msra.mxu0 0.0
        %258 = vmatprep.subr.mxu0 0.0
        %259 = vmatpush1.msra.mxu0 0.0
        %260 = vmatprep.subr.mxu0 0.0
        %261 = vmatpush1.msra.mxu0 0.0
        %262 = vmatprep.subr.mxu0 0.0
        %263 = vmatpush1.msra.mxu0 0.0
        %264 = vmatprep.subr.mxu0 0.0
        %265 = vmatpush1.msra.mxu0 0.0
        %266 = vmatprep.subr.mxu0 0.0
        %267 = vmatpush1.msra.mxu0 0.0
        %268 = vmatprep.subr.mxu0 0.0
        %269 = vmatpush1.msra.mxu0 0.0
        %270 = vmatprep.subr.mxu0 0.0
        %271 = vmatpush1.msra.mxu0 0.0
        %272 = vmatprep.subr.mxu0 0.0
        %273 = vmatpush1.msra.mxu0 0.0
        %274 = vmatprep.subr.mxu0 0.0
        %275 = vmatpush1.msra.mxu0 0.0
        %276 = vmatprep.subr.mxu0 0.0
        %277 = vmatpush1.msra.mxu0 0.0
        %278 = vmatprep.subr.mxu0 0.0
        %279 = vmatpush1.msra.mxu0 0.0
        %280 = vmatprep.subr.mxu0 0.0
        %281 = vmatpush1.msra.mxu0 0.0
        %282 = vmatprep.subr.mxu0 0.0
        %283 = vmatpush1.msra.mxu0 0.0
        %284 = vmatprep.subr.mxu0 0.0
        %285 = vmatpush1.msra.mxu0 0.0
        %286 = vmatprep.subr.mxu0 0.0
        %287 = vmatpush1.msra.mxu0 0.0
        %288 = vmatprep.subr.mxu0 0.0
        %289 = vmatpush1.msra.mxu0 0.0
        %290 = vmatprep.subr.mxu0 0.0
        %291 = vmatpush1.msra.mxu0 0.0
        %292 = vmatprep.subr.mxu0 0.0
        %293 = vmatpush1.msra.mxu0 0.0
        %294 = vmatprep.subr.mxu0 0.0
        %295 = vmatpush1.msra.mxu0 0.0
        %296 = vmatprep.subr.mxu0 0.0
        %297 = vmatpush1.msra.mxu0 0.0
        %298 = vmatprep.subr.mxu0 0.0
        %299 = vmatpush1.msra.mxu0 0.0
        %300 = vmatprep.mubr.f32.mxu0 0.0
        %v301 = vand.u32 %v134, 4294901760
        %302 = vmatmul.mubr.f32.gmra.mrb[0].mxu0 %v301
        %v303 = vpop.f32.mrb[0].mxu0
        %v304 = vadd.f32 %v213, %v303
        %v305 = vpop.f32.mrb[0].mxu0
        %306 = vmatprep.mubr.f32.mxu0 0.0
        %v307 = vand.u32 %v137, 4294901760
        %308 = vmatmul.mubr.f32.gmra.mrb[0].mxu0 %v307
        %v309 = vpop.f32.mrb[0].mxu0
        %v310 = vadd.f32 %v223, %v309
        %v311 = vpop.f32.mrb[0].mxu0
        %312 = vdwg.mxu0
        %313 = vmatprep.subr.mxu0 0.0
        %v314 = vand.u32 %v130, 4294901760
        %v315 = vsub.f32 %v130, %v314
        %316 = vmatpush1.msra.mxu0 %v315
        %317 = vmatprep.subr.mxu0 0.0
        %v318 = vand.u32 %v131, 4294901760
        %v319 = vsub.f32 %v131, %v318
        %320 = vmatpush1.msra.mxu0 %v319
        %321 = vmatprep.subr.mxu0 0.0
        %322 = vmatpush1.msra.mxu0 0.0
        %323 = vmatprep.subr.mxu0 0.0
        %324 = vmatpush1.msra.mxu0 0.0
        %325 = vmatprep.subr.mxu0 0.0
        %326 = vmatpush1.msra.mxu0 0.0
        %327 = vmatprep.subr.mxu0 0.0
        %328 = vmatpush1.msra.mxu0 0.0
        %329 = vmatprep.subr.mxu0 0.0
        %330 = vmatpush1.msra.mxu0 0.0
        %331 = vmatprep.subr.mxu0 0.0
        %332 = vmatpush1.msra.mxu0 0.0
        %333 = vmatprep.subr.mxu0 0.0
        %334 = vmatpush1.msra.mxu0 0.0
        %335 = vmatprep.subr.mxu0 0.0
        %336 = vmatpush1.msra.mxu0 0.0
        %337 = vmatprep.subr.mxu0 0.0
        %338 = vmatpush1.msra.mxu0 0.0
        %339 = vmatprep.subr.mxu0 0.0
        %340 = vmatpush1.msra.mxu0 0.0
        %341 = vmatprep.subr.mxu0 0.0
        %342 = vmatpush1.msra.mxu0 0.0
        %343 = vmatprep.subr.mxu0 0.0
        %344 = vmatpush1.msra.mxu0 0.0
        %345 = vmatprep.subr.mxu0 0.0
        %346 = vmatpush1.msra.mxu0 0.0
        %347 = vmatprep.subr.mxu0 0.0
        %348 = vmatpush1.msra.mxu0 0.0
        %349 = vmatprep.subr.mxu0 0.0
        %350 = vmatpush1.msra.mxu0 0.0
        %351 = vmatprep.subr.mxu0 0.0
        %352 = vmatpush1.msra.mxu0 0.0
        %353 = vmatprep.subr.mxu0 0.0
        %354 = vmatpush1.msra.mxu0 0.0
        %355 = vmatprep.subr.mxu0 0.0
        %356 = vmatpush1.msra.mxu0 0.0
        %357 = vmatprep.subr.mxu0 0.0
        %358 = vmatpush1.msra.mxu0 0.0
        %359 = vmatprep.subr.mxu0 0.0
        %360 = vmatpush1.msra.mxu0 0.0
        %361 = vmatprep.subr.mxu0 0.0
        %362 = vmatpush1.msra.mxu0 0.0
        %363 = vmatprep.subr.mxu0 0.0
        %364 = vmatpush1.msra.mxu0 0.0
        %365 = vmatprep.subr.mxu0 0.0
        %366 = vmatpush1.msra.mxu0 0.0
        %367 = vmatprep.subr.mxu0 0.0
        %368 = vmatpush1.msra.mxu0 0.0
        %369 = vmatprep.subr.mxu0 0.0
        %370 = vmatpush1.msra.mxu0 0.0
        %371 = vmatprep.subr.mxu0 0.0
        %372 = vmatpush1.msra.mxu0 0.0
        %373 = vmatprep.subr.mxu0 0.0
        %374 = vmatpush1.msra.mxu0 0.0
        %375 = vmatprep.subr.mxu0 0.0
        %376 = vmatpush1.msra.mxu0 0.0
        %377 = vmatprep.subr.mxu0 0.0
        %378 = vmatpush1.msra.mxu0 0.0
        %379 = vmatprep.subr.mxu0 0.0
        %380 = vmatpush1.msra.mxu0 0.0
        %381 = vmatprep.mubr.f32.mxu0 0.0
        %v382 = vand.u32 %v134, 4294901760
        %v383 = vsub.f32 %v134, %v382
        %384 = vmatmul.mubr.f32.gmra.mrb[0].mxu0 %v383
        %v385 = vpop.f32.mrb[0].mxu0
        %v386 = vadd.f32 %v304, %v385
        %v387 = vpop.f32.mrb[0].mxu0
        %388 = vmatprep.mubr.f32.mxu0 0.0
        %v389 = vand.u32 %v137, 4294901760
        %v390 = vsub.f32 %v137, %v389
        %391 = vmatmul.mubr.f32.gmra.mrb[0].mxu0 %v390
        %v392 = vpop.f32.mrb[0].mxu0
        %v393 = vadd.f32 %v310, %v392
        %v394 = vpop.f32.mrb[0].mxu0
        %395 = vdwg.mxu0
        %396 = vmatprep.subr.mxu0 0.0
        %v397 = vand.u32 %v130, 4294901760
        %398 = vmatpush1.msra.mxu0 %v397
        %399 = vmatprep.subr.mxu0 0.0
        %v400 = vand.u32 %v131, 4294901760
        %401 = vmatpush1.msra.mxu0 %v400
        %402 = vmatprep.subr.mxu0 0.0
        %403 = vmatpush1.msra.mxu0 0.0
        %404 = vmatprep.subr.mxu0 0.0
        %405 = vmatpush1.msra.mxu0 0.0
        %406 = vmatprep.subr.mxu0 0.0
        %407 = vmatpush1.msra.mxu0 0.0
        %408 = vmatprep.subr.mxu0 0.0
        %409 = vmatpush1.msra.mxu0 0.0
        %410 = vmatprep.subr.mxu0 0.0
        %411 = vmatpush1.msra.mxu0 0.0
        %412 = vmatprep.subr.mxu0 0.0
        %413 = vmatpush1.msra.mxu0 0.0
        %414 = vmatprep.subr.mxu0 0.0
        %415 = vmatpush1.msra.mxu0 0.0
        %416 = vmatprep.subr.mxu0 0.0
        %417 = vmatpush1.msra.mxu0 0.0
        %418 = vmatprep.subr.mxu0 0.0
        %419 = vmatpush1.msra.mxu0 0.0
        %420 = vmatprep.subr.mxu0 0.0
        %421 = vmatpush1.msra.mxu0 0.0
        %422 = vmatprep.subr.mxu0 0.0
        %423 = vmatpush1.msra.mxu0 0.0
        %424 = vmatprep.subr.mxu0 0.0
        %425 = vmatpush1.msra.mxu0 0.0
        %426 = vmatprep.subr.mxu0 0.0
        %427 = vmatpush1.msra.mxu0 0.0
        %428 = vmatprep.subr.mxu0 0.0
        %429 = vmatpush1.msra.mxu0 0.0
        %430 = vmatprep.subr.mxu0 0.0
        %431 = vmatpush1.msra.mxu0 0.0
        %432 = vmatprep.subr.mxu0 0.0
        %433 = vmatpush1.msra.mxu0 0.0
        %434 = vmatprep.subr.mxu0 0.0
        %435 = vmatpush1.msra.mxu0 0.0
        %436 = vmatprep.subr.mxu0 0.0
        %437 = vmatpush1.msra.mxu0 0.0
        %438 = vmatprep.subr.mxu0 0.0
        %439 = vmatpush1.msra.mxu0 0.0
        %440 = vmatprep.subr.mxu0 0.0
        %441 = vmatpush1.msra.mxu0 0.0
        %442 = vmatprep.subr.mxu0 0.0
        %443 = vmatpush1.msra.mxu0 0.0
        %444 = vmatprep.subr.mxu0 0.0
        %445 = vmatpush1.msra.mxu0 0.0
        %446 = vmatprep.subr.mxu0 0.0
        %447 = vmatpush1.msra.mxu0 0.0
        %448 = vmatprep.subr.mxu0 0.0
        %449 = vmatpush1.msra.mxu0 0.0
        %450 = vmatprep.subr.mxu0 0.0
        %451 = vmatpush1.msra.mxu0 0.0
        %452 = vmatprep.subr.mxu0 0.0
        %453 = vmatpush1.msra.mxu0 0.0
        %454 = vmatprep.subr.mxu0 0.0
        %455 = vmatpush1.msra.mxu0 0.0
        %456 = vmatprep.subr.mxu0 0.0
        %457 = vmatpush1.msra.mxu0 0.0
        %458 = vmatprep.subr.mxu0 0.0
        %459 = vmatpush1.msra.mxu0 0.0
        %460 = vmatprep.subr.mxu0 0.0
        %461 = vmatpush1.msra.mxu0 0.0
        %462 = vmatprep.mubr.f32.mxu0 0.0
        %v463 = vand.u32 %v134, 4294901760
        %v464 = vsub.f32 %v134, %v463
        %v465 = vand.u32 %v464, 4294901760
        %466 = vmatmul.mubr.f32.gmra.mrb[0].mxu0 %v465
        %v467 = vpop.f32.mrb[0].mxu0
        %v468 = vadd.f32 %v386, %v467
        %v469 = vpop.f32.mrb[0].mxu0
        %470 = vmatprep.mubr.f32.mxu0 0.0
        %v471 = vand.u32 %v137, 4294901760
        %v472 = vsub.f32 %v137, %v471
        %v473 = vand.u32 %v472, 4294901760
        %474 = vmatmul.mubr.f32.gmra.mrb[0].mxu0 %v473
        %v475 = vpop.f32.mrb[0].mxu0
        %v476 = vadd.f32 %v393, %v475
        %v477 = vpop.f32.mrb[0].mxu0
        %478 = vdwg.mxu0
        %479 = vmatprep.subr.mxu0 0.0
        %v480 = vand.u32 %v130, 4294901760
        %v481 = vsub.f32 %v130, %v480
        %v482 = vand.u32 %v481, 4294901760
        %483 = vmatpush1.msra.mxu0 %v482
        %484 = vmatprep.subr.mxu0 0.0
        %v485 = vand.u32 %v131, 4294901760
        %v486 = vsub.f32 %v131, %v485
        %v487 = vand.u32 %v486, 4294901760
        %488 = vmatpush1.msra.mxu0 %v487
        %489 = vmatprep.subr.mxu0 0.0
        %490 = vmatpush1.msra.mxu0 0.0
        %491 = vmatprep.subr.mxu0 0.0
        %492 = vmatpush1.msra.mxu0 0.0
        %493 = vmatprep.subr.mxu0 0.0
        %494 = vmatpush1.msra.mxu0 0.0
        %495 = vmatprep.subr.mxu0 0.0
        %496 = vmatpush1.msra.mxu0 0.0
        %497 = vmatprep.subr.mxu0 0.0
        %498 = vmatpush1.msra.mxu0 0.0
        %499 = vmatprep.subr.mxu0 0.0
        %500 = vmatpush1.msra.mxu0 0.0
        %501 = vmatprep.subr.mxu0 0.0
        %502 = vmatpush1.msra.mxu0 0.0
        %503 = vmatprep.subr.mxu0 0.0
        %504 = vmatpush1.msra.mxu0 0.0
        %505 = vmatprep.subr.mxu0 0.0
        %506 = vmatpush1.msra.mxu0 0.0
        %507 = vmatprep.subr.mxu0 0.0
        %508 = vmatpush1.msra.mxu0 0.0
        %509 = vmatprep.subr.mxu0 0.0
        %510 = vmatpush1.msra.mxu0 0.0
        %511 = vmatprep.subr.mxu0 0.0
        %512 = vmatpush1.msra.mxu0 0.0
        %513 = vmatprep.subr.mxu0 0.0
        %514 = vmatpush1.msra.mxu0 0.0
        %515 = vmatprep.subr.mxu0 0.0
        %516 = vmatpush1.msra.mxu0 0.0
        %517 = vmatprep.subr.mxu0 0.0
        %518 = vmatpush1.msra.mxu0 0.0
        %519 = vmatprep.subr.mxu0 0.0
        %520 = vmatpush1.msra.mxu0 0.0
        %521 = vmatprep.subr.mxu0 0.0
        %522 = vmatpush1.msra.mxu0 0.0
        %523 = vmatprep.subr.mxu0 0.0
        %524 = vmatpush1.msra.mxu0 0.0
        %525 = vmatprep.subr.mxu0 0.0
        %526 = vmatpush1.msra.mxu0 0.0
        %527 = vmatprep.subr.mxu0 0.0
        %528 = vmatpush1.msra.mxu0 0.0
        %529 = vmatprep.subr.mxu0 0.0
        %530 = vmatpush1.msra.mxu0 0.0
        %531 = vmatprep.subr.mxu0 0.0
        %532 = vmatpush1.msra.mxu0 0.0
        %533 = vmatprep.subr.mxu0 0.0
        %534 = vmatpush1.msra.mxu0 0.0
        %535 = vmatprep.subr.mxu0 0.0
        %536 = vmatpush1.msra.mxu0 0.0
        %537 = vmatprep.subr.mxu0 0.0
        %538 = vmatpush1.msra.mxu0 0.0
        %539 = vmatprep.subr.mxu0 0.0
        %540 = vmatpush1.msra.mxu0 0.0
        %541 = vmatprep.subr.mxu0 0.0
        %542 = vmatpush1.msra.mxu0 0.0
        %543 = vmatprep.subr.mxu0 0.0
        %544 = vmatpush1.msra.mxu0 0.0
        %545 = vmatprep.subr.mxu0 0.0
        %546 = vmatpush1.msra.mxu0 0.0
        %547 = vmatprep.subr.mxu0 0.0
        %548 = vmatpush1.msra.mxu0 0.0
        %549 = vmatprep.mubr.f32.mxu0 0.0
        %v550 = vand.u32 %v134, 4294901760
        %551 = vmatmul.mubr.f32.gmra.mrb[0].mxu0 %v550
        %v552 = vpop.f32.mrb[0].mxu0
        %v553 = vadd.f32 %v468, %v552
        %v554 = vpop.f32.mrb[0].mxu0
        %555 = vmatprep.mubr.f32.mxu0 0.0
        %v556 = vand.u32 %v137, 4294901760
        %557 = vmatmul.mubr.f32.gmra.mrb[0].mxu0 %v556
        %v558 = vpop.f32.mrb[0].mxu0
        %v559 = vadd.f32 %v476, %v558
        %v560 = vpop.f32.mrb[0].mxu0
        %561 = vdwg.mxu0
        %562 = vmatprep.subr.mxu0 0.0
        %v563 = vand.u32 %v130, 4294901760
        %564 = vmatpush1.msra.mxu0 %v563
        %565 = vmatprep.subr.mxu0 0.0
        %v566 = vand.u32 %v131, 4294901760
        %567 = vmatpush1.msra.mxu0 %v566
        %568 = vmatprep.subr.mxu0 0.0
        %569 = vmatpush1.msra.mxu0 0.0
        %570 = vmatprep.subr.mxu0 0.0
        %571 = vmatpush1.msra.mxu0 0.0
        %572 = vmatprep.subr.mxu0 0.0
        %573 = vmatpush1.msra.mxu0 0.0
        %574 = vmatprep.subr.mxu0 0.0
        %575 = vmatpush1.msra.mxu0 0.0
        %576 = vmatprep.subr.mxu0 0.0
        %577 = vmatpush1.msra.mxu0 0.0
        %578 = vmatprep.subr.mxu0 0.0
        %579 = vmatpush1.msra.mxu0 0.0
        %580 = vmatprep.subr.mxu0 0.0
        %581 = vmatpush1.msra.mxu0 0.0
        %582 = vmatprep.subr.mxu0 0.0
        %583 = vmatpush1.msra.mxu0 0.0
        %584 = vmatprep.subr.mxu0 0.0
        %585 = vmatpush1.msra.mxu0 0.0
        %586 = vmatprep.subr.mxu0 0.0
        %587 = vmatpush1.msra.mxu0 0.0
        %588 = vmatprep.subr.mxu0 0.0
        %589 = vmatpush1.msra.mxu0 0.0
        %590 = vmatprep.subr.mxu0 0.0
        %591 = vmatpush1.msra.mxu0 0.0
        %592 = vmatprep.subr.mxu0 0.0
        %593 = vmatpush1.msra.mxu0 0.0
        %594 = vmatprep.subr.mxu0 0.0
        %595 = vmatpush1.msra.mxu0 0.0
        %596 = vmatprep.subr.mxu0 0.0
        %597 = vmatpush1.msra.mxu0 0.0
        %598 = vmatprep.subr.mxu0 0.0
        %599 = vmatpush1.msra.mxu0 0.0
        %600 = vmatprep.subr.mxu0 0.0
        %601 = vmatpush1.msra.mxu0 0.0
        %602 = vmatprep.subr.mxu0 0.0
        %603 = vmatpush1.msra.mxu0 0.0
        %604 = vmatprep.subr.mxu0 0.0
        %605 = vmatpush1.msra.mxu0 0.0
        %606 = vmatprep.subr.mxu0 0.0
        %607 = vmatpush1.msra.mxu0 0.0
        %608 = vmatprep.subr.mxu0 0.0
        %609 = vmatpush1.msra.mxu0 0.0
        %610 = vmatprep.subr.mxu0 0.0
        %611 = vmatpush1.msra.mxu0 0.0
        %612 = vmatprep.subr.mxu0 0.0
        %613 = vmatpush1.msra.mxu0 0.0
        %614 = vmatprep.subr.mxu0 0.0
        %615 = vmatpush1.msra.mxu0 0.0
        %616 = vmatprep.subr.mxu0 0.0
        %617 = vmatpush1.msra.mxu0 0.0
        %618 = vmatprep.subr.mxu0 0.0
        %619 = vmatpush1.msra.mxu0 0.0
        %620 = vmatprep.subr.mxu0 0.0
        %621 = vmatpush1.msra.mxu0 0.0
        %622 = vmatprep.subr.mxu0 0.0
        %623 = vmatpush1.msra.mxu0 0.0
        %624 = vmatprep.subr.mxu0 0.0
        %625 = vmatpush1.msra.mxu0 0.0
        %626 = vmatprep.subr.mxu0 0.0
        %627 = vmatpush1.msra.mxu0 0.0
        %628 = vmatprep.mubr.f32.mxu0 0.0
        %v629 = vand.u32 %v134, 4294901760
        %630 = vmatmul.mubr.f32.gmra.mrb[0].mxu0 %v629
        %v631 = vpop.f32.mrb[0].mxu0
        %v632 = vadd.f32 %v553, %v631
        %v633 = vpop.f32.mrb[0].mxu0
        %634 = vmatprep.mubr.f32.mxu0 0.0
        %v635 = vand.u32 %v137, 4294901760
        %636 = vmatmul.mubr.f32.gmra.mrb[0].mxu0 %v635
        %v637 = vpop.f32.mrb[0].mxu0
        %v638 = vadd.f32 %v559, %v637
        %v639 = vpop.f32.mrb[0].mxu0
        %640 = vdwg.mxu0
        %vm641 = vcmask 64512
        %642 = vst.msk [vmem:[%s110] sm:$0xff] %vm641, %v632
        %643 = vst.msk [vmem:[%s110 + $0x20] sm:$0xff] %vm641, %v638
        %644 = vrot.lane.b32.xlu0 %v118, 112
        %v645 = vpop.permute.xlu0 %644
        %646 = vrot.lane.b32.xlu0 %v119, 112
        %v647 = vpop.permute.xlu0 %646
        %v648 = vsel %vm132, %v645, 0
        %v650 = vsel %vm132, %v647, 0
        %652 = vmatprep.subr.mxu0 0.0
        %v653 = vand.u32 %v130, 4294901760
        %654 = vmatpush1.msra.mxu0 %v653
        %655 = vmatprep.subr.mxu0 0.0
        %v656 = vand.u32 %v131, 4294901760
        %657 = vmatpush1.msra.mxu0 %v656
        %658 = vmatprep.subr.mxu0 0.0
        %659 = vmatpush1.msra.mxu0 0.0
        %660 = vmatprep.subr.mxu0 0.0
        %661 = vmatpush1.msra.mxu0 0.0
        %662 = vmatprep.subr.mxu0 0.0
        %663 = vmatpush1.msra.mxu0 0.0
        %664 = vmatprep.subr.mxu0 0.0
        %665 = vmatpush1.msra.mxu0 0.0
        %666 = vmatprep.subr.mxu0 0.0
        %667 = vmatpush1.msra.mxu0 0.0
        %668 = vmatprep.subr.mxu0 0.0
        %669 = vmatpush1.msra.mxu0 0.0
        %670 = vmatprep.subr.mxu0 0.0
        %671 = vmatpush1.msra.mxu0 0.0
        %672 = vmatprep.subr.mxu0 0.0
        %673 = vmatpush1.msra.mxu0 0.0
        %674 = vmatprep.subr.mxu0 0.0
        %675 = vmatpush1.msra.mxu0 0.0
        %676 = vmatprep.subr.mxu0 0.0
        %677 = vmatpush1.msra.mxu0 0.0
        %678 = vmatprep.subr.mxu0 0.0
        %679 = vmatpush1.msra.mxu0 0.0
        %680 = vmatprep.subr.mxu0 0.0
        %681 = vmatpush1.msra.mxu0 0.0
        %682 = vmatprep.subr.mxu0 0.0
        %683 = vmatpush1.msra.mxu0 0.0
        %684 = vmatprep.subr.mxu0 0.0
        %685 = vmatpush1.msra.mxu0 0.0
        %686 = vmatprep.subr.mxu0 0.0
        %687 = vmatpush1.msra.mxu0 0.0
        %688 = vmatprep.subr.mxu0 0.0
        %689 = vmatpush1.msra.mxu0 0.0
        %690 = vmatprep.subr.mxu0 0.0
        %691 = vmatpush1.msra.mxu0 0.0
        %692 = vmatprep.subr.mxu0 0.0
        %693 = vmatpush1.msra.mxu0 0.0
        %694 = vmatprep.subr.mxu0 0.0
        %695 = vmatpush1.msra.mxu0 0.0
        %696 = vmatprep.subr.mxu0 0.0
        %697 = vmatpush1.msra.mxu0 0.0
        %698 = vmatprep.subr.mxu0 0.0
        %699 = vmatpush1.msra.mxu0 0.0
        %700 = vmatprep.subr.mxu0 0.0
        %701 = vmatpush1.msra.mxu0 0.0
        %702 = vmatprep.subr.mxu0 0.0
        %703 = vmatpush1.msra.mxu0 0.0
        %704 = vmatprep.subr.mxu0 0.0
        %705 = vmatpush1.msra.mxu0 0.0
        %706 = vmatprep.subr.mxu0 0.0
        %707 = vmatpush1.msra.mxu0 0.0
        %708 = vmatprep.subr.mxu0 0.0
        %709 = vmatpush1.msra.mxu0 0.0
        %710 = vmatprep.subr.mxu0 0.0
        %711 = vmatpush1.msra.mxu0 0.0
        %712 = vmatprep.subr.mxu0 0.0
        %713 = vmatpush1.msra.mxu0 0.0
        %714 = vmatprep.subr.mxu0 0.0
        %715 = vmatpush1.msra.mxu0 0.0
        %716 = vmatprep.subr.mxu0 0.0
        %717 = vmatpush1.msra.mxu0 0.0
        %718 = vmatprep.mubr.f32.mxu0 0.0
        %v719 = vand.u32 %v648, 4294901760
        %v720 = vsub.f32 %v648, %v719
        %v721 = vand.u32 %v720, 4294901760
        %v722 = vsub.f32 %v720, %v721
        %v723 = vand.u32 %v722, 4294901760
        %724 = vmatmul.mubr.f32.gmra.mrb[0].mxu0 %v723
        %v725 = vpop.f32.mrb[0].mxu0
        %v726 = vadd.f32 0.0, %v725
        %v727 = vpop.f32.mrb[0].mxu0
        %728 = vmatprep.mubr.f32.mxu0 0.0
        %v729 = vand.u32 %v650, 4294901760
        %v730 = vsub.f32 %v650, %v729
        %v731 = vand.u32 %v730, 4294901760
        %v732 = vsub.f32 %v730, %v731
        %v733 = vand.u32 %v732, 4294901760
        %734 = vmatmul.mubr.f32.gmra.mrb[0].mxu0 %v733
        %v735 = vpop.f32.mrb[0].mxu0
        %v736 = vadd.f32 0.0, %v735
        %v737 = vpop.f32.mrb[0].mxu0
        %738 = vdwg.mxu0
        %739 = vmatprep.subr.mxu0 0.0
        %v740 = vand.u32 %v130, 4294901760
        %v741 = vsub.f32 %v130, %v740
        %v742 = vand.u32 %v741, 4294901760
        %v743 = vsub.f32 %v741, %v742
        %v744 = vand.u32 %v743, 4294901760
        %745 = vmatpush1.msra.mxu0 %v744
        %746 = vmatprep.subr.mxu0 0.0
        %v747 = vand.u32 %v131, 4294901760
        %v748 = vsub.f32 %v131, %v747
        %v749 = vand.u32 %v748, 4294901760
        %v750 = vsub.f32 %v748, %v749
        %v751 = vand.u32 %v750, 4294901760
        %752 = vmatpush1.msra.mxu0 %v751
        %753 = vmatprep.subr.mxu0 0.0
        %754 = vmatpush1.msra.mxu0 0.0
        %755 = vmatprep.subr.mxu0 0.0
        %756 = vmatpush1.msra.mxu0 0.0
        %757 = vmatprep.subr.mxu0 0.0
        %758 = vmatpush1.msra.mxu0 0.0
        %759 = vmatprep.subr.mxu0 0.0
        %760 = vmatpush1.msra.mxu0 0.0
        %761 = vmatprep.subr.mxu0 0.0
        %762 = vmatpush1.msra.mxu0 0.0
        %763 = vmatprep.subr.mxu0 0.0
        %764 = vmatpush1.msra.mxu0 0.0
        %765 = vmatprep.subr.mxu0 0.0
        %766 = vmatpush1.msra.mxu0 0.0
        %767 = vmatprep.subr.mxu0 0.0
        %768 = vmatpush1.msra.mxu0 0.0
        %769 = vmatprep.subr.mxu0 0.0
        %770 = vmatpush1.msra.mxu0 0.0
        %771 = vmatprep.subr.mxu0 0.0
        %772 = vmatpush1.msra.mxu0 0.0
        %773 = vmatprep.subr.mxu0 0.0
        %774 = vmatpush1.msra.mxu0 0.0
        %775 = vmatprep.subr.mxu0 0.0
        %776 = vmatpush1.msra.mxu0 0.0
        %777 = vmatprep.subr.mxu0 0.0
        %778 = vmatpush1.msra.mxu0 0.0
        %779 = vmatprep.subr.mxu0 0.0
        %780 = vmatpush1.msra.mxu0 0.0
        %781 = vmatprep.subr.mxu0 0.0
        %782 = vmatpush1.msra.mxu0 0.0
        %783 = vmatprep.subr.mxu0 0.0
        %784 = vmatpush1.msra.mxu0 0.0
        %785 = vmatprep.subr.mxu0 0.0
        %786 = vmatpush1.msra.mxu0 0.0
        %787 = vmatprep.subr.mxu0 0.0
        %788 = vmatpush1.msra.mxu0 0.0
        %789 = vmatprep.subr.mxu0 0.0
        %790 = vmatpush1.msra.mxu0 0.0
        %791 = vmatprep.subr.mxu0 0.0
        %792 = vmatpush1.msra.mxu0 0.0
        %793 = vmatprep.subr.mxu0 0.0
        %794 = vmatpush1.msra.mxu0 0.0
        %795 = vmatprep.subr.mxu0 0.0
        %796 = vmatpush1.msra.mxu0 0.0
        %797 = vmatprep.subr.mxu0 0.0
        %798 = vmatpush1.msra.mxu0 0.0
        %799 = vmatprep.subr.mxu0 0.0
        %800 = vmatpush1.msra.mxu0 0.0
        %801 = vmatprep.subr.mxu0 0.0
        %802 = vmatpush1.msra.mxu0 0.0
        %803 = vmatprep.subr.mxu0 0.0
        %804 = vmatpush1.msra.mxu0 0.0
        %805 = vmatprep.subr.mxu0 0.0
        %806 = vmatpush1.msra.mxu0 0.0
        %807 = vmatprep.subr.mxu0 0.0
        %808 = vmatpush1.msra.mxu0 0.0
        %809 = vmatprep.subr.mxu0 0.0
        %810 = vmatpush1.msra.mxu0 0.0
        %811 = vmatprep.subr.mxu0 0.0
        %812 = vmatpush1.msra.mxu0 0.0
        %813 = vmatprep.mubr.f32.mxu0 0.0
        %v814 = vand.u32 %v648, 4294901760
        %815 = vmatmul.mubr.f32.gmra.mrb[0].mxu0 %v814
        %v816 = vpop.f32.mrb[0].mxu0
        %v817 = vadd.f32 %v726, %v816
        %v818 = vpop.f32.mrb[0].mxu0
        %819 = vmatprep.mubr.f32.mxu0 0.0
        %v820 = vand.u32 %v650, 4294901760
        %821 = vmatmul.mubr.f32.gmra.mrb[0].mxu0 %v820
        %v822 = vpop.f32.mrb[0].mxu0
        %v823 = vadd.f32 %v736, %v822
        %v824 = vpop.f32.mrb[0].mxu0
        %825 = vdwg.mxu0
        %826 = vmatprep.subr.mxu0 0.0
        %v827 = vand.u32 %v130, 4294901760
        %v828 = vsub.f32 %v130, %v827
        %829 = vmatpush1.msra.mxu0 %v828
        %830 = vmatprep.subr.mxu0 0.0
        %v831 = vand.u32 %v131, 4294901760
        %v832 = vsub.f32 %v131, %v831
        %833 = vmatpush1.msra.mxu0 %v832
        %834 = vmatprep.subr.mxu0 0.0
        %835 = vmatpush1.msra.mxu0 0.0
        %836 = vmatprep.subr.mxu0 0.0
        %837 = vmatpush1.msra.mxu0 0.0
        %838 = vmatprep.subr.mxu0 0.0
        %839 = vmatpush1.msra.mxu0 0.0
        %840 = vmatprep.subr.mxu0 0.0
        %841 = vmatpush1.msra.mxu0 0.0
        %842 = vmatprep.subr.mxu0 0.0
        %843 = vmatpush1.msra.mxu0 0.0
        %844 = vmatprep.subr.mxu0 0.0
        %845 = vmatpush1.msra.mxu0 0.0
        %846 = vmatprep.subr.mxu0 0.0
        %847 = vmatpush1.msra.mxu0 0.0
        %848 = vmatprep.subr.mxu0 0.0
        %849 = vmatpush1.msra.mxu0 0.0
        %850 = vmatprep.subr.mxu0 0.0
        %851 = vmatpush1.msra.mxu0 0.0
        %852 = vmatprep.subr.mxu0 0.0
        %853 = vmatpush1.msra.mxu0 0.0
        %854 = vmatprep.subr.mxu0 0.0
        %855 = vmatpush1.msra.mxu0 0.0
        %856 = vmatprep.subr.mxu0 0.0
        %857 = vmatpush1.msra.mxu0 0.0
        %858 = vmatprep.subr.mxu0 0.0
        %859 = vmatpush1.msra.mxu0 0.0
        %860 = vmatprep.subr.mxu0 0.0
        %861 = vmatpush1.msra.mxu0 0.0
        %862 = vmatprep.subr.mxu0 0.0
        %863 = vmatpush1.msra.mxu0 0.0
        %864 = vmatprep.subr.mxu0 0.0
        %865 = vmatpush1.msra.mxu0 0.0
        %866 = vmatprep.subr.mxu0 0.0
        %867 = vmatpush1.msra.mxu0 0.0
        %868 = vmatprep.subr.mxu0 0.0
        %869 = vmatpush1.msra.mxu0 0.0
        %870 = vmatprep.subr.mxu0 0.0
        %871 = vmatpush1.msra.mxu0 0.0
        %872 = vmatprep.subr.mxu0 0.0
        %873 = vmatpush1.msra.mxu0 0.0
        %874 = vmatprep.subr.mxu0 0.0
        %875 = vmatpush1.msra.mxu0 0.0
        %876 = vmatprep.subr.mxu0 0.0
        %877 = vmatpush1.msra.mxu0 0.0
        %878 = vmatprep.subr.mxu0 0.0
        %879 = vmatpush1.msra.mxu0 0.0
        %880 = vmatprep.subr.mxu0 0.0
        %881 = vmatpush1.msra.mxu0 0.0
        %882 = vmatprep.subr.mxu0 0.0
        %883 = vmatpush1.msra.mxu0 0.0
        %884 = vmatprep.subr.mxu0 0.0
        %885 = vmatpush1.msra.mxu0 0.0
        %886 = vmatprep.subr.mxu0 0.0
        %887 = vmatpush1.msra.mxu0 0.0
        %888 = vmatprep.subr.mxu0 0.0
        %889 = vmatpush1.msra.mxu0 0.0
        %890 = vmatprep.subr.mxu0 0.0
        %891 = vmatpush1.msra.mxu0 0.0
        %892 = vmatprep.subr.mxu0 0.0
        %893 = vmatpush1.msra.mxu0 0.0
        %894 = vmatprep.mubr.f32.mxu0 0.0
        %v895 = vand.u32 %v648, 4294901760
        %v896 = vsub.f32 %v648, %v895
        %897 = vmatmul.mubr.f32.gmra.mrb[0].mxu0 %v896
        %v898 = vpop.f32.mrb[0].mxu0
        %v899 = vadd.f32 %v817, %v898
        %v900 = vpop.f32.mrb[0].mxu0
        %901 = vmatprep.mubr.f32.mxu0 0.0
        %v902 = vand.u32 %v650, 4294901760
        %v903 = vsub.f32 %v650, %v902
        %904 = vmatmul.mubr.f32.gmra.mrb[0].mxu0 %v903
        %v905 = vpop.f32.mrb[0].mxu0
        %v906 = vadd.f32 %v823, %v905
        %v907 = vpop.f32.mrb[0].mxu0
        %908 = vdwg.mxu0
        %909 = vmatprep.subr.mxu0 0.0
        %v910 = vand.u32 %v130, 4294901760
        %911 = vmatpush1.msra.mxu0 %v910
        %912 = vmatprep.subr.mxu0 0.0
        %v913 = vand.u32 %v131, 4294901760
        %914 = vmatpush1.msra.mxu0 %v913
        %915 = vmatprep.subr.mxu0 0.0
        %916 = vmatpush1.msra.mxu0 0.0
        %917 = vmatprep.subr.mxu0 0.0
        %918 = vmatpush1.msra.mxu0 0.0
        %919 = vmatprep.subr.mxu0 0.0
        %920 = vmatpush1.msra.mxu0 0.0
        %921 = vmatprep.subr.mxu0 0.0
        %922 = vmatpush1.msra.mxu0 0.0
        %923 = vmatprep.subr.mxu0 0.0
        %924 = vmatpush1.msra.mxu0 0.0
        %925 = vmatprep.subr.mxu0 0.0
        %926 = vmatpush1.msra.mxu0 0.0
        %927 = vmatprep.subr.mxu0 0.0
        %928 = vmatpush1.msra.mxu0 0.0
        %929 = vmatprep.subr.mxu0 0.0
        %930 = vmatpush1.msra.mxu0 0.0
        %931 = vmatprep.subr.mxu0 0.0
        %932 = vmatpush1.msra.mxu0 0.0
        %933 = vmatprep.subr.mxu0 0.0
        %934 = vmatpush1.msra.mxu0 0.0
        %935 = vmatprep.subr.mxu0 0.0
        %936 = vmatpush1.msra.mxu0 0.0
        %937 = vmatprep.subr.mxu0 0.0
        %938 = vmatpush1.msra.mxu0 0.0
        %939 = vmatprep.subr.mxu0 0.0
        %940 = vmatpush1.msra.mxu0 0.0
        %941 = vmatprep.subr.mxu0 0.0
        %942 = vmatpush1.msra.mxu0 0.0
        %943 = vmatprep.subr.mxu0 0.0
        %944 = vmatpush1.msra.mxu0 0.0
        %945 = vmatprep.subr.mxu0 0.0
        %946 = vmatpush1.msra.mxu0 0.0
        %947 = vmatprep.subr.mxu0 0.0
        %948 = vmatpush1.msra.mxu0 0.0
        %949 = vmatprep.subr.mxu0 0.0
        %950 = vmatpush1.msra.mxu0 0.0
        %951 = vmatprep.subr.mxu0 0.0
        %952 = vmatpush1.msra.mxu0 0.0
        %953 = vmatprep.subr.mxu0 0.0
        %954 = vmatpush1.msra.mxu0 0.0
        %955 = vmatprep.subr.mxu0 0.0
        %956 = vmatpush1.msra.mxu0 0.0
        %957 = vmatprep.subr.mxu0 0.0
        %958 = vmatpush1.msra.mxu0 0.0
        %959 = vmatprep.subr.mxu0 0.0
        %960 = vmatpush1.msra.mxu0 0.0
        %961 = vmatprep.subr.mxu0 0.0
        %962 = vmatpush1.msra.mxu0 0.0
        %963 = vmatprep.subr.mxu0 0.0
        %964 = vmatpush1.msra.mxu0 0.0
        %965 = vmatprep.subr.mxu0 0.0
        %966 = vmatpush1.msra.mxu0 0.0
        %967 = vmatprep.subr.mxu0 0.0
        %968 = vmatpush1.msra.mxu0 0.0
        %969 = vmatprep.subr.mxu0 0.0
        %970 = vmatpush1.msra.mxu0 0.0
        %971 = vmatprep.subr.mxu0 0.0
        %972 = vmatpush1.msra.mxu0 0.0
        %973 = vmatprep.subr.mxu0 0.0
        %974 = vmatpush1.msra.mxu0 0.0
        %975 = vmatprep.mubr.f32.mxu0 0.0
        %v976 = vand.u32 %v648, 4294901760
        %v977 = vsub.f32 %v648, %v976
        %v978 = vand.u32 %v977, 4294901760
        %979 = vmatmul.mubr.f32.gmra.mrb[0].mxu0 %v978
        %v980 = vpop.f32.mrb[0].mxu0
        %v981 = vadd.f32 %v899, %v980
        %v982 = vpop.f32.mrb[0].mxu0
        %983 = vmatprep.mubr.f32.mxu0 0.0
        %v984 = vand.u32 %v650, 4294901760
        %v985 = vsub.f32 %v650, %v984
        %v986 = vand.u32 %v985, 4294901760
        %987 = vmatmul.mubr.f32.gmra.mrb[0].mxu0 %v986
        %v988 = vpop.f32.mrb[0].mxu0
        %v989 = vadd.f32 %v906, %v988
        %v990 = vpop.f32.mrb[0].mxu0
        %991 = vdwg.mxu0
        %992 = vmatprep.subr.mxu0 0.0
        %v993 = vand.u32 %v130, 4294901760
        %v994 = vsub.f32 %v130, %v993
        %v995 = vand.u32 %v994, 4294901760
        %996 = vmatpush1.msra.mxu0 %v995
        %997 = vmatprep.subr.mxu0 0.0
        %v998 = vand.u32 %v131, 4294901760
        %v999 = vsub.f32 %v131, %v998
        %v1000 = vand.u32 %v999, 4294901760
        %1001 = vmatpush1.msra.mxu0 %v1000
        %1002 = vmatprep.subr.mxu0 0.0
        %1003 = vmatpush1.msra.mxu0 0.0
        %1004 = vmatprep.subr.mxu0 0.0
        %1005 = vmatpush1.msra.mxu0 0.0
        %1006 = vmatprep.subr.mxu0 0.0
        %1007 = vmatpush1.msra.mxu0 0.0
        %1008 = vmatprep.subr.mxu0 0.0
        %1009 = vmatpush1.msra.mxu0 0.0
        %1010 = vmatprep.subr.mxu0 0.0
        %1011 = vmatpush1.msra.mxu0 0.0
        %1012 = vmatprep.subr.mxu0 0.0
        %1013 = vmatpush1.msra.mxu0 0.0
        %1014 = vmatprep.subr.mxu0 0.0
        %1015 = vmatpush1.msra.mxu0 0.0
        %1016 = vmatprep.subr.mxu0 0.0
        %1017 = vmatpush1.msra.mxu0 0.0
        %1018 = vmatprep.subr.mxu0 0.0
        %1019 = vmatpush1.msra.mxu0 0.0
        %1020 = vmatprep.subr.mxu0 0.0
        %1021 = vmatpush1.msra.mxu0 0.0
        %1022 = vmatprep.subr.mxu0 0.0
        %1023 = vmatpush1.msra.mxu0 0.0
        %1024 = vmatprep.subr.mxu0 0.0
        %1025 = vmatpush1.msra.mxu0 0.0
        %1026 = vmatprep.subr.mxu0 0.0
        %1027 = vmatpush1.msra.mxu0 0.0
        %1028 = vmatprep.subr.mxu0 0.0
        %1029 = vmatpush1.msra.mxu0 0.0
        %1030 = vmatprep.subr.mxu0 0.0
        %1031 = vmatpush1.msra.mxu0 0.0
        %1032 = vmatprep.subr.mxu0 0.0
        %1033 = vmatpush1.msra.mxu0 0.0
        %1034 = vmatprep.subr.mxu0 0.0
        %1035 = vmatpush1.msra.mxu0 0.0
        %1036 = vmatprep.subr.mxu0 0.0
        %1037 = vmatpush1.msra.mxu0 0.0
        %1038 = vmatprep.subr.mxu0 0.0
        %1039 = vmatpush1.msra.mxu0 0.0
        %1040 = vmatprep.subr.mxu0 0.0
        %1041 = vmatpush1.msra.mxu0 0.0
        %1042 = vmatprep.subr.mxu0 0.0
        %1043 = vmatpush1.msra.mxu0 0.0
        %1044 = vmatprep.subr.mxu0 0.0
        %1045 = vmatpush1.msra.mxu0 0.0
        %1046 = vmatprep.subr.mxu0 0.0
        %1047 = vmatpush1.msra.mxu0 0.0
        %1048 = vmatprep.subr.mxu0 0.0
        %1049 = vmatpush1.msra.mxu0 0.0
        %1050 = vmatprep.subr.mxu0 0.0
        %1051 = vmatpush1.msra.mxu0 0.0
        %1052 = vmatprep.subr.mxu0 0.0
        %1053 = vmatpush1.msra.mxu0 0.0
        %1054 = vmatprep.subr.mxu0 0.0
        %1055 = vmatpush1.msra.mxu0 0.0
        %1056 = vmatprep.subr.mxu0 0.0
        %1057 = vmatpush1.msra.mxu0 0.0
        %1058 = vmatprep.subr.mxu0 0.0
        %1059 = vmatpush1.msra.mxu0 0.0
        %1060 = vmatprep.subr.mxu0 0.0
        %1061 = vmatpush1.msra.mxu0 0.0
        %1062 = vmatprep.mubr.f32.mxu0 0.0
        %v1063 = vand.u32 %v648, 4294901760
        %1064 = vmatmul.mubr.f32.gmra.mrb[0].mxu0 %v1063
        %v1065 = vpop.f32.mrb[0].mxu0
        %v1066 = vadd.f32 %v981, %v1065
        %v1067 = vpop.f32.mrb[0].mxu0
        %1068 = vmatprep.mubr.f32.mxu0 0.0
        %v1069 = vand.u32 %v650, 4294901760
        %1070 = vmatmul.mubr.f32.gmra.mrb[0].mxu0 %v1069
        %v1071 = vpop.f32.mrb[0].mxu0
        %v1072 = vadd.f32 %v989, %v1071
        %v1073 = vpop.f32.mrb[0].mxu0
        %1074 = vdwg.mxu0
        %1075 = vmatprep.subr.mxu0 0.0
        %v1076 = vand.u32 %v130, 4294901760
        %1077 = vmatpush1.msra.mxu0 %v1076
        %1078 = vmatprep.subr.mxu0 0.0
        %v1079 = vand.u32 %v131, 4294901760
        %1080 = vmatpush1.msra.mxu0 %v1079
        %1081 = vmatprep.subr.mxu0 0.0
        %1082 = vmatpush1.msra.mxu0 0.0
        %1083 = vmatprep.subr.mxu0 0.0
        %1084 = vmatpush1.msra.mxu0 0.0
        %1085 = vmatprep.subr.mxu0 0.0
        %1086 = vmatpush1.msra.mxu0 0.0
        %1087 = vmatprep.subr.mxu0 0.0
        %1088 = vmatpush1.msra.mxu0 0.0
        %1089 = vmatprep.subr.mxu0 0.0
        %1090 = vmatpush1.msra.mxu0 0.0
        %1091 = vmatprep.subr.mxu0 0.0
        %1092 = vmatpush1.msra.mxu0 0.0
        %1093 = vmatprep.subr.mxu0 0.0
        %1094 = vmatpush1.msra.mxu0 0.0
        %1095 = vmatprep.subr.mxu0 0.0
        %1096 = vmatpush1.msra.mxu0 0.0
        %1097 = vmatprep.subr.mxu0 0.0
        %1098 = vmatpush1.msra.mxu0 0.0
        %1099 = vmatprep.subr.mxu0 0.0
        %1100 = vmatpush1.msra.mxu0 0.0
        %1101 = vmatprep.subr.mxu0 0.0
        %1102 = vmatpush1.msra.mxu0 0.0
        %1103 = vmatprep.subr.mxu0 0.0
        %1104 = vmatpush1.msra.mxu0 0.0
        %1105 = vmatprep.subr.mxu0 0.0
        %1106 = vmatpush1.msra.mxu0 0.0
        %1107 = vmatprep.subr.mxu0 0.0
        %1108 = vmatpush1.msra.mxu0 0.0
        %1109 = vmatprep.subr.mxu0 0.0
        %1110 = vmatpush1.msra.mxu0 0.0
        %1111 = vmatprep.subr.mxu0 0.0
        %1112 = vmatpush1.msra.mxu0 0.0
        %1113 = vmatprep.subr.mxu0 0.0
        %1114 = vmatpush1.msra.mxu0 0.0
        %1115 = vmatprep.subr.mxu0 0.0
        %1116 = vmatpush1.msra.mxu0 0.0
        %1117 = vmatprep.subr.mxu0 0.0
        %1118 = vmatpush1.msra.mxu0 0.0
        %1119 = vmatprep.subr.mxu0 0.0
        %1120 = vmatpush1.msra.mxu0 0.0
        %1121 = vmatprep.subr.mxu0 0.0
        %1122 = vmatpush1.msra.mxu0 0.0
        %1123 = vmatprep.subr.mxu0 0.0
        %1124 = vmatpush1.msra.mxu0 0.0
        %1125 = vmatprep.subr.mxu0 0.0
        %1126 = vmatpush1.msra.mxu0 0.0
        %1127 = vmatprep.subr.mxu0 0.0
        %1128 = vmatpush1.msra.mxu0 0.0
        %1129 = vmatprep.subr.mxu0 0.0
        %1130 = vmatpush1.msra.mxu0 0.0
        %1131 = vmatprep.subr.mxu0 0.0
        %1132 = vmatpush1.msra.mxu0 0.0
        %1133 = vmatprep.subr.mxu0 0.0
        %1134 = vmatpush1.msra.mxu0 0.0
        %1135 = vmatprep.subr.mxu0 0.0
        %1136 = vmatpush1.msra.mxu0 0.0
        %1137 = vmatprep.subr.mxu0 0.0
        %1138 = vmatpush1.msra.mxu0 0.0
        %1139 = vmatprep.subr.mxu0 0.0
        %1140 = vmatpush1.msra.mxu0 0.0
        %1141 = vmatprep.mubr.f32.mxu0 0.0
        %v1142 = vand.u32 %v648, 4294901760
        %1143 = vmatmul.mubr.f32.gmra.mrb[0].mxu0 %v1142
        %v1144 = vpop.f32.mrb[0].mxu0
        %v1145 = vadd.f32 %v1066, %v1144
        %v1146 = vpop.f32.mrb[0].mxu0
        %1147 = vmatprep.mubr.f32.mxu0 0.0
        %v1148 = vand.u32 %v650, 4294901760
        %1149 = vmatmul.mubr.f32.gmra.mrb[0].mxu0 %v1148
        %v1150 = vpop.f32.mrb[0].mxu0
        %v1151 = vadd.f32 %v1072, %v1150
        %v1152 = vpop.f32.mrb[0].mxu0
        %1153 = vdwg.mxu0
        %s1154 = scalar_lea.vmem %s110, 16 [#allocation2]
        %1155 = vst.msk [vmem:[%s1154] sm:$0xff] %vm641, %v1145
        %1156 = vst.msk [vmem:[%s1154 + $0x20] sm:$0xff] %vm641, %v1151
        %v1157 = vadd.s32 %v125, 1
        %vm1158 = vcmp.eq.s32.totalorder %v121, %v1157
        %vm1159 = vcmp.eq.s32.totalorder %v122, %v1157
        %v1160 = vsel %vm1158, 1, 0
        %v1161 = vsel %vm1159, 1, 0
        %v1162 = vcvt.s32.f32 %v1160
        %v1163 = vcvt.s32.f32 %v1161
        %1164 = vmatprep.subr.mxu0 0.0
        %v1165 = vand.u32 %v1162, 4294901760
        %1166 = vmatpush1.msra.mxu0 %v1165
        %1167 = vmatprep.subr.mxu0 0.0
        %v1168 = vand.u32 %v1163, 4294901760
        %1169 = vmatpush1.msra.mxu0 %v1168
        %1170 = vmatprep.subr.mxu0 0.0
        %1171 = vmatpush1.msra.mxu0 0.0
        %1172 = vmatprep.subr.mxu0 0.0
        %1173 = vmatpush1.msra.mxu0 0.0
        %1174 = vmatprep.subr.mxu0 0.0
        %1175 = vmatpush1.msra.mxu0 0.0
        %1176 = vmatprep.subr.mxu0 0.0
        %1177 = vmatpush1.msra.mxu0 0.0
        %1178 = vmatprep.subr.mxu0 0.0
        %1179 = vmatpush1.msra.mxu0 0.0
        %1180 = vmatprep.subr.mxu0 0.0
        %1181 = vmatpush1.msra.mxu0 0.0
        %1182 = vmatprep.subr.mxu0 0.0
        %1183 = vmatpush1.msra.mxu0 0.0
        %1184 = vmatprep.subr.mxu0 0.0
        %1185 = vmatpush1.msra.mxu0 0.0
        %1186 = vmatprep.subr.mxu0 0.0
        %1187 = vmatpush1.msra.mxu0 0.0
        %1188 = vmatprep.subr.mxu0 0.0
        %1189 = vmatpush1.msra.mxu0 0.0
        %1190 = vmatprep.subr.mxu0 0.0
        %1191 = vmatpush1.msra.mxu0 0.0
        %1192 = vmatprep.subr.mxu0 0.0
        %1193 = vmatpush1.msra.mxu0 0.0
        %1194 = vmatprep.subr.mxu0 0.0
        %1195 = vmatpush1.msra.mxu0 0.0
        %1196 = vmatprep.subr.mxu0 0.0
        %1197 = vmatpush1.msra.mxu0 0.0
        %1198 = vmatprep.subr.mxu0 0.0
        %1199 = vmatpush1.msra.mxu0 0.0
        %1200 = vmatprep.subr.mxu0 0.0
        %1201 = vmatpush1.msra.mxu0 0.0
        %1202 = vmatprep.subr.mxu0 0.0
        %1203 = vmatpush1.msra.mxu0 0.0
        %1204 = vmatprep.subr.mxu0 0.0
        %1205 = vmatpush1.msra.mxu0 0.0
        %1206 = vmatprep.subr.mxu0 0.0
        %1207 = vmatpush1.msra.mxu0 0.0
        %1208 = vmatprep.subr.mxu0 0.0
        %1209 = vmatpush1.msra.mxu0 0.0
        %1210 = vmatprep.subr.mxu0 0.0
        %1211 = vmatpush1.msra.mxu0 0.0
        %1212 = vmatprep.subr.mxu0 0.0
        %1213 = vmatpush1.msra.mxu0 0.0
        %1214 = vmatprep.subr.mxu0 0.0
        %1215 = vmatpush1.msra.mxu0 0.0
        %1216 = vmatprep.subr.mxu0 0.0
        %1217 = vmatpush1.msra.mxu0 0.0
        %1218 = vmatprep.subr.mxu0 0.0
        %1219 = vmatpush1.msra.mxu0 0.0
        %1220 = vmatprep.subr.mxu0 0.0
        %1221 = vmatpush1.msra.mxu0 0.0
        %1222 = vmatprep.subr.mxu0 0.0
        %1223 = vmatpush1.msra.mxu0 0.0
        %1224 = vmatprep.subr.mxu0 0.0
        %1225 = vmatpush1.msra.mxu0 0.0
        %1226 = vmatprep.subr.mxu0 0.0
        %1227 = vmatpush1.msra.mxu0 0.0
        %1228 = vmatprep.subr.mxu0 0.0
        %1229 = vmatpush1.msra.mxu0 0.0
        %1230 = vmatprep.mubr.f32.mxu0 0.0
        %v1231 = vand.u32 %v134, 4294901760
        %v1232 = vsub.f32 %v134, %v1231
        %v1233 = vand.u32 %v1232, 4294901760
        %v1234 = vsub.f32 %v1232, %v1233
        %v1235 = vand.u32 %v1234, 4294901760
        %1236 = vmatmul.mubr.f32.gmra.mrb[0].mxu0 %v1235
        %v1237 = vpop.f32.mrb[0].mxu0
        %v1238 = vadd.f32 0.0, %v1237
        %v1239 = vpop.f32.mrb[0].mxu0
        %1240 = vmatprep.mubr.f32.mxu0 0.0
        %v1241 = vand.u32 %v137, 4294901760
        %v1242 = vsub.f32 %v137, %v1241
        %v1243 = vand.u32 %v1242, 4294901760
        %v1244 = vsub.f32 %v1242, %v1243
        %v1245 = vand.u32 %v1244, 4294901760
        %1246 = vmatmul.mubr.f32.gmra.mrb[0].mxu0 %v1245
        %v1247 = vpop.f32.mrb[0].mxu0
        %v1248 = vadd.f32 0.0, %v1247
        %v1249 = vpop.f32.mrb[0].mxu0
        %1250 = vdwg.mxu0
        %1251 = vmatprep.subr.mxu0 0.0
        %v1252 = vand.u32 %v1162, 4294901760
        %v1253 = vsub.f32 %v1162, %v1252
        %v1254 = vand.u32 %v1253, 4294901760
        %v1255 = vsub.f32 %v1253, %v1254
        %v1256 = vand.u32 %v1255, 4294901760
        %1257 = vmatpush1.msra.mxu0 %v1256
        %1258 = vmatprep.subr.mxu0 0.0
        %v1259 = vand.u32 %v1163, 4294901760
        %v1260 = vsub.f32 %v1163, %v1259
        %v1261 = vand.u32 %v1260, 4294901760
        %v1262 = vsub.f32 %v1260, %v1261
        %v1263 = vand.u32 %v1262, 4294901760
        %1264 = vmatpush1.msra.mxu0 %v1263
        %1265 = vmatprep.subr.mxu0 0.0
        %1266 = vmatpush1.msra.mxu0 0.0
        %1267 = vmatprep.subr.mxu0 0.0
        %1268 = vmatpush1.msra.mxu0 0.0
        %1269 = vmatprep.subr.mxu0 0.0
        %1270 = vmatpush1.msra.mxu0 0.0
        %1271 = vmatprep.subr.mxu0 0.0
        %1272 = vmatpush1.msra.mxu0 0.0
        %1273 = vmatprep.subr.mxu0 0.0
        %1274 = vmatpush1.msra.mxu0 0.0
        %1275 = vmatprep.subr.mxu0 0.0
        %1276 = vmatpush1.msra.mxu0 0.0
        %1277 = vmatprep.subr.mxu0 0.0
        %1278 = vmatpush1.msra.mxu0 0.0
        %1279 = vmatprep.subr.mxu0 0.0
        %1280 = vmatpush1.msra.mxu0 0.0
        %1281 = vmatprep.subr.mxu0 0.0
        %1282 = vmatpush1.msra.mxu0 0.0
        %1283 = vmatprep.subr.mxu0 0.0
        %1284 = vmatpush1.msra.mxu0 0.0
        %1285 = vmatprep.subr.mxu0 0.0
        %1286 = vmatpush1.msra.mxu0 0.0
        %1287 = vmatprep.subr.mxu0 0.0
        %1288 = vmatpush1.msra.mxu0 0.0
        %1289 = vmatprep.subr.mxu0 0.0
        %1290 = vmatpush1.msra.mxu0 0.0
        %1291 = vmatprep.subr.mxu0 0.0
        %1292 = vmatpush1.msra.mxu0 0.0
        %1293 = vmatprep.subr.mxu0 0.0
        %1294 = vmatpush1.msra.mxu0 0.0
        %1295 = vmatprep.subr.mxu0 0.0
        %1296 = vmatpush1.msra.mxu0 0.0
        %1297 = vmatprep.subr.mxu0 0.0
        %1298 = vmatpush1.msra.mxu0 0.0
        %1299 = vmatprep.subr.mxu0 0.0
        %1300 = vmatpush1.msra.mxu0 0.0
        %1301 = vmatprep.subr.mxu0 0.0
        %1302 = vmatpush1.msra.mxu0 0.0
        %1303 = vmatprep.subr.mxu0 0.0
        %1304 = vmatpush1.msra.mxu0 0.0
        %1305 = vmatprep.subr.mxu0 0.0
        %1306 = vmatpush1.msra.mxu0 0.0
        %1307 = vmatprep.subr.mxu0 0.0
        %1308 = vmatpush1.msra.mxu0 0.0
        %1309 = vmatprep.subr.mxu0 0.0
        %1310 = vmatpush1.msra.mxu0 0.0
        %1311 = vmatprep.subr.mxu0 0.0
        %1312 = vmatpush1.msra.mxu0 0.0
        %1313 = vmatprep.subr.mxu0 0.0
        %1314 = vmatpush1.msra.mxu0 0.0
        %1315 = vmatprep.subr.mxu0 0.0
        %1316 = vmatpush1.msra.mxu0 0.0
        %1317 = vmatprep.subr.mxu0 0.0
        %1318 = vmatpush1.msra.mxu0 0.0
        %1319 = vmatprep.subr.mxu0 0.0
        %1320 = vmatpush1.msra.mxu0 0.0
        %1321 = vmatprep.subr.mxu0 0.0
        %1322 = vmatpush1.msra.mxu0 0.0
        %1323 = vmatprep.subr.mxu0 0.0
        %1324 = vmatpush1.msra.mxu0 0.0
        %1325 = vmatprep.mubr.f32.mxu0 0.0
        %v1326 = vand.u32 %v134, 4294901760
        %1327 = vmatmul.mubr.f32.gmra.mrb[0].mxu0 %v1326
        %v1328 = vpop.f32.mrb[0].mxu0
        %v1329 = vadd.f32 %v1238, %v1328
        %v1330 = vpop.f32.mrb[0].mxu0
        %1331 = vmatprep.mubr.f32.mxu0 0.0
        %v1332 = vand.u32 %v137, 4294901760
        %1333 = vmatmul.mubr.f32.gmra.mrb[0].mxu0 %v1332
        %v1334 = vpop.f32.mrb[0].mxu0
        %v1335 = vadd.f32 %v1248, %v1334
        %v1336 = vpop.f32.mrb[0].mxu0
        %1337 = vdwg.mxu0
        %1338 = vmatprep.subr.mxu0 0.0
        %v1339 = vand.u32 %v1162, 4294901760
        %v1340 = vsub.f32 %v1162, %v1339
        %1341 = vmatpush1.msra.mxu0 %v1340
        %1342 = vmatprep.subr.mxu0 0.0
        %v1343 = vand.u32 %v1163, 4294901760
        %v1344 = vsub.f32 %v1163, %v1343
        %1345 = vmatpush1.msra.mxu0 %v1344
        %1346 = vmatprep.subr.mxu0 0.0
        %1347 = vmatpush1.msra.mxu0 0.0
        %1348 = vmatprep.subr.mxu0 0.0
        %1349 = vmatpush1.msra.mxu0 0.0
        %1350 = vmatprep.subr.mxu0 0.0
        %1351 = vmatpush1.msra.mxu0 0.0
        %1352 = vmatprep.subr.mxu0 0.0
        %1353 = vmatpush1.msra.mxu0 0.0
        %1354 = vmatprep.subr.mxu0 0.0
        %1355 = vmatpush1.msra.mxu0 0.0
        %1356 = vmatprep.subr.mxu0 0.0
        %1357 = vmatpush1.msra.mxu0 0.0
        %1358 = vmatprep.subr.mxu0 0.0
        %1359 = vmatpush1.msra.mxu0 0.0
        %1360 = vmatprep.subr.mxu0 0.0
        %1361 = vmatpush1.msra.mxu0 0.0
        %1362 = vmatprep.subr.mxu0 0.0
        %1363 = vmatpush1.msra.mxu0 0.0
        %1364 = vmatprep.subr.mxu0 0.0
        %1365 = vmatpush1.msra.mxu0 0.0
        %1366 = vmatprep.subr.mxu0 0.0
        %1367 = vmatpush1.msra.mxu0 0.0
        %1368 = vmatprep.subr.mxu0 0.0
        %1369 = vmatpush1.msra.mxu0 0.0
        %1370 = vmatprep.subr.mxu0 0.0
        %1371 = vmatpush1.msra.mxu0 0.0
        %1372 = vmatprep.subr.mxu0 0.0
        %1373 = vmatpush1.msra.mxu0 0.0
        %1374 = vmatprep.subr.mxu0 0.0
        %1375 = vmatpush1.msra.mxu0 0.0
        %1376 = vmatprep.subr.mxu0 0.0
        %1377 = vmatpush1.msra.mxu0 0.0
        %1378 = vmatprep.subr.mxu0 0.0
        %1379 = vmatpush1.msra.mxu0 0.0
        %1380 = vmatprep.subr.mxu0 0.0
        %1381 = vmatpush1.msra.mxu0 0.0
        %1382 = vmatprep.subr.mxu0 0.0
        %1383 = vmatpush1.msra.mxu0 0.0
        %1384 = vmatprep.subr.mxu0 0.0
        %1385 = vmatpush1.msra.mxu0 0.0
        %1386 = vmatprep.subr.mxu0 0.0
        %1387 = vmatpush1.msra.mxu0 0.0
        %1388 = vmatprep.subr.mxu0 0.0
        %1389 = vmatpush1.msra.mxu0 0.0
        %1390 = vmatprep.subr.mxu0 0.0
        %1391 = vmatpush1.msra.mxu0 0.0
        %1392 = vmatprep.subr.mxu0 0.0
        %1393 = vmatpush1.msra.mxu0 0.0
        %1394 = vmatprep.subr.mxu0 0.0
        %1395 = vmatpush1.msra.mxu0 0.0
        %1396 = vmatprep.subr.mxu0 0.0
        %1397 = vmatpush1.msra.mxu0 0.0
        %1398 = vmatprep.subr.mxu0 0.0
        %1399 = vmatpush1.msra.mxu0 0.0
        %1400 = vmatprep.subr.mxu0 0.0
        %1401 = vmatpush1.msra.mxu0 0.0
        %1402 = vmatprep.subr.mxu0 0.0
        %1403 = vmatpush1.msra.mxu0 0.0
        %1404 = vmatprep.subr.mxu0 0.0
        %1405 = vmatpush1.msra.mxu0 0.0
        %1406 = vmatprep.mubr.f32.mxu0 0.0
        %v1407 = vand.u32 %v134, 4294901760
        %v1408 = vsub.f32 %v134, %v1407
        %1409 = vmatmul.mubr.f32.gmra.mrb[0].mxu0 %v1408
        %v1410 = vpop.f32.mrb[0].mxu0
        %v1411 = vadd.f32 %v1329, %v1410
        %v1412 = vpop.f32.mrb[0].mxu0
        %1413 = vmatprep.mubr.f32.mxu0 0.0
        %v1414 = vand.u32 %v137, 4294901760
        %v1415 = vsub.f32 %v137, %v1414
        %1416 = vmatmul.mubr.f32.gmra.mrb[0].mxu0 %v1415
        %v1417 = vpop.f32.mrb[0].mxu0
        %v1418 = vadd.f32 %v1335, %v1417
        %v1419 = vpop.f32.mrb[0].mxu0
        %1420 = vdwg.mxu0
        %1421 = vmatprep.subr.mxu0 0.0
        %v1422 = vand.u32 %v1162, 4294901760
        %1423 = vmatpush1.msra.mxu0 %v1422
        %1424 = vmatprep.subr.mxu0 0.0
        %v1425 = vand.u32 %v1163, 4294901760
        %1426 = vmatpush1.msra.mxu0 %v1425
        %1427 = vmatprep.subr.mxu0 0.0
        %1428 = vmatpush1.msra.mxu0 0.0
        %1429 = vmatprep.subr.mxu0 0.0
        %1430 = vmatpush1.msra.mxu0 0.0
        %1431 = vmatprep.subr.mxu0 0.0
        %1432 = vmatpush1.msra.mxu0 0.0
        %1433 = vmatprep.subr.mxu0 0.0
        %1434 = vmatpush1.msra.mxu0 0.0
        %1435 = vmatprep.subr.mxu0 0.0
        %1436 = vmatpush1.msra.mxu0 0.0
        %1437 = vmatprep.subr.mxu0 0.0
        %1438 = vmatpush1.msra.mxu0 0.0
        %1439 = vmatprep.subr.mxu0 0.0
        %1440 = vmatpush1.msra.mxu0 0.0
        %1441 = vmatprep.subr.mxu0 0.0
        %1442 = vmatpush1.msra.mxu0 0.0
        %1443 = vmatprep.subr.mxu0 0.0
        %1444 = vmatpush1.msra.mxu0 0.0
        %1445 = vmatprep.subr.mxu0 0.0
        %1446 = vmatpush1.msra.mxu0 0.0
        %1447 = vmatprep.subr.mxu0 0.0
        %1448 = vmatpush1.msra.mxu0 0.0
        %1449 = vmatprep.subr.mxu0 0.0
        %1450 = vmatpush1.msra.mxu0 0.0
        %1451 = vmatprep.subr.mxu0 0.0
        %1452 = vmatpush1.msra.mxu0 0.0
        %1453 = vmatprep.subr.mxu0 0.0
        %1454 = vmatpush1.msra.mxu0 0.0
        %1455 = vmatprep.subr.mxu0 0.0
        %1456 = vmatpush1.msra.mxu0 0.0
        %1457 = vmatprep.subr.mxu0 0.0
        %1458 = vmatpush1.msra.mxu0 0.0
        %1459 = vmatprep.subr.mxu0 0.0
        %1460 = vmatpush1.msra.mxu0 0.0
        %1461 = vmatprep.subr.mxu0 0.0
        %1462 = vmatpush1.msra.mxu0 0.0
        %1463 = vmatprep.subr.mxu0 0.0
        %1464 = vmatpush1.msra.mxu0 0.0
        %1465 = vmatprep.subr.mxu0 0.0
        %1466 = vmatpush1.msra.mxu0 0.0
        %1467 = vmatprep.subr.mxu0 0.0
        %1468 = vmatpush1.msra.mxu0 0.0
        %1469 = vmatprep.subr.mxu0 0.0
        %1470 = vmatpush1.msra.mxu0 0.0
        %1471 = vmatprep.subr.mxu0 0.0
        %1472 = vmatpush1.msra.mxu0 0.0
        %1473 = vmatprep.subr.mxu0 0.0
        %1474 = vmatpush1.msra.mxu0 0.0
        %1475 = vmatprep.subr.mxu0 0.0
        %1476 = vmatpush1.msra.mxu0 0.0
        %1477 = vmatprep.subr.mxu0 0.0
        %1478 = vmatpush1.msra.mxu0 0.0
        %1479 = vmatprep.subr.mxu0 0.0
        %1480 = vmatpush1.msra.mxu0 0.0
        %1481 = vmatprep.subr.mxu0 0.0
        %1482 = vmatpush1.msra.mxu0 0.0
        %1483 = vmatprep.subr.mxu0 0.0
        %1484 = vmatpush1.msra.mxu0 0.0
        %1485 = vmatprep.subr.mxu0 0.0
        %1486 = vmatpush1.msra.mxu0 0.0
        %1487 = vmatprep.mubr.f32.mxu0 0.0
        %v1488 = vand.u32 %v134, 4294901760
        %v1489 = vsub.f32 %v134, %v1488
        %v1490 = vand.u32 %v1489, 4294901760
        %1491 = vmatmul.mubr.f32.gmra.mrb[0].mxu0 %v1490
        %v1492 = vpop.f32.mrb[0].mxu0
        %v1493 = vadd.f32 %v1411, %v1492
        %v1494 = vpop.f32.mrb[0].mxu0
        %1495 = vmatprep.mubr.f32.mxu0 0.0
        %v1496 = vand.u32 %v137, 4294901760
        %v1497 = vsub.f32 %v137, %v1496
        %v1498 = vand.u32 %v1497, 4294901760
        %1499 = vmatmul.mubr.f32.gmra.mrb[0].mxu0 %v1498
        %v1500 = vpop.f32.mrb[0].mxu0
        %v1501 = vadd.f32 %v1418, %v1500
        %v1502 = vpop.f32.mrb[0].mxu0
        %1503 = vdwg.mxu0
        %1504 = vmatprep.subr.mxu0 0.0
        %v1505 = vand.u32 %v1162, 4294901760
        %v1506 = vsub.f32 %v1162, %v1505
        %v1507 = vand.u32 %v1506, 4294901760
        %1508 = vmatpush1.msra.mxu0 %v1507
        %1509 = vmatprep.subr.mxu0 0.0
        %v1510 = vand.u32 %v1163, 4294901760
        %v1511 = vsub.f32 %v1163, %v1510
        %v1512 = vand.u32 %v1511, 4294901760
        %1513 = vmatpush1.msra.mxu0 %v1512
        %1514 = vmatprep.subr.mxu0 0.0
        %1515 = vmatpush1.msra.mxu0 0.0
        %1516 = vmatprep.subr.mxu0 0.0
        %1517 = vmatpush1.msra.mxu0 0.0
        %1518 = vmatprep.subr.mxu0 0.0
        %1519 = vmatpush1.msra.mxu0 0.0
        %1520 = vmatprep.subr.mxu0 0.0
        %1521 = vmatpush1.msra.mxu0 0.0
        %1522 = vmatprep.subr.mxu0 0.0
        %1523 = vmatpush1.msra.mxu0 0.0
        %1524 = vmatprep.subr.mxu0 0.0
        %1525 = vmatpush1.msra.mxu0 0.0
        %1526 = vmatprep.subr.mxu0 0.0
        %1527 = vmatpush1.msra.mxu0 0.0
        %1528 = vmatprep.subr.mxu0 0.0
        %1529 = vmatpush1.msra.mxu0 0.0
        %1530 = vmatprep.subr.mxu0 0.0
        %1531 = vmatpush1.msra.mxu0 0.0
        %1532 = vmatprep.subr.mxu0 0.0
        %1533 = vmatpush1.msra.mxu0 0.0
        %1534 = vmatprep.subr.mxu0 0.0
        %1535 = vmatpush1.msra.mxu0 0.0
        %1536 = vmatprep.subr.mxu0 0.0
        %1537 = vmatpush1.msra.mxu0 0.0
        %1538 = vmatprep.subr.mxu0 0.0
        %1539 = vmatpush1.msra.mxu0 0.0
        %1540 = vmatprep.subr.mxu0 0.0
        %1541 = vmatpush1.msra.mxu0 0.0
        %1542 = vmatprep.subr.mxu0 0.0
        %1543 = vmatpush1.msra.mxu0 0.0
        %1544 = vmatprep.subr.mxu0 0.0
        %1545 = vmatpush1.msra.mxu0 0.0
        %1546 = vmatprep.subr.mxu0 0.0
        %1547 = vmatpush1.msra.mxu0 0.0
        %1548 = vmatprep.subr.mxu0 0.0
        %1549 = vmatpush1.msra.mxu0 0.0
        %1550 = vmatprep.subr.mxu0 0.0
        %1551 = vmatpush1.msra.mxu0 0.0
        %1552 = vmatprep.subr.mxu0 0.0
        %1553 = vmatpush1.msra.mxu0 0.0
        %1554 = vmatprep.subr.mxu0 0.0
        %1555 = vmatpush1.msra.mxu0 0.0
        %1556 = vmatprep.subr.mxu0 0.0
        %1557 = vmatpush1.msra.mxu0 0.0
        %1558 = vmatprep.subr.mxu0 0.0
        %1559 = vmatpush1.msra.mxu0 0.0
        %1560 = vmatprep.subr.mxu0 0.0
        %1561 = vmatpush1.msra.mxu0 0.0
        %1562 = vmatprep.subr.mxu0 0.0
        %1563 = vmatpush1.msra.mxu0 0.0
        %1564 = vmatprep.subr.mxu0 0.0
        %1565 = vmatpush1.msra.mxu0 0.0
        %1566 = vmatprep.subr.mxu0 0.0
        %1567 = vmatpush1.msra.mxu0 0.0
        %1568 = vmatprep.subr.mxu0 0.0
        %1569 = vmatpush1.msra.mxu0 0.0
        %1570 = vmatprep.subr.mxu0 0.0
        %1571 = vmatpush1.msra.mxu0 0.0
        %1572 = vmatprep.subr.mxu0 0.0
        %1573 = vmatpush1.msra.mxu0 0.0
        %1574 = vmatprep.mubr.f32.mxu0 0.0
        %v1575 = vand.u32 %v134, 4294901760
        %1576 = vmatmul.mubr.f32.gmra.mrb[0].mxu0 %v1575
        %v1577 = vpop.f32.mrb[0].mxu0
        %v1578 = vadd.f32 %v1493, %v1577
        %v1579 = vpop.f32.mrb[0].mxu0
        %1580 = vmatprep.mubr.f32.mxu0 0.0
        %v1581 = vand.u32 %v137, 4294901760
        %1582 = vmatmul.mubr.f32.gmra.mrb[0].mxu0 %v1581
        %v1583 = vpop.f32.mrb[0].mxu0
        %v1584 = vadd.f32 %v1501, %v1583
        %v1585 = vpop.f32.mrb[0].mxu0
        %1586 = vdwg.mxu0
        %1587 = vmatprep.subr.mxu0 0.0
        %v1588 = vand.u32 %v1162, 4294901760
        %1589 = vmatpush1.msra.mxu0 %v1588
        %1590 = vmatprep.subr.mxu0 0.0
        %v1591 = vand.u32 %v1163, 4294901760
        %1592 = vmatpush1.msra.mxu0 %v1591
        %1593 = vmatprep.subr.mxu0 0.0
        %1594 = vmatpush1.msra.mxu0 0.0
        %1595 = vmatprep.subr.mxu0 0.0
        %1596 = vmatpush1.msra.mxu0 0.0
        %1597 = vmatprep.subr.mxu0 0.0
        %1598 = vmatpush1.msra.mxu0 0.0
        %1599 = vmatprep.subr.mxu0 0.0
        %1600 = vmatpush1.msra.mxu0 0.0
        %1601 = vmatprep.subr.mxu0 0.0
        %1602 = vmatpush1.msra.mxu0 0.0
        %1603 = vmatprep.subr.mxu0 0.0
        %1604 = vmatpush1.msra.mxu0 0.0
        %1605 = vmatprep.subr.mxu0 0.0
        %1606 = vmatpush1.msra.mxu0 0.0
        %1607 = vmatprep.subr.mxu0 0.0
        %1608 = vmatpush1.msra.mxu0 0.0
        %1609 = vmatprep.subr.mxu0 0.0
        %1610 = vmatpush1.msra.mxu0 0.0
        %1611 = vmatprep.subr.mxu0 0.0
        %1612 = vmatpush1.msra.mxu0 0.0
        %1613 = vmatprep.subr.mxu0 0.0
        %1614 = vmatpush1.msra.mxu0 0.0
        %1615 = vmatprep.subr.mxu0 0.0
        %1616 = vmatpush1.msra.mxu0 0.0
        %1617 = vmatprep.subr.mxu0 0.0
        %1618 = vmatpush1.msra.mxu0 0.0
        %1619 = vmatprep.subr.mxu0 0.0
        %1620 = vmatpush1.msra.mxu0 0.0
        %1621 = vmatprep.subr.mxu0 0.0
        %1622 = vmatpush1.msra.mxu0 0.0
        %1623 = vmatprep.subr.mxu0 0.0
        %1624 = vmatpush1.msra.mxu0 0.0
        %1625 = vmatprep.subr.mxu0 0.0
        %1626 = vmatpush1.msra.mxu0 0.0
        %1627 = vmatprep.subr.mxu0 0.0
        %1628 = vmatpush1.msra.mxu0 0.0
        %1629 = vmatprep.subr.mxu0 0.0
        %1630 = vmatpush1.msra.mxu0 0.0
        %1631 = vmatprep.subr.mxu0 0.0
        %1632 = vmatpush1.msra.mxu0 0.0
        %1633 = vmatprep.subr.mxu0 0.0
        %1634 = vmatpush1.msra.mxu0 0.0
        %1635 = vmatprep.subr.mxu0 0.0
        %1636 = vmatpush1.msra.mxu0 0.0
        %1637 = vmatprep.subr.mxu0 0.0
        %1638 = vmatpush1.msra.mxu0 0.0
        %1639 = vmatprep.subr.mxu0 0.0
        %1640 = vmatpush1.msra.mxu0 0.0
        %1641 = vmatprep.subr.mxu0 0.0
        %1642 = vmatpush1.msra.mxu0 0.0
        %1643 = vmatprep.subr.mxu0 0.0
        %1644 = vmatpush1.msra.mxu0 0.0
        %1645 = vmatprep.subr.mxu0 0.0
        %1646 = vmatpush1.msra.mxu0 0.0
        %1647 = vmatprep.subr.mxu0 0.0
        %1648 = vmatpush1.msra.mxu0 0.0
        %1649 = vmatprep.subr.mxu0 0.0
        %1650 = vmatpush1.msra.mxu0 0.0
        %1651 = vmatprep.subr.mxu0 0.0
        %1652 = vmatpush1.msra.mxu0 0.0
        %1653 = vmatprep.mubr.f32.mxu0 0.0
        %v1654 = vand.u32 %v134, 4294901760
        %1655 = vmatmul.mubr.f32.gmra.mrb[0].mxu0 %v1654
        %v1656 = vpop.f32.mrb[0].mxu0
        %v1657 = vadd.f32 %v1578, %v1656
        %v1658 = vpop.f32.mrb[0].mxu0
        %1659 = vmatprep.mubr.f32.mxu0 0.0
        %v1660 = vand.u32 %v137, 4294901760
        %1661 = vmatmul.mubr.f32.gmra.mrb[0].mxu0 %v1660
        %v1662 = vpop.f32.mrb[0].mxu0
        %v1663 = vadd.f32 %v1584, %v1662
        %v1664 = vpop.f32.mrb[0].mxu0
        %1665 = vdwg.mxu0
        %s1666 = scalar_lea.vmem %s110, 8 [#allocation2]
        %1667 = vst.msk [vmem:[%s1666] sm:$0xff] %vm641, %v1657
        %1668 = vst.msk [vmem:[%s1666 + $0x20] sm:$0xff] %vm641, %v1663
        %1669 = vmatprep.subr.mxu0 0.0
        %v1670 = vand.u32 %v1162, 4294901760
        %1671 = vmatpush1.msra.mxu0 %v1670
        %1672 = vmatprep.subr.mxu0 0.0
        %v1673 = vand.u32 %v1163, 4294901760
        %1674 = vmatpush1.msra.mxu0 %v1673
        %1675 = vmatprep.subr.mxu0 0.0
        %1676 = vmatpush1.msra.mxu0 0.0
        %1677 = vmatprep.subr.mxu0 0.0
        %1678 = vmatpush1.msra.mxu0 0.0
        %1679 = vmatprep.subr.mxu0 0.0
        %1680 = vmatpush1.msra.mxu0 0.0
        %1681 = vmatprep.subr.mxu0 0.0
        %1682 = vmatpush1.msra.mxu0 0.0
        %1683 = vmatprep.subr.mxu0 0.0
        %1684 = vmatpush1.msra.mxu0 0.0
        %1685 = vmatprep.subr.mxu0 0.0
        %1686 = vmatpush1.msra.mxu0 0.0
        %1687 = vmatprep.subr.mxu0 0.0
        %1688 = vmatpush1.msra.mxu0 0.0
        %1689 = vmatprep.subr.mxu0 0.0
        %1690 = vmatpush1.msra.mxu0 0.0
        %1691 = vmatprep.subr.mxu0 0.0
        %1692 = vmatpush1.msra.mxu0 0.0
        %1693 = vmatprep.subr.mxu0 0.0
        %1694 = vmatpush1.msra.mxu0 0.0
        %1695 = vmatprep.subr.mxu0 0.0
        %1696 = vmatpush1.msra.mxu0 0.0
        %1697 = vmatprep.subr.mxu0 0.0
        %1698 = vmatpush1.msra.mxu0 0.0
        %1699 = vmatprep.subr.mxu0 0.0
        %1700 = vmatpush1.msra.mxu0 0.0
        %1701 = vmatprep.subr.mxu0 0.0
        %1702 = vmatpush1.msra.mxu0 0.0
        %1703 = vmatprep.subr.mxu0 0.0
        %1704 = vmatpush1.msra.mxu0 0.0
        %1705 = vmatprep.subr.mxu0 0.0
        %1706 = vmatpush1.msra.mxu0 0.0
        %1707 = vmatprep.subr.mxu0 0.0
        %1708 = vmatpush1.msra.mxu0 0.0
        %1709 = vmatprep.subr.mxu0 0.0
        %1710 = vmatpush1.msra.mxu0 0.0
        %1711 = vmatprep.subr.mxu0 0.0
        %1712 = vmatpush1.msra.mxu0 0.0
        %1713 = vmatprep.subr.mxu0 0.0
        %1714 = vmatpush1.msra.mxu0 0.0
        %1715 = vmatprep.subr.mxu0 0.0
        %1716 = vmatpush1.msra.mxu0 0.0
        %1717 = vmatprep.subr.mxu0 0.0
        %1718 = vmatpush1.msra.mxu0 0.0
        %1719 = vmatprep.subr.mxu0 0.0
        %1720 = vmatpush1.msra.mxu0 0.0
        %1721 = vmatprep.subr.mxu0 0.0
        %1722 = vmatpush1.msra.mxu0 0.0
        %1723 = vmatprep.subr.mxu0 0.0
        %1724 = vmatpush1.msra.mxu0 0.0
        %1725 = vmatprep.subr.mxu0 0.0
        %1726 = vmatpush1.msra.mxu0 0.0
        %1727 = vmatprep.subr.mxu0 0.0
        %1728 = vmatpush1.msra.mxu0 0.0
        %1729 = vmatprep.subr.mxu0 0.0
        %1730 = vmatpush1.msra.mxu0 0.0
        %1731 = vmatprep.subr.mxu0 0.0
        %1732 = vmatpush1.msra.mxu0 0.0
        %1733 = vmatprep.subr.mxu0 0.0
        %1734 = vmatpush1.msra.mxu0 0.0
        %1735 = vmatprep.mubr.f32.mxu0 0.0
        %v1736 = vand.u32 %v648, 4294901760
        %v1737 = vsub.f32 %v648, %v1736
        %v1738 = vand.u32 %v1737, 4294901760
        %v1739 = vsub.f32 %v1737, %v1738
        %v1740 = vand.u32 %v1739, 4294901760
        %1741 = vmatmul.mubr.f32.gmra.mrb[0].mxu0 %v1740
        %v1742 = vpop.f32.mrb[0].mxu0
        %v1743 = vadd.f32 0.0, %v1742
        %v1744 = vpop.f32.mrb[0].mxu0
        %1745 = vmatprep.mubr.f32.mxu0 0.0
        %v1746 = vand.u32 %v650, 4294901760
        %v1747 = vsub.f32 %v650, %v1746
        %v1748 = vand.u32 %v1747, 4294901760
        %v1749 = vsub.f32 %v1747, %v1748
        %v1750 = vand.u32 %v1749, 4294901760
        %1751 = vmatmul.mubr.f32.gmra.mrb[0].mxu0 %v1750
        %v1752 = vpop.f32.mrb[0].mxu0
        %v1753 = vadd.f32 0.0, %v1752
        %v1754 = vpop.f32.mrb[0].mxu0
        %1755 = vdwg.mxu0
        %1756 = vmatprep.subr.mxu0 0.0
        %v1757 = vand.u32 %v1162, 4294901760
        %v1758 = vsub.f32 %v1162, %v1757
        %v1759 = vand.u32 %v1758, 4294901760
        %v1760 = vsub.f32 %v1758, %v1759
        %v1761 = vand.u32 %v1760, 4294901760
        %1762 = vmatpush1.msra.mxu0 %v1761
        %1763 = vmatprep.subr.mxu0 0.0
        %v1764 = vand.u32 %v1163, 4294901760
        %v1765 = vsub.f32 %v1163, %v1764
        %v1766 = vand.u32 %v1765, 4294901760
        %v1767 = vsub.f32 %v1765, %v1766
        %v1768 = vand.u32 %v1767, 4294901760
        %1769 = vmatpush1.msra.mxu0 %v1768
        %1770 = vmatprep.subr.mxu0 0.0
        %1771 = vmatpush1.msra.mxu0 0.0
        %1772 = vmatprep.subr.mxu0 0.0
        %1773 = vmatpush1.msra.mxu0 0.0
        %1774 = vmatprep.subr.mxu0 0.0
        %1775 = vmatpush1.msra.mxu0 0.0
        %1776 = vmatprep.subr.mxu0 0.0
        %1777 = vmatpush1.msra.mxu0 0.0
        %1778 = vmatprep.subr.mxu0 0.0
        %1779 = vmatpush1.msra.mxu0 0.0
        %1780 = vmatprep.subr.mxu0 0.0
        %1781 = vmatpush1.msra.mxu0 0.0
        %1782 = vmatprep.subr.mxu0 0.0
        %1783 = vmatpush1.msra.mxu0 0.0
        %1784 = vmatprep.subr.mxu0 0.0
        %1785 = vmatpush1.msra.mxu0 0.0
        %1786 = vmatprep.subr.mxu0 0.0
        %1787 = vmatpush1.msra.mxu0 0.0
        %1788 = vmatprep.subr.mxu0 0.0
        %1789 = vmatpush1.msra.mxu0 0.0
        %1790 = vmatprep.subr.mxu0 0.0
        %1791 = vmatpush1.msra.mxu0 0.0
        %1792 = vmatprep.subr.mxu0 0.0
        %1793 = vmatpush1.msra.mxu0 0.0
        %1794 = vmatprep.subr.mxu0 0.0
        %1795 = vmatpush1.msra.mxu0 0.0
        %1796 = vmatprep.subr.mxu0 0.0
        %1797 = vmatpush1.msra.mxu0 0.0
        %1798 = vmatprep.subr.mxu0 0.0
        %1799 = vmatpush1.msra.mxu0 0.0
        %1800 = vmatprep.subr.mxu0 0.0
        %1801 = vmatpush1.msra.mxu0 0.0
        %1802 = vmatprep.subr.mxu0 0.0
        %1803 = vmatpush1.msra.mxu0 0.0
        %1804 = vmatprep.subr.mxu0 0.0
        %1805 = vmatpush1.msra.mxu0 0.0
        %1806 = vmatprep.subr.mxu0 0.0
        %1807 = vmatpush1.msra.mxu0 0.0
        %1808 = vmatprep.subr.mxu0 0.0
        %1809 = vmatpush1.msra.mxu0 0.0
        %1810 = vmatprep.subr.mxu0 0.0
        %1811 = vmatpush1.msra.mxu0 0.0
        %1812 = vmatprep.subr.mxu0 0.0
        %1813 = vmatpush1.msra.mxu0 0.0
        %1814 = vmatprep.subr.mxu0 0.0
        %1815 = vmatpush1.msra.mxu0 0.0
        %1816 = vmatprep.subr.mxu0 0.0
        %1817 = vmatpush1.msra.mxu0 0.0
        %1818 = vmatprep.subr.mxu0 0.0
        %1819 = vmatpush1.msra.mxu0 0.0
        %1820 = vmatprep.subr.mxu0 0.0
        %1821 = vmatpush1.msra.mxu0 0.0
        %1822 = vmatprep.subr.mxu0 0.0
        %1823 = vmatpush1.msra.mxu0 0.0
        %1824 = vmatprep.subr.mxu0 0.0
        %1825 = vmatpush1.msra.mxu0 0.0
        %1826 = vmatprep.subr.mxu0 0.0
        %1827 = vmatpush1.msra.mxu0 0.0
        %1828 = vmatprep.subr.mxu0 0.0
        %1829 = vmatpush1.msra.mxu0 0.0
        %1830 = vmatprep.mubr.f32.mxu0 0.0
        %v1831 = vand.u32 %v648, 4294901760
        %1832 = vmatmul.mubr.f32.gmra.mrb[0].mxu0 %v1831
        %v1833 = vpop.f32.mrb[0].mxu0
        %v1834 = vadd.f32 %v1743, %v1833
        %v1835 = vpop.f32.mrb[0].mxu0
        %1836 = vmatprep.mubr.f32.mxu0 0.0
        %v1837 = vand.u32 %v650, 4294901760
        %1838 = vmatmul.mubr.f32.gmra.mrb[0].mxu0 %v1837
        %v1839 = vpop.f32.mrb[0].mxu0
        %v1840 = vadd.f32 %v1753, %v1839
        %v1841 = vpop.f32.mrb[0].mxu0
        %1842 = vdwg.mxu0
        %1843 = vmatprep.subr.mxu0 0.0
        %v1844 = vand.u32 %v1162, 4294901760
        %v1845 = vsub.f32 %v1162, %v1844
        %1846 = vmatpush1.msra.mxu0 %v1845
        %1847 = vmatprep.subr.mxu0 0.0
        %v1848 = vand.u32 %v1163, 4294901760
        %v1849 = vsub.f32 %v1163, %v1848
        %1850 = vmatpush1.msra.mxu0 %v1849
        %1851 = vmatprep.subr.mxu0 0.0
        %1852 = vmatpush1.msra.mxu0 0.0
        %1853 = vmatprep.subr.mxu0 0.0
        %1854 = vmatpush1.msra.mxu0 0.0
        %1855 = vmatprep.subr.mxu0 0.0
        %1856 = vmatpush1.msra.mxu0 0.0
        %1857 = vmatprep.subr.mxu0 0.0
        %1858 = vmatpush1.msra.mxu0 0.0
        %1859 = vmatprep.subr.mxu0 0.0
        %1860 = vmatpush1.msra.mxu0 0.0
        %1861 = vmatprep.subr.mxu0 0.0
        %1862 = vmatpush1.msra.mxu0 0.0
        %1863 = vmatprep.subr.mxu0 0.0
        %1864 = vmatpush1.msra.mxu0 0.0
        %1865 = vmatprep.subr.mxu0 0.0
        %1866 = vmatpush1.msra.mxu0 0.0
        %1867 = vmatprep.subr.mxu0 0.0
        %1868 = vmatpush1.msra.mxu0 0.0
        %1869 = vmatprep.subr.mxu0 0.0
        %1870 = vmatpush1.msra.mxu0 0.0
        %1871 = vmatprep.subr.mxu0 0.0
        %1872 = vmatpush1.msra.mxu0 0.0
        %1873 = vmatprep.subr.mxu0 0.0
        %1874 = vmatpush1.msra.mxu0 0.0
        %1875 = vmatprep.subr.mxu0 0.0
        %1876 = vmatpush1.msra.mxu0 0.0
        %1877 = vmatprep.subr.mxu0 0.0
        %1878 = vmatpush1.msra.mxu0 0.0
        %1879 = vmatprep.subr.mxu0 0.0
        %1880 = vmatpush1.msra.mxu0 0.0
        %1881 = vmatprep.subr.mxu0 0.0
        %1882 = vmatpush1.msra.mxu0 0.0
        %1883 = vmatprep.subr.mxu0 0.0
        %1884 = vmatpush1.msra.mxu0 0.0
        %1885 = vmatprep.subr.mxu0 0.0
        %1886 = vmatpush1.msra.mxu0 0.0
        %1887 = vmatprep.subr.mxu0 0.0
        %1888 = vmatpush1.msra.mxu0 0.0
        %1889 = vmatprep.subr.mxu0 0.0
        %1890 = vmatpush1.msra.mxu0 0.0
        %1891 = vmatprep.subr.mxu0 0.0
        %1892 = vmatpush1.msra.mxu0 0.0
        %1893 = vmatprep.subr.mxu0 0.0
        %1894 = vmatpush1.msra.mxu0 0.0
        %1895 = vmatprep.subr.mxu0 0.0
        %1896 = vmatpush1.msra.mxu0 0.0
        %1897 = vmatprep.subr.mxu0 0.0
        %1898 = vmatpush1.msra.mxu0 0.0
        %1899 = vmatprep.subr.mxu0 0.0
        %1900 = vmatpush1.msra.mxu0 0.0
        %1901 = vmatprep.subr.mxu0 0.0
        %1902 = vmatpush1.msra.mxu0 0.0
        %1903 = vmatprep.subr.mxu0 0.0
        %1904 = vmatpush1.msra.mxu0 0.0
        %1905 = vmatprep.subr.mxu0 0.0
        %1906 = vmatpush1.msra.mxu0 0.0
        %1907 = vmatprep.subr.mxu0 0.0
        %1908 = vmatpush1.msra.mxu0 0.0
        %1909 = vmatprep.subr.mxu0 0.0
        %1910 = vmatpush1.msra.mxu0 0.0
        %1911 = vmatprep.mubr.f32.mxu0 0.0
        %v1912 = vand.u32 %v648, 4294901760
        %v1913 = vsub.f32 %v648, %v1912
        %1914 = vmatmul.mubr.f32.gmra.mrb[0].mxu0 %v1913
        %v1915 = vpop.f32.mrb[0].mxu0
        %v1916 = vadd.f32 %v1834, %v1915
        %v1917 = vpop.f32.mrb[0].mxu0
        %1918 = vmatprep.mubr.f32.mxu0 0.0
        %v1919 = vand.u32 %v650, 4294901760
        %v1920 = vsub.f32 %v650, %v1919
        %1921 = vmatmul.mubr.f32.gmra.mrb[0].mxu0 %v1920
        %v1922 = vpop.f32.mrb[0].mxu0
        %v1923 = vadd.f32 %v1840, %v1922
        %v1924 = vpop.f32.mrb[0].mxu0
        %1925 = vdwg.mxu0
        %1926 = vmatprep.subr.mxu0 0.0
        %v1927 = vand.u32 %v1162, 4294901760
        %1928 = vmatpush1.msra.mxu0 %v1927
        %1929 = vmatprep.subr.mxu0 0.0
        %v1930 = vand.u32 %v1163, 4294901760
        %1931 = vmatpush1.msra.mxu0 %v1930
        %1932 = vmatprep.subr.mxu0 0.0
        %1933 = vmatpush1.msra.mxu0 0.0
        %1934 = vmatprep.subr.mxu0 0.0
        %1935 = vmatpush1.msra.mxu0 0.0
        %1936 = vmatprep.subr.mxu0 0.0
        %1937 = vmatpush1.msra.mxu0 0.0
        %1938 = vmatprep.subr.mxu0 0.0
        %1939 = vmatpush1.msra.mxu0 0.0
        %1940 = vmatprep.subr.mxu0 0.0
        %1941 = vmatpush1.msra.mxu0 0.0
        %1942 = vmatprep.subr.mxu0 0.0
        %1943 = vmatpush1.msra.mxu0 0.0
        %1944 = vmatprep.subr.mxu0 0.0
        %1945 = vmatpush1.msra.mxu0 0.0
        %1946 = vmatprep.subr.mxu0 0.0
        %1947 = vmatpush1.msra.mxu0 0.0
        %1948 = vmatprep.subr.mxu0 0.0
        %1949 = vmatpush1.msra.mxu0 0.0
        %1950 = vmatprep.subr.mxu0 0.0
        %1951 = vmatpush1.msra.mxu0 0.0
        %1952 = vmatprep.subr.mxu0 0.0
        %1953 = vmatpush1.msra.mxu0 0.0
        %1954 = vmatprep.subr.mxu0 0.0
        %1955 = vmatpush1.msra.mxu0 0.0
        %1956 = vmatprep.subr.mxu0 0.0
        %1957 = vmatpush1.msra.mxu0 0.0
        %1958 = vmatprep.subr.mxu0 0.0
        %1959 = vmatpush1.msra.mxu0 0.0
        %1960 = vmatprep.subr.mxu0 0.0
        %1961 = vmatpush1.msra.mxu0 0.0
        %1962 = vmatprep.subr.mxu0 0.0
        %1963 = vmatpush1.msra.mxu0 0.0
        %1964 = vmatprep.subr.mxu0 0.0
        %1965 = vmatpush1.msra.mxu0 0.0
        %1966 = vmatprep.subr.mxu0 0.0
        %1967 = vmatpush1.msra.mxu0 0.0
        %1968 = vmatprep.subr.mxu0 0.0
        %1969 = vmatpush1.msra.mxu0 0.0
        %1970 = vmatprep.subr.mxu0 0.0
        %1971 = vmatpush1.msra.mxu0 0.0
        %1972 = vmatprep.subr.mxu0 0.0
        %1973 = vmatpush1.msra.mxu0 0.0
        %1974 = vmatprep.subr.mxu0 0.0
        %1975 = vmatpush1.msra.mxu0 0.0
        %1976 = vmatprep.subr.mxu0 0.0
        %1977 = vmatpush1.msra.mxu0 0.0
        %1978 = vmatprep.subr.mxu0 0.0
        %1979 = vmatpush1.msra.mxu0 0.0
        %1980 = vmatprep.subr.mxu0 0.0
        %1981 = vmatpush1.msra.mxu0 0.0
        %1982 = vmatprep.subr.mxu0 0.0
        %1983 = vmatpush1.msra.mxu0 0.0
        %1984 = vmatprep.subr.mxu0 0.0
        %1985 = vmatpush1.msra.mxu0 0.0
        %1986 = vmatprep.subr.mxu0 0.0
        %1987 = vmatpush1.msra.mxu0 0.0
        %1988 = vmatprep.subr.mxu0 0.0
        %1989 = vmatpush1.msra.mxu0 0.0
        %1990 = vmatprep.subr.mxu0 0.0
        %1991 = vmatpush1.msra.mxu0 0.0
        %1992 = vmatprep.mubr.f32.mxu0 0.0
        %v1993 = vand.u32 %v648, 4294901760
        %v1994 = vsub.f32 %v648, %v1993
        %v1995 = vand.u32 %v1994, 4294901760
        %1996 = vmatmul.mubr.f32.gmra.mrb[0].mxu0 %v1995
        %v1997 = vpop.f32.mrb[0].mxu0
        %v1998 = vadd.f32 %v1916, %v1997
        %v1999 = vpop.f32.mrb[0].mxu0
        %2000 = vmatprep.mubr.f32.mxu0 0.0
        %v2001 = vand.u32 %v650, 4294901760
        %v2002 = vsub.f32 %v650, %v2001
        %v2003 = vand.u32 %v2002, 4294901760
        %2004 = vmatmul.mubr.f32.gmra.mrb[0].mxu0 %v2003
        %v2005 = vpop.f32.mrb[0].mxu0
        %v2006 = vadd.f32 %v1923, %v2005
        %v2007 = vpop.f32.mrb[0].mxu0
        %2008 = vdwg.mxu0
        %2009 = vmatprep.subr.mxu0 0.0
        %v2010 = vand.u32 %v1162, 4294901760
        %v2011 = vsub.f32 %v1162, %v2010
        %v2012 = vand.u32 %v2011, 4294901760
        %2013 = vmatpush1.msra.mxu0 %v2012
        %2014 = vmatprep.subr.mxu0 0.0
        %v2015 = vand.u32 %v1163, 4294901760
        %v2016 = vsub.f32 %v1163, %v2015
        %v2017 = vand.u32 %v2016, 4294901760
        %2018 = vmatpush1.msra.mxu0 %v2017
        %2019 = vmatprep.subr.mxu0 0.0
        %2020 = vmatpush1.msra.mxu0 0.0
        %2021 = vmatprep.subr.mxu0 0.0
        %2022 = vmatpush1.msra.mxu0 0.0
        %2023 = vmatprep.subr.mxu0 0.0
        %2024 = vmatpush1.msra.mxu0 0.0
        %2025 = vmatprep.subr.mxu0 0.0
        %2026 = vmatpush1.msra.mxu0 0.0
        %2027 = vmatprep.subr.mxu0 0.0
        %2028 = vmatpush1.msra.mxu0 0.0
        %2029 = vmatprep.subr.mxu0 0.0
        %2030 = vmatpush1.msra.mxu0 0.0
        %2031 = vmatprep.subr.mxu0 0.0
        %2032 = vmatpush1.msra.mxu0 0.0
        %2033 = vmatprep.subr.mxu0 0.0
        %2034 = vmatpush1.msra.mxu0 0.0
        %2035 = vmatprep.subr.mxu0 0.0
        %2036 = vmatpush1.msra.mxu0 0.0
        %2037 = vmatprep.subr.mxu0 0.0
        %2038 = vmatpush1.msra.mxu0 0.0
        %2039 = vmatprep.subr.mxu0 0.0
        %2040 = vmatpush1.msra.mxu0 0.0
        %2041 = vmatprep.subr.mxu0 0.0
        %2042 = vmatpush1.msra.mxu0 0.0
        %2043 = vmatprep.subr.mxu0 0.0
        %2044 = vmatpush1.msra.mxu0 0.0
        %2045 = vmatprep.subr.mxu0 0.0
        %2046 = vmatpush1.msra.mxu0 0.0
        %2047 = vmatprep.subr.mxu0 0.0
        %2048 = vmatpush1.msra.mxu0 0.0
        %2049 = vmatprep.subr.mxu0 0.0
        %2050 = vmatpush1.msra.mxu0 0.0
        %2051 = vmatprep.subr.mxu0 0.0
        %2052 = vmatpush1.msra.mxu0 0.0
        %2053 = vmatprep.subr.mxu0 0.0
        %2054 = vmatpush1.msra.mxu0 0.0
        %2055 = vmatprep.subr.mxu0 0.0
        %2056 = vmatpush1.msra.mxu0 0.0
        %2057 = vmatprep.subr.mxu0 0.0
        %2058 = vmatpush1.msra.mxu0 0.0
        %2059 = vmatprep.subr.mxu0 0.0
        %2060 = vmatpush1.msra.mxu0 0.0
        %2061 = vmatprep.subr.mxu0 0.0
        %2062 = vmatpush1.msra.mxu0 0.0
        %2063 = vmatprep.subr.mxu0 0.0
        %2064 = vmatpush1.msra.mxu0 0.0
        %2065 = vmatprep.subr.mxu0 0.0
        %2066 = vmatpush1.msra.mxu0 0.0
        %2067 = vmatprep.subr.mxu0 0.0
        %2068 = vmatpush1.msra.mxu0 0.0
        %2069 = vmatprep.subr.mxu0 0.0
        %2070 = vmatpush1.msra.mxu0 0.0
        %2071 = vmatprep.subr.mxu0 0.0
        %2072 = vmatpush1.msra.mxu0 0.0
        %2073 = vmatprep.subr.mxu0 0.0
        %2074 = vmatpush1.msra.mxu0 0.0
        %2075 = vmatprep.subr.mxu0 0.0
        %2076 = vmatpush1.msra.mxu0 0.0
        %2077 = vmatprep.subr.mxu0 0.0
        %2078 = vmatpush1.msra.mxu0 0.0
        %2079 = vmatprep.mubr.f32.mxu0 0.0
        %v2080 = vand.u32 %v648, 4294901760
        %2081 = vmatmul.mubr.f32.gmra.mrb[0].mxu0 %v2080
        %v2082 = vpop.f32.mrb[0].mxu0
        %v2083 = vadd.f32 %v1998, %v2082
        %v2084 = vpop.f32.mrb[0].mxu0
        %2085 = vmatprep.mubr.f32.mxu0 0.0
        %v2086 = vand.u32 %v650, 4294901760
        %2087 = vmatmul.mubr.f32.gmra.mrb[0].mxu0 %v2086
        %v2088 = vpop.f32.mrb[0].mxu0
        %v2089 = vadd.f32 %v2006, %v2088
        %v2090 = vpop.f32.mrb[0].mxu0
        %2091 = vdwg.mxu0
        %2092 = vmatprep.subr.mxu0 0.0
        %v2093 = vand.u32 %v1162, 4294901760
        %2094 = vmatpush1.msra.mxu0 %v2093
        %2095 = vmatprep.subr.mxu0 0.0
        %v2096 = vand.u32 %v1163, 4294901760
        %2097 = vmatpush1.msra.mxu0 %v2096
        %2098 = vmatprep.subr.mxu0 0.0
        %2099 = vmatpush1.msra.mxu0 0.0
        %2100 = vmatprep.subr.mxu0 0.0
        %2101 = vmatpush1.msra.mxu0 0.0
        %2102 = vmatprep.subr.mxu0 0.0
        %2103 = vmatpush1.msra.mxu0 0.0
        %2104 = vmatprep.subr.mxu0 0.0
        %2105 = vmatpush1.msra.mxu0 0.0
        %2106 = vmatprep.subr.mxu0 0.0
        %2107 = vmatpush1.msra.mxu0 0.0
        %2108 = vmatprep.subr.mxu0 0.0
        %2109 = vmatpush1.msra.mxu0 0.0
        %2110 = vmatprep.subr.mxu0 0.0
        %2111 = vmatpush1.msra.mxu0 0.0
        %2112 = vmatprep.subr.mxu0 0.0
        %2113 = vmatpush1.msra.mxu0 0.0
        %2114 = vmatprep.subr.mxu0 0.0
        %2115 = vmatpush1.msra.mxu0 0.0
        %2116 = vmatprep.subr.mxu0 0.0
        %2117 = vmatpush1.msra.mxu0 0.0
        %2118 = vmatprep.subr.mxu0 0.0
        %2119 = vmatpush1.msra.mxu0 0.0
        %2120 = vmatprep.subr.mxu0 0.0
        %2121 = vmatpush1.msra.mxu0 0.0
        %2122 = vmatprep.subr.mxu0 0.0
        %2123 = vmatpush1.msra.mxu0 0.0
        %2124 = vmatprep.subr.mxu0 0.0
        %2125 = vmatpush1.msra.mxu0 0.0
        %2126 = vmatprep.subr.mxu0 0.0
        %2127 = vmatpush1.msra.mxu0 0.0
        %2128 = vmatprep.subr.mxu0 0.0
        %2129 = vmatpush1.msra.mxu0 0.0
        %2130 = vmatprep.subr.mxu0 0.0
        %2131 = vmatpush1.msra.mxu0 0.0
        %2132 = vmatprep.subr.mxu0 0.0
        %2133 = vmatpush1.msra.mxu0 0.0
        %2134 = vmatprep.subr.mxu0 0.0
        %2135 = vmatpush1.msra.mxu0 0.0
        %2136 = vmatprep.subr.mxu0 0.0
        %2137 = vmatpush1.msra.mxu0 0.0
        %2138 = vmatprep.subr.mxu0 0.0
        %2139 = vmatpush1.msra.mxu0 0.0
        %2140 = vmatprep.subr.mxu0 0.0
        %2141 = vmatpush1.msra.mxu0 0.0
        %2142 = vmatprep.subr.mxu0 0.0
        %2143 = vmatpush1.msra.mxu0 0.0
        %2144 = vmatprep.subr.mxu0 0.0
        %2145 = vmatpush1.msra.mxu0 0.0
        %2146 = vmatprep.subr.mxu0 0.0
        %2147 = vmatpush1.msra.mxu0 0.0
        %2148 = vmatprep.subr.mxu0 0.0
        %2149 = vmatpush1.msra.mxu0 0.0
        %2150 = vmatprep.subr.mxu0 0.0
        %2151 = vmatpush1.msra.mxu0 0.0
        %2152 = vmatprep.subr.mxu0 0.0
        %2153 = vmatpush1.msra.mxu0 0.0
        %2154 = vmatprep.subr.mxu0 0.0
        %2155 = vmatpush1.msra.mxu0 0.0
        %2156 = vmatprep.subr.mxu0 0.0
        %2157 = vmatpush1.msra.mxu0 0.0
        %2158 = vmatprep.mubr.f32.mxu0 0.0
        %v2159 = vand.u32 %v648, 4294901760
        %2160 = vmatmul.mubr.f32.gmra.mrb[0].mxu0 %v2159
        %v2161 = vpop.f32.mrb[0].mxu0
        %v2162 = vadd.f32 %v2083, %v2161
        %v2163 = vpop.f32.mrb[0].mxu0
        %2164 = vmatprep.mubr.f32.mxu0 0.0
        %v2165 = vand.u32 %v650, 4294901760
        %2166 = vmatmul.mubr.f32.gmra.mrb[0].mxu0 %v2165
        %v2167 = vpop.f32.mrb[0].mxu0
        %v2168 = vadd.f32 %v2089, %v2167
        %v2169 = vpop.f32.mrb[0].mxu0
        %2170 = vdwg.mxu0
        %s2171 = scalar_lea.vmem %s110, 24 [#allocation2]
        %2172 = vst.msk [vmem:[%s2171] sm:$0xff] %vm641, %v2162
        %2173 = vst.msk [vmem:[%s2171 + $0x20] sm:$0xff] %vm641, %v2168
        %s2174 = sand.u32 %s49, 1
        %s2175 = scalar_lea.sflag [#allocation3], %s2174
        %s2176 = sand.u32 %s49, 1
        %s2177 = smul.addr %s2176, 64
        %s2178 = scalar_lea.vmem [#allocation2], %s2177
        // Predicated region
        $region25: #{tpu_custom_call.1} parent=23 // pred_check
          %p2179 = pneg %p59
        $region26: #{tpu_custom_call.1} parent=23 // pred_check_branch
          %2181 = sbr.rel (%p2179) target = $region28
        $region27: #{tpu_custom_call.1} parent=23 // pred_region
          %s2182 = smul.u32 2, %s15
          %s2184 = ssub.s32 1024, 1024
          %2185 = vsyncadd %s2175, %s2184
          %s2186 = smul.addr %s2182, 4
          %s2187 = smul.addr %s2186, 128
          %s2188 = scalar_lea.hbm %s1, %s2187
          %s2189 = sshll.u32 %s2178, 4
          %s2190 = int_to_ptr.vmem [resolvable:$true] %s2189
          %2195 = dma.vmem_to_hbm [thread:$0]  %s2190, 1024, %s2188, %s2175, 128, 128, 8
        $region28: #{tpu_custom_call.1} parent=23 // pred_fallthru
          _
      $region24: #{tpu_custom_call.1} parent=5 // pred_fallthru
        _
      %p2196 = scmp.le.s32.totalorder 2, %s10
      // Predicated region
      $region29: #{tpu_custom_call.1} parent=5 // pred_check
        %p2197 = pneg %p2196
      $region30: #{tpu_custom_call.1} parent=5 // pred_check_branch
        %2199 = sbr.rel (%p2197) target = $region32
      $region31: #{tpu_custom_call.1} parent=5 // pred_region
        %s2200 = ssub.s32 %s10, 2
        // Predicated region
        $region33: #{tpu_custom_call.1} parent=31 // pred_check
          %p2201 = pneg %p65
        $region34: #{tpu_custom_call.1} parent=31 // pred_check_branch
          %2203 = sbr.rel (%p2201) target = $region36
        $region35: #{tpu_custom_call.1} parent=31 // pred_region
          %s2204 = sand.u32 %s50, 1
          %s2205 = scalar_lea.sflag [#allocation3], %s2204
          %s2206 = sand.u32 %s50, 1
          %s2207 = smul.addr %s2206, 64
          %s2208 = scalar_lea.vmem [#allocation2], %s2207
          %2209 = dma.done %s2205, 1024
        $region36: #{tpu_custom_call.1} parent=31 // pred_fallthru
          _
      $region32: #{tpu_custom_call.1} parent=5 // pred_fallthru
        _
    $region6: #{tpu_custom_call.1} parent=1 // loop_footer
      %s14 = sadd.s32 1, %s10
    $region7: #{tpu_custom_call.1} parent=1 // loop_footer_branch
      %9 = sbr.rel target = $region3
    $region8: #{tpu_custom_call.1} parent=1 // loop_exit
      _
    %2210 = vsyncpa [#allocation3], 1
    %s2211 = scalar_lea.sflag [#allocation3], 1
    %2212 = vsyncpa %s2211, 1

</llo_original>
